<compile_context>
chip_gen: v7x
topology: tpu7x:2x2x1
jax: 0.10.0
libtpu: 0.0.40
codegen_flags: <defaults>
</compile_context>

<pallas_src>
from functools import partial

import jax
import jax.numpy as jnp
from jax import lax
from jax.experimental import pallas as pl
from jax.experimental.pallas import tpu as pltpu


def attention_kernel(x_ref, wq_ref, wkv_ref, wout_ref, bout_ref, o_ref, kv_ref, *,
                     heads, dim_head, k_tile, approx_recip):
    """One (batch, query-tile) grid step.

    x_ref    : (1, C, N)       channel-first tokens for this batch element (stays
                               resident across all query tiles; Q tile sliced from it)
    wq_ref   : (Hd, C)         Q 1x1-conv weight, softmax scale pre-folded, mm dtype
    wkv_ref  : (2*Hd, C)       K,V 1x1-conv weight (no bias), mm dtype
    wout_ref : (C, Hd)         output 1x1-conv weight, mm dtype
    bout_ref : (C, 1)          output 1x1-conv bias, f32
    o_ref    : (1, C, TQ)      output tile (spatial on lanes -> dense stores)
    kv_ref   : (2, Hd, N) VMEM K/V scratch, computed once per batch element
    """
    hidden = heads * dim_head
    n = x_ref.shape[2]
    tq = o_ref.shape[2]
    tk = k_tile
    num_q = n // tq
    num_k = n // tk
    mm_dtype = kv_ref.dtype

    qi = pl.program_id(1)

    # ---- K/V projection: once per batch element (qi == 0), reused by all q tiles.
    @pl.when(qi == 0)
    def _():
        kv = jnp.dot(wkv_ref[...], x_ref[0],
                     preferred_element_type=jnp.float32)            # (2*Hd, N)
        kv_ref[...] = kv.reshape(2, hidden, n).astype(mm_dtype)

    # ---- Q projection for this tile, sliced from the already-resident x block.
    if num_q == 1:
        x_q = x_ref[0]                                              # (C, N)
    else:
        q_off = pl.multiple_of(qi * tq, 128)                        # tq % 128 == 0 here
        x_q = x_ref[0, :, pl.ds(q_off, tq)]                         # (C, TQ)
    q = jnp.dot(wq_ref[...], x_q,
                preferred_element_type=jnp.float32)                 # (Hd, TQ), scale folded
    q_mm = q.reshape(heads, dim_head, tq).astype(mm_dtype)          # (h, d, TQ)

    def scores(k_c):
        # s[h, j, i] = sum_d k[h, d, j] * q[h, d, i] : keys on sublanes, TQ on lanes.
        return jnp.einsum('hdj,hdi->hji', k_c, q_mm,
                          preferred_element_type=jnp.float32)

    def pv(v_c, p):
        # acc[h, d, i] = sum_j v[h, d, j] * p[h, j, i]  (plain batched MXU matmul).
        return jnp.einsum('hdj,hji->hdi', v_c, p.astype(mm_dtype),
                          preferred_element_type=jnp.float32)

    if num_k == 1:
        # Whole key axis in one shot (small N): plain stable softmax, no online update.
        k_all = kv_ref[0].reshape(heads, dim_head, n)
        v_all = kv_ref[1].reshape(heads, dim_head, n)
        s = scores(k_all)                                           # (h, N, TQ)
        m = jnp.max(s, axis=1, keepdims=True)                       # (h, 1, TQ)
        p = jnp.exp(s - m)                                          # (h, N, TQ)
        l = jnp.sum(p, axis=1, keepdims=True)                       # (h, 1, TQ)
        acc = pv(v_all, p)                                          # (h, d, TQ)
    else:
        # Flash-style online softmax over key chunks: VMEM bounded by (h, TK, TQ).
        def body(ki, carry):
            m, l, acc = carry
            k_off = pl.multiple_of(ki * tk, 128)                    # tk % 128 == 0 here
            k_c = kv_ref[0, :, pl.ds(k_off, tk)].reshape(heads, dim_head, tk)
            v_c = kv_ref[1, :, pl.ds(k_off, tk)].reshape(heads, dim_head, tk)
            s = scores(k_c)                                         # (h, TK, TQ)
            m_new = jnp.maximum(m, jnp.max(s, axis=1, keepdims=True))
            alpha = jnp.exp(m - m_new)                              # (h, 1, TQ)
            p = jnp.exp(s - m_new)                                  # (h, TK, TQ)
            l_new = alpha * l + jnp.sum(p, axis=1, keepdims=True)
            acc_new = alpha * acc + pv(v_c, p)
            return m_new, l_new, acc_new

        init = (jnp.full((heads, 1, tq), -jnp.inf, dtype=jnp.float32),
                jnp.zeros((heads, 1, tq), dtype=jnp.float32),
                jnp.zeros((heads, dim_head, tq), dtype=jnp.float32))
        _, l, acc = lax.fori_loop(0, num_k, body, init, unroll=num_k <= 4)

    # ---- Softmax normalization on the small (h, d, TQ) result (lane-dense on TQ).
    if approx_recip:
        po = acc * pl.reciprocal(l, approx=True)    # bf16 callers: EUP approx recip
    else:
        po = acc / l                                # f32 callers: exact divide
    po = po.astype(mm_dtype).reshape(hidden, tq)                    # (Hd, TQ)

    # ---- Output 1x1 conv (+bias); (C, TQ) keeps spatial on lanes -> dense vst.
    y = jnp.dot(wout_ref[...], po, preferred_element_type=jnp.float32)   # (C, TQ)
    o_ref[0] = (y + bout_ref[...]).astype(o_ref.dtype)


def _pick_tile(n, cands):
    for cand in cands:
        if n >= cand and n % cand == 0:
            return cand
    return n


def _vmem_limit_bytes():
    # ~80% of physical VMEM: ~102 MiB on v5e/v6e (128 MiB), ~51 MiB on v7x (64 MiB).
    cap = 64 * 1024 * 1024
    try:
        cap = int(pltpu.get_tpu_info().vmem_capacity_bytes)
    except Exception:  # hostless tracing / older runtimes: stay conservative
        pass
    return max(32 * 1024 * 1024, min(int(cap * 0.8), 110 * 1024 * 1024))


def _pick_q_tile(n, c, heads, dim_head, k_tile, x_itemsize, mm_itemsize, vmem_limit):
    hidden = heads * dim_head
    budget = int(vmem_limit * 0.7)                  # headroom for compiler temps
    fixed = 2 * c * n * x_itemsize                  # double-buffered resident x block
    fixed += 2 * hidden * n * mm_itemsize           # K/V VMEM scratch
    fixed += 4 * hidden * c * mm_itemsize           # resident weights
    for tq in (512, 256, 128):
        if n < tq or n % tq != 0:
            continue
        per = 2 * c * tq * x_itemsize                               # output block (x2)
        per += 3 * heads * k_tile * tq * 4                          # s, p (+ temp), f32
        per += heads * dim_head * tq * (8 + 2 * mm_itemsize)        # acc/q f32 + q/po mm
        if fixed + per <= budget:
            return tq
    return 128 if (n % 128 == 0 and n >= 128) else n


def attention_forward(x_nchw, w_qkv, w_out, b_out, *, heads, dim_head,
                      q_tile=None, k_tile=None):
    """x_nchw: (B, C, H, W); w_qkv: (3*Hd, C, 1, 1); w_out: (C, Hd, 1, 1); b_out: (C,)."""
    b, c, h, w = x_nchw.shape
    n = h * w
    hidden = heads * dim_head
    scale = dim_head ** (-0.5)

    x_dtype = x_nchw.dtype
    mm_dtype = x_dtype                    # bf16 callers -> bf16 MXU; f32 stays exact
    x_itemsize = x_nchw.dtype.itemsize
    mm_itemsize = x_itemsize
    approx_recip = x_dtype != jnp.float32

    # Channel-first token layout: pure reshape, no transposes on either side.
    x_tok = x_nchw.reshape(b, c, n)

    # Pre-fold / pre-cast grid-invariant parameters once, outside the kernel.
    w2d = w_qkv.reshape(3 * hidden, c)
    wq = (w2d[:hidden].astype(jnp.float32) * scale).astype(mm_dtype)   # scale folded
    wkv = w2d[hidden:].astype(mm_dtype)                                # rows = [k | v]
    wout = w_out.reshape(c, hidden).astype(mm_dtype)
    bout = b_out.reshape(c, 1).astype(jnp.float32)

    vmem_limit = _vmem_limit_bytes()
    if k_tile is None:
        k_tile = _pick_tile(n, (512, 256, 128))
    if q_tile is None:
        q_tile = _pick_q_tile(n, c, heads, dim_head, k_tile,
                              x_itemsize, mm_itemsize, vmem_limit)

    if n % q_tile != 0:
        raise ValueError(f"q_tile={q_tile} must divide N={n}")
    if n % k_tile != 0:
        raise ValueError(f"k_tile={k_tile} must divide N={n}")
    if n // q_tile > 1 and q_tile % 128 != 0:
        raise ValueError("q_tile must be a multiple of 128 when it tiles N")
    if n // k_tile > 1 and k_tile % 128 != 0:
        raise ValueError("k_tile must be a multiple of 128 when it tiles N")
    num_q = n // q_tile

    kernel = partial(attention_kernel, heads=heads, dim_head=dim_head,
                     k_tile=k_tile, approx_recip=approx_recip)

    flops = b * (2 * n * c * 3 * hidden            # qkv projections
                 + 4 * heads * n * n * dim_head    # QK^T + P@V
                 + 2 * n * hidden * c)             # output projection
    transcendentals = b * heads * n * n            # exp
    bytes_accessed = (2 * b * c * n + 3 * hidden * c + c * hidden + c) * x_itemsize

    y_tok = pl.pallas_call(
        kernel,
        out_shape=jax.ShapeDtypeStruct((b, c, n), x_dtype),
        grid_spec=pltpu.PrefetchScalarGridSpec(
            num_scalar_prefetch=0,
            grid=(b, num_q),
            in_specs=[
                pl.BlockSpec((1, c, n), lambda bi, qi: (bi, 0, 0)),    # x: resident per batch
                pl.BlockSpec((hidden, c), lambda bi, qi: (0, 0)),      # wq (scaled)
                pl.BlockSpec((2 * hidden, c), lambda bi, qi: (0, 0)),  # wkv
                pl.BlockSpec((c, hidden), lambda bi, qi: (0, 0)),      # wout
                pl.BlockSpec((c, 1), lambda bi, qi: (0, 0)),           # bias
            ],
            out_specs=pl.BlockSpec((1, c, q_tile), lambda bi, qi: (bi, 0, qi)),
            scratch_shapes=[pltpu.VMEM((2, hidden, n), mm_dtype)],     # K/V, per batch
        ),
        compiler_params=pltpu.CompilerParams(
            # batch is megacore-parallel; the query-tile axis must stay "arbitrary"
            # because the K/V scratch is initialised at qi == 0 and reused.
            dimension_semantics=("parallel", "arbitrary"),
            vmem_limit_bytes=vmem_limit),
        cost_estimate=pl.CostEstimate(flops=flops,
                                      transcendentals=transcendentals,
                                      bytes_accessed=bytes_accessed),
    )(x_tok, wq, wkv, wout, bout)

    return y_tok.reshape(b, c, h, w)


def attention_reference(x, w_qkv, w_out, b_out, *, heads, dim_head):
    """Pure-JAX reference mirroring the PyTorch forward exactly."""
    b, c, h, w = x.shape
    n = h * w
    hidden = heads * dim_head
    scale = dim_head ** (-0.5)

    qkv = jnp.einsum('bchw,oc->bohw', x, w_qkv.reshape(3 * hidden, c))
    q, k, v = jnp.split(qkv, 3, axis=1)
    rs = lambda t: t.reshape(b, heads, dim_head, n)   # 'b (h c) x y -> b h c (x y)'
    q, k, v = rs(q), rs(k), rs(v)
    q = q * scale
    sim = jnp.einsum('bhdi,bhdj->bhij', q, k)
    attn = jax.nn.softmax(sim, axis=-1)
    out = jnp.einsum('bhij,bhdj->bhid', attn, v)
    out = jnp.transpose(out, (0, 1, 3, 2)).reshape(b, hidden, h, w)  # 'b h (x y) d -> b (h d) x y'
    return jnp.einsum('bchw,oc->bohw', out, w_out.reshape(c, hidden)) + b_out.reshape(1, c, 1, 1)


if __name__ == "__main__":
    dim, heads, dim_head = 4, 4, 32
    hidden = heads * dim_head
    B, H, W = 2, 16, 16

    key = jax.random.PRNGKey(0)
    kx, kq, ko, kb = jax.random.split(key, 4)

    x = jax.random.normal(kx, (B, dim, H, W), dtype=jnp.float32)
    # deterministic parameter init (shapes match nn.Conv2d weights/bias)
    w_qkv = jax.random.normal(kq, (3 * hidden, dim, 1, 1), dtype=jnp.float32) * (1.0 / dim ** 0.5)
    w_out = jax.random.normal(ko, (dim, hidden, 1, 1), dtype=jnp.float32) * (1.0 / hidden ** 0.5)
    b_out = jax.random.normal(kb, (dim,), dtype=jnp.float32) * 0.1

    y_ref = attention_reference(x, w_qkv, w_out, b_out, heads=heads, dim_head=dim_head)

    # 1) main run: f32, auto-selected tiles (single key/query tile at N = 256).
    y = attention_forward(x, w_qkv, w_out, b_out, heads=heads, dim_head=dim_head)
    y = jax.block_until_ready(y)
    assert y.shape == (B, dim, H, W)
    assert jnp.allclose(y, y_ref, atol=2e-3, rtol=2e-3), "f32 mismatch vs reference"

    # 2) tiled path: force 128-wide q/k tiles so the online-softmax key loop, the
    #    per-batch K/V scratch reuse and the in-kernel query slicing are exercised.
    y_t = attention_forward(x, w_qkv, w_out, b_out, heads=heads, dim_head=dim_head,
                            q_tile=128, k_tile=128)
    y_t = jax.block_until_ready(y_t)
    assert jnp.allclose(y_t, y_ref, atol=2e-3, rtol=2e-3), "tiled-path mismatch vs reference"

    # 3) bf16 path: bf16 MXU matmuls with f32 accumulation + approx EUP reciprocal
    #    (looser tolerance accounts for bf16 rounding of x / weights / P).
    y_bf = attention_forward(x.astype(jnp.bfloat16), w_qkv, w_out, b_out,
                             heads=heads, dim_head=dim_head)
    y_bf = jax.block_until_ready(y_bf).astype(jnp.float32)
    assert jnp.allclose(y_bf, y_ref, atol=1e-1, rtol=1e-1), "bf16 mismatch vs reference"

    print("KERNEL_OK")
</pallas_src>

<mosaic_0001>
module attributes {stable_mosaic.version = 11 : i64} {
  func.func @attention_kernel(%arg0: i32, %arg1: i32, %arg2: memref<1x4x256xf32, #tpu.memory_space<vmem>>, %arg3: memref<128x4xf32, #tpu.memory_space<vmem>>, %arg4: memref<256x4xf32, #tpu.memory_space<vmem>>, %arg5: memref<4x128xf32, #tpu.memory_space<vmem>>, %arg6: memref<4x1xf32, #tpu.memory_space<vmem>>, %arg7: memref<1x4x256xf32, #tpu.memory_space<vmem>>, %arg8: memref<2x128x256xf32, #tpu.memory_space<vmem>>) attributes {dimension_semantics = [#tpu.dimension_semantics<parallel>, #tpu.dimension_semantics<arbitrary>], iteration_bounds = array<i64: 2, 1>, scalar_prefetch = 0 : i64, scratch_operands = 1 : i64, tpu.core_type = #tpu.core_type<tc>, window_params = [{transform_indices = @transform_0, window_bounds = array<i64: 1, 4, 256>}, {pipeline_mode = #tpu.pipeline_mode<synchronous>, transform_indices = @transform_1, window_bounds = array<i64: 128, 4>}, {pipeline_mode = #tpu.pipeline_mode<synchronous>, transform_indices = @transform_2, window_bounds = array<i64: 256, 4>}, {pipeline_mode = #tpu.pipeline_mode<synchronous>, transform_indices = @transform_3, window_bounds = array<i64: 4, 128>}, {pipeline_mode = #tpu.pipeline_mode<synchronous>, transform_indices = @transform_4, window_bounds = array<i64: 4, 1>}, {transform_indices = @transform_5, window_bounds = array<i64: 1, 4, 256>}]} {
    %c0_i32 = arith.constant 0 : i32
    %0 = arith.cmpi eq, %arg1, %c0_i32 : i32
    %1 = arith.extui %0 : i1 to i32
    %c0_i32_0 = arith.constant 0 : i32
    %2 = arith.cmpi ne, %1, %c0_i32_0 : i32
    scf.if %2 {
      %c0_22 = arith.constant 0 : index
      %c0_23 = arith.constant 0 : index
      %34 = vector.load %arg4[%c0_22, %c0_23] : memref<256x4xf32, #tpu.memory_space<vmem>>, vector<256x4xf32>
      %c0_24 = arith.constant 0 : index
      %c0_25 = arith.constant 0 : index
      %c0_26 = arith.constant 0 : index
      %35 = vector.load %arg2[%c0_24, %c0_25, %c0_26] : memref<1x4x256xf32, #tpu.memory_space<vmem>>, vector<1x4x256xf32>
      %36 = vector.shape_cast %35 : vector<1x4x256xf32> to vector<4x256xf32>
      %cst_27 = arith.constant dense<0.000000e+00> : vector<256x256xf32>
      %37 = tpu.matmul %34, %36, %cst_27 {dimension_numbers = #tpu.dot_dimension_numbers<[1], [0], [0], [1], [0, 0, 1, 1], [], []>} : vector<256x4xf32>, vector<4x256xf32>, vector<256x256xf32> -> vector<256x256xf32>
      %38 = vector.shape_cast %37 : vector<256x256xf32> to vector<2x128x256xf32>
      %c0_28 = arith.constant 0 : index
      %c0_29 = arith.constant 0 : index
      %c0_30 = arith.constant 0 : index
      %39 = vector.load %arg8[%c0_28, %c0_29, %c0_30] : memref<2x128x256xf32, #tpu.memory_space<vmem>>, vector<2x128x256xf32>
      tpu.vector_store %arg8[%c0_28, %c0_29, %c0_30], %38 {strides = array<i32>} : memref<2x128x256xf32, #tpu.memory_space<vmem>>, vector<2x128x256xf32>,
    } else {
    }
    %c0 = arith.constant 0 : index
    %c0_1 = arith.constant 0 : index
    %c0_2 = arith.constant 0 : index
    %3 = vector.load %arg2[%c0, %c0_1, %c0_2] : memref<1x4x256xf32, #tpu.memory_space<vmem>>, vector<1x4x256xf32>
    %4 = vector.shape_cast %3 : vector<1x4x256xf32> to vector<4x256xf32>
    %c0_3 = arith.constant 0 : index
    %c0_4 = arith.constant 0 : index
    %5 = vector.load %arg3[%c0_3, %c0_4] : memref<128x4xf32, #tpu.memory_space<vmem>>, vector<128x4xf32>
    %cst = arith.constant dense<0.000000e+00> : vector<128x256xf32>
    %6 = tpu.matmul %5, %4, %cst {dimension_numbers = #tpu.dot_dimension_numbers<[1], [0], [0], [1], [0, 0, 1, 1], [], []>} : vector<128x4xf32>, vector<4x256xf32>, vector<128x256xf32> -> vector<128x256xf32>
    %7 = vector.shape_cast %6 : vector<128x256xf32> to vector<4x32x256xf32>
    %c0_5 = arith.constant 0 : index
    %c0_6 = arith.constant 0 : index
    %c0_7 = arith.constant 0 : index
    %8 = vector.load %arg8[%c0_5, %c0_6, %c0_7] : memref<2x128x256xf32, #tpu.memory_space<vmem>>, vector<1x128x256xf32>
    %9 = vector.shape_cast %8 : vector<1x128x256xf32> to vector<128x256xf32>
    %10 = vector.shape_cast %9 : vector<128x256xf32> to vector<4x32x256xf32>
    %c1 = arith.constant 1 : index
    %c0_8 = arith.constant 0 : index
    %c0_9 = arith.constant 0 : index
    %11 = vector.load %arg8[%c1, %c0_8, %c0_9] : memref<2x128x256xf32, #tpu.memory_space<vmem>>, vector<1x128x256xf32>
    %12 = vector.shape_cast %11 : vector<1x128x256xf32> to vector<128x256xf32>
    %13 = vector.shape_cast %12 : vector<128x256xf32> to vector<4x32x256xf32>
    "tpu.trace_start"() <{level = 10 : i32, message = "hdj,hdi->hji"}> : () -> ()
    %cst_10 = arith.constant dense<0.000000e+00> : vector<4x256x256xf32>
    %14 = tpu.matmul %10, %7, %cst_10 {dimension_numbers = #tpu.dot_dimension_numbers<[1], [1], [2], [2], [0, 0, 0, 2, 1, 2], [0], [0]>} : vector<4x32x256xf32>, vector<4x32x256xf32>, vector<4x256x256xf32> -> vector<4x256x256xf32>
    "tpu.trace_stop"() : () -> ()
    %cst_11 = arith.constant dense<0xFF800000> : vector<4x256xf32>
    %15 = vector.multi_reduction <maximumf>, %14, %cst_11 [1] : vector<4x256x256xf32> to vector<4x256xf32>
    %16 = vector.shape_cast %15 : vector<4x256xf32> to vector<4x1x256xf32>
    %17 = vector.broadcast %16 : vector<4x1x256xf32> to vector<4x256x256xf32>
    %18 = arith.subf %14, %17 : vector<4x256x256xf32>
    %19 = math.exp %18 : vector<4x256x256xf32>
    %cst_12 = arith.constant dense<0.000000e+00> : vector<4x256xf32>
    %20 = vector.multi_reduction <add>, %19, %cst_12 [1] : vector<4x256x256xf32> to vector<4x256xf32>
    %21 = vector.shape_cast %20 : vector<4x256xf32> to vector<4x1x256xf32>
    "tpu.trace_start"() <{level = 10 : i32, message = "hdj,hji->hdi"}> : () -> ()
    %cst_13 = arith.constant dense<0.000000e+00> : vector<4x32x256xf32>
    %22 = tpu.matmul %13, %19, %cst_13 {dimension_numbers = #tpu.dot_dimension_numbers<[2], [1], [1], [2], [0, 0, 0, 1, 1, 2], [0], [0]>} : vector<4x32x256xf32>, vector<4x256x256xf32>, vector<4x32x256xf32> -> vector<4x32x256xf32>
    "tpu.trace_stop"() : () -> ()
    %23 = vector.broadcast %21 : vector<4x1x256xf32> to vector<4x32x256xf32>
    %24 = arith.divf %22, %23 : vector<4x32x256xf32>
    %25 = vector.shape_cast %24 : vector<4x32x256xf32> to vector<128x256xf32>
    %c0_14 = arith.constant 0 : index
    %c0_15 = arith.constant 0 : index
    %26 = vector.load %arg5[%c0_14, %c0_15] : memref<4x128xf32, #tpu.memory_space<vmem>>, vector<4x128xf32>
    %cst_16 = arith.constant dense<0.000000e+00> : vector<4x256xf32>
    %27 = tpu.matmul %26, %25, %cst_16 {dimension_numbers = #tpu.dot_dimension_numbers<[1], [0], [0], [1], [0, 0, 1, 1], [], []>} : vector<4x128xf32>, vector<128x256xf32>, vector<4x256xf32> -> vector<4x256xf32>
    %c0_17 = arith.constant 0 : index
    %c0_18 = arith.constant 0 : index
    %28 = vector.load %arg6[%c0_17, %c0_18] : memref<4x1xf32, #tpu.memory_space<vmem>>, vector<4x1xf32>
    %29 = vector.broadcast %28 : vector<4x1xf32> to vector<4x256xf32>
    %30 = arith.addf %27, %29 : vector<4x256xf32>
    %c0_19 = arith.constant 0 : index
    %c0_20 = arith.constant 0 : index
    %c0_21 = arith.constant 0 : index
    %31 = vector.load %arg7[%c0_19, %c0_20, %c0_21] : memref<1x4x256xf32, #tpu.memory_space<vmem>>, vector<1x4x256xf32>
    %32 = vector.shape_cast %31 : vector<1x4x256xf32> to vector<4x256xf32>
    %33 = vector.shape_cast %30 : vector<4x256xf32> to vector<1x4x256xf32>
    tpu.vector_store %arg7[%c0_19, %c0_20, %c0_21], %33 {strides = array<i32>} : memref<1x4x256xf32, #tpu.memory_space<vmem>>, vector<1x4x256xf32>,
    return
  }
  func.func @transform_0(%arg0: i32, %arg1: i32) -> (i32, i32, i32) {
    %c0_i32 = arith.constant 0 : i32
    %c0_i32_0 = arith.constant 0 : i32
    %c0_i32_1 = arith.constant 0 : i32
    return %arg0, %c0_i32, %c0_i32_0 : i32, i32, i32
  }
  func.func @transform_1(%arg0: i32, %arg1: i32) -> (i32, i32) {
    %c0_i32 = arith.constant 0 : i32
    %c0_i32_0 = arith.constant 0 : i32
    %c0_i32_1 = arith.constant 0 : i32
    return %c0_i32, %c0_i32_0 : i32, i32
  }
  func.func @transform_2(%arg0: i32, %arg1: i32) -> (i32, i32) {
    %c0_i32 = arith.constant 0 : i32
    %c0_i32_0 = arith.constant 0 : i32
    %c0_i32_1 = arith.constant 0 : i32
    return %c0_i32, %c0_i32_0 : i32, i32
  }
  func.func @transform_3(%arg0: i32, %arg1: i32) -> (i32, i32) {
    %c0_i32 = arith.constant 0 : i32
    %c0_i32_0 = arith.constant 0 : i32
    %c0_i32_1 = arith.constant 0 : i32
    return %c0_i32, %c0_i32_0 : i32, i32
  }
  func.func @transform_4(%arg0: i32, %arg1: i32) -> (i32, i32) {
    %c0_i32 = arith.constant 0 : i32
    %c0_i32_0 = arith.constant 0 : i32
    %c0_i32_1 = arith.constant 0 : i32
    return %c0_i32, %c0_i32_0 : i32, i32
  }
  func.func @transform_5(%arg0: i32, %arg1: i32) -> (i32, i32, i32) {
    %c0_i32 = arith.constant 0 : i32
    %c0_i32_0 = arith.constant 0 : i32
    return %arg0, %c0_i32, %arg1 : i32, i32, i32
  }
}

</mosaic_0001>

<llo_original>
// kernel: tpu_custom_call.1
$region0: #{tpu_custom_call.1}
  #allocation0 [shape = 'u32[]', space=smem, size = 0x4, offset = 0x4, fixed_abs, tag = 'smem constant byte address 0x4 - core index']
  #allocation1 [shape = 'u32[144,128]{1,0:T(1,128)}', space=vmem, size = 0x12000, scoped, tag = 'internal scratch']
  #allocation2 [shape = 'f32[2,128,256]{2,1,0:T(8,128)}', space=vmem, size = 0x40000, scoped, tag = 'scratch operand']
  %s0 = inlined_call_operand.vmem [shape: f32[2,4,256], index: 0, kind: input, shape index: {}]
  %s1 = inlined_call_operand.vmem [shape: f32[128,4], index: 1, kind: input, shape index: {}]
  %s2 = inlined_call_operand.vmem [shape: f32[256,4], index: 2, kind: input, shape index: {}]
  %s3 = inlined_call_operand.vmem [shape: f32[4,128], index: 3, kind: input, shape index: {}]
  %s4 = inlined_call_operand.vmem [shape: f32[4,1], index: 4, kind: input, shape index: {}]
  %s5 = inlined_call_operand.hbm [shape: f32[2,4,256], index: 5, kind: output, shape index: {}]
  %s6 = sld [smem:[#allocation0]]
  $region57: #{tpu_custom_call.1} parent=0
    _
  %s8 = ssub.s32 1, %s6
  %s9 = scalar_select 0, %s8, %s6
  $region1: #{tpu_custom_call.1} parent=0
    #allocation3 [shape = 'u8[8192]{0}', space=vmem, size = 0x2000, scoped, tag = 'output window, operand 0']
    #allocation4 [shape = 's32[2]{0}', space=sflag, size = 0x8, scoped, tag = 'scoped memory for tpu_custom_call.1']
    %10 = vsyncpa [#allocation4], 0
    %s11 = scalar_lea.sflag [#allocation4], 1
    %12 = vsyncpa %s11, 0
    loop: start=0, step=1, limit=4
    $region2: #{tpu_custom_call.1} parent=1 // loop_pre_header
      _
    $region3: #{tpu_custom_call.1} parent=1 // loop_header
      %s14 = sphi 0, %s18
      %p15 = scmp.ge.s32.totalorder %s14, 4
      %s21 = sphi 0, %s33
      %s22 = sphi 0, %s29
      %s23 = sphi 0, %s21
      %s24 = sphi 0, %s22
      %s25 = sphi 0, %s23
      %s26 = sphi 0, %s24
      %s36 = sphi 0, %s38
      %s39 = sphi 0, %s36
      %s40 = sphi 0, %s39
      %s56 = sphi 0, %s40
      %s60 = sphi 0, %s60
      %s62 = sphi 0, %s60
      %s63 = sphi 0, %s62
      %s77 = sphi 0, %s63
      %s81 = sphi 0, %s81
      %s83 = sphi 0, %s81
      %s84 = sphi 0, %s83
      %s98 = sphi 0, %s84
      %s102 = sphi 0, %s102
      %s104 = sphi 0, %s102
      %s105 = sphi 0, %s104
      %s119 = sphi 0, %s105
      %s123 = sphi 0, %s123
      %s125 = sphi 0, %s123
      %s126 = sphi 0, %s125
      %s140 = sphi 0, %s126
      %s148 = sphi 0, %s150
      %s151 = sphi 0, %s148
      %s152 = sphi 0, %s151
      %s168 = sphi 0, %s152
    $region4: #{tpu_custom_call.1} parent=1 // loop_header_branch
      %17 = sbr.rel (%p15) target = $region8
    $region5: #{tpu_custom_call.1} parent=1 // loop_body
      %s19 = ssub.s32 %s14, 1
      %s20 = ssub.s32 %s14, 2
      %s27 = sadd.s32 1, %s22
      %p28 = scmp.ge.s32.totalorder %s27, 1
      %s29 = scalar_select %p28, 0, %s27
      %s30 = sadd.s32 1, %s21
      %s31 = scalar_select %p28, %s30, %s21
      %p32 = scmp.ge.s32.totalorder %s31, 2
      %s33 = scalar_select %p32, 0, %s31
      %s34 = ssub.s32 %s21, %s33
      %p35 = scmp.eq.s32.totalorder %s34, 0
      %s37 = sadd.s32 %s36, 1
      %s38 = scalar_select %p35, %s36, %s37
      %p41 = pneg %p35
      %p42 = scmp.eq.s32.totalorder %s14, 1
      %p43 = por %p41, %p42
      %p44 = scmp.ne.s32.totalorder %s36, %s39
      %p45 = scmp.eq.s32.totalorder %s14, 0
      %p46 = por %p44, %p45
      %p47 = scmp.ne.s32.totalorder %s36, %s39
      %p48 = scmp.eq.s32.totalorder %s19, 1
      %p49 = por %p47, %p48
      %p50 = scmp.ne.s32.totalorder %s39, %s40
      %p51 = scmp.eq.s32.totalorder %s19, 0
      %p52 = por %p50, %p51
      %p53 = scmp.ne.s32.totalorder %s39, %s40
      %p54 = scmp.eq.s32.totalorder %s20, 1
      %p55 = por %p53, %p54
      %p57 = scmp.ne.s32.totalorder %s40, %s56
      %p58 = scmp.eq.s32.totalorder %s20, 0
      %p59 = por %p57, %p58
      %s61 = sadd.s32 %s60, 1
      %p64 = scmp.eq.s32.totalorder %s14, 1
      %p65 = scmp.ne.s32.totalorder %s60, %s62
      %p66 = scmp.eq.s32.totalorder %s14, 0
      %p67 = por %p65, %p66
      %p68 = scmp.ne.s32.totalorder %s60, %s62
      %p69 = scmp.eq.s32.totalorder %s19, 1
      %p70 = por %p68, %p69
      %p71 = scmp.ne.s32.totalorder %s62, %s63
      %p72 = scmp.eq.s32.totalorder %s19, 0
      %p73 = por %p71, %p72
      %p74 = scmp.ne.s32.totalorder %s62, %s63
      %p75 = scmp.eq.s32.totalorder %s20, 1
      %p76 = por %p74, %p75
      %p78 = scmp.ne.s32.totalorder %s63, %s77
      %p79 = scmp.eq.s32.totalorder %s20, 0
      %p80 = por %p78, %p79
      %s82 = sadd.s32 %s81, 1
      %p85 = scmp.eq.s32.totalorder %s14, 1
      %p86 = scmp.ne.s32.totalorder %s81, %s83
      %p87 = scmp.eq.s32.totalorder %s14, 0
      %p88 = por %p86, %p87
      %p89 = scmp.ne.s32.totalorder %s81, %s83
      %p90 = scmp.eq.s32.totalorder %s19, 1
      %p91 = por %p89, %p90
      %p92 = scmp.ne.s32.totalorder %s83, %s84
      %p93 = scmp.eq.s32.totalorder %s19, 0
      %p94 = por %p92, %p93
      %p95 = scmp.ne.s32.totalorder %s83, %s84
      %p96 = scmp.eq.s32.totalorder %s20, 1
      %p97 = por %p95, %p96
      %p99 = scmp.ne.s32.totalorder %s84, %s98
      %p100 = scmp.eq.s32.totalorder %s20, 0
      %p101 = por %p99, %p100
      %s103 = sadd.s32 %s102, 1
      %p106 = scmp.eq.s32.totalorder %s14, 1
      %p107 = scmp.ne.s32.totalorder %s102, %s104
      %p108 = scmp.eq.s32.totalorder %s14, 0
      %p109 = por %p107, %p108
      %p110 = scmp.ne.s32.totalorder %s102, %s104
      %p111 = scmp.eq.s32.totalorder %s19, 1
      %p112 = por %p110, %p111
      %p113 = scmp.ne.s32.totalorder %s104, %s105
      %p114 = scmp.eq.s32.totalorder %s19, 0
      %p115 = por %p113, %p114
      %p116 = scmp.ne.s32.totalorder %s104, %s105
      %p117 = scmp.eq.s32.totalorder %s20, 1
      %p118 = por %p116, %p117
      %p120 = scmp.ne.s32.totalorder %s105, %s119
      %p121 = scmp.eq.s32.totalorder %s20, 0
      %p122 = por %p120, %p121
      %s124 = sadd.s32 %s123, 1
      %p127 = scmp.eq.s32.totalorder %s14, 1
      %p128 = scmp.ne.s32.totalorder %s123, %s125
      %p129 = scmp.eq.s32.totalorder %s14, 0
      %p130 = por %p128, %p129
      %p131 = scmp.ne.s32.totalorder %s123, %s125
      %p132 = scmp.eq.s32.totalorder %s19, 1
      %p133 = por %p131, %p132
      %p134 = scmp.ne.s32.totalorder %s125, %s126
      %p135 = scmp.eq.s32.totalorder %s19, 0
      %p136 = por %p134, %p135
      %p137 = scmp.ne.s32.totalorder %s125, %s126
      %p138 = scmp.eq.s32.totalorder %s20, 1
      %p139 = por %p137, %p138
      %p141 = scmp.ne.s32.totalorder %s126, %s140
      %p142 = scmp.eq.s32.totalorder %s20, 0
      %p143 = por %p141, %p142
      %s144 = ssub.s32 %s21, %s33
      %s145 = ssub.s32 %s22, %s29
      %s146 = sor.u32 %s144, %s145
      %p147 = scmp.eq.s32.totalorder %s146, 0
      %s149 = sadd.s32 %s148, 1
      %s150 = scalar_select %p147, %s148, %s149
      %p153 = pneg %p147
      %p154 = scmp.eq.s32.totalorder %s14, 1
      %p155 = por %p153, %p154
      %p156 = scmp.ne.s32.totalorder %s148, %s151
      %p157 = scmp.eq.s32.totalorder %s14, 0
      %p158 = por %p156, %p157
      %p159 = scmp.ne.s32.totalorder %s148, %s151
      %p160 = scmp.eq.s32.totalorder %s19, 1
      %p161 = por %p159, %p160
      %p162 = scmp.ne.s32.totalorder %s151, %s152
      %p163 = scmp.eq.s32.totalorder %s19, 0
      %p164 = por %p162, %p163
      %p165 = scmp.ne.s32.totalorder %s151, %s152
      %p166 = scmp.eq.s32.totalorder %s20, 1
      %p167 = por %p165, %p166
      %p169 = scmp.ne.s32.totalorder %s152, %s168
      %p170 = scmp.eq.s32.totalorder %s20, 0
      %p171 = por %p169, %p170
      %p172 = scmp.le.s32.totalorder 1, %s14
      %p173 = scmp.lt.s32.totalorder %s14, 3
      %p174 = pnand %p172, %p173
      %p175 = pneg %p174
      // Predicated region
      $region9: #{tpu_custom_call.1} parent=5 // pred_check
        _
      $region10: #{tpu_custom_call.1} parent=5 // pred_check_branch
        %177 = sbr.rel (%p174) target = $region12
      $region11: #{tpu_custom_call.1} parent=5 // pred_region
        %s178 = ssub.s32 %s14, 1
        // Predicated region
        $region13: #{tpu_custom_call.1} parent=11 // pred_check
          %p179 = pneg %p73
        $region14: #{tpu_custom_call.1} parent=11 // pred_check_branch
          %181 = sbr.rel (%p179) target = $region16
        $region15: #{tpu_custom_call.1} parent=11 // pred_region
          _
        $region16: #{tpu_custom_call.1} parent=11 // pred_fallthru
          _
        // Predicated region
        $region17: #{tpu_custom_call.1} parent=11 // pred_check
          %p182 = pneg %p94
        $region18: #{tpu_custom_call.1} parent=11 // pred_check_branch
          %184 = sbr.rel (%p182) target = $region20
        $region19: #{tpu_custom_call.1} parent=11 // pred_region
          _
        $region20: #{tpu_custom_call.1} parent=11 // pred_fallthru
          _
        // Predicated region
        $region21: #{tpu_custom_call.1} parent=11 // pred_check
          %p185 = pneg %p115
        $region22: #{tpu_custom_call.1} parent=11 // pred_check_branch
          %187 = sbr.rel (%p185) target = $region24
        $region23: #{tpu_custom_call.1} parent=11 // pred_region
          _
        $region24: #{tpu_custom_call.1} parent=11 // pred_fallthru
          _
        // Predicated region
        $region25: #{tpu_custom_call.1} parent=11 // pred_check
          %p188 = pneg %p136
        $region26: #{tpu_custom_call.1} parent=11 // pred_check_branch
          %190 = sbr.rel (%p188) target = $region28
        $region27: #{tpu_custom_call.1} parent=11 // pred_region
          _
        $region28: #{tpu_custom_call.1} parent=11 // pred_fallthru
          _
      $region12: #{tpu_custom_call.1} parent=5 // pred_fallthru
        _
      %p191 = scmp.lt.s32.totalorder %s14, 2
      // Predicated region
      $region29: #{tpu_custom_call.1} parent=5 // pred_check
        %p192 = pneg %p191
      $region30: #{tpu_custom_call.1} parent=5 // pred_check_branch
        %194 = sbr.rel (%p192) target = $region32
      $region31: #{tpu_custom_call.1} parent=5 // pred_region
        // Predicated region
        $region33: #{tpu_custom_call.1} parent=31 // pred_check
          %p195 = pneg %p46
        $region34: #{tpu_custom_call.1} parent=31 // pred_check_branch
          %197 = sbr.rel (%p195) target = $region36
        $region35: #{tpu_custom_call.1} parent=31 // pred_region
          %p198 = scmp.lt.s32.totalorder %s21, 1
          %s199 = scalar_select %p198, %s21, 1
          %s200 = smul.addr %s199, 2
          %s201 = smul.addr %s200, 4
          %s202 = scalar_lea.vmem %s0, %s201
        $region36: #{tpu_custom_call.1} parent=31 // pred_fallthru
          _
      $region32: #{tpu_custom_call.1} parent=5 // pred_fallthru
        _
      %p203 = scmp.le.s32.totalorder 1, %s14
      %p204 = scmp.lt.s32.totalorder %s14, 3
      %p205 = pnand %p203, %p204
      %p206 = pneg %p205
      // Predicated region
      $region37: #{tpu_custom_call.1} parent=5 // pred_check
        _
      $region38: #{tpu_custom_call.1} parent=5 // pred_check_branch
        %208 = sbr.rel (%p205) target = $region40
      $region39: #{tpu_custom_call.1} parent=5 // pred_region
        %s209 = ssub.s32 %s14, 1
        %p210 = scmp.lt.s32.totalorder %s23, 1
        %s211 = scalar_select %p210, %s23, 1
        %s212 = smul.addr %s211, 2
        %s213 = smul.addr %s212, 4
        %s214 = scalar_lea.vmem %s0, %s213
        %p215 = pneg %p52
        %p216 = pneg %p49
        %p217 = pneg %p73
        %p218 = pneg %p70
        %p219 = pneg %p94
        %p220 = pneg %p91
        %p221 = pneg %p115
        %p222 = pneg %p112
        %p223 = pneg %p136
        %p224 = pneg %p133
        %p225 = pneg %p164
        %p226 = pneg %p161
        %s227 = sand.u32 %s151, 1
        %s228 = scalar_lea.sflag [#allocation4], %s227
        %s229 = sand.u32 %s151, 1
        %s230 = smul.addr %s229, 8
        %s231 = scalar_lea.vmem [#allocation3], %s230
        %p232 = scmp.lt.s32.totalorder %s23, 1
        %s233 = scalar_select %p232, %s23, 1
        %s234 = smul.addr %s233, 2
        %s235 = smul.addr %s234, 4
        %s236 = scalar_lea.vmem %s0, %s235
        %s237 = smul.u32 2, %s24
        %p238 = scmp.eq.s32.totalorder %s24, 0
        // Predicated region
        $region41: #{tpu_custom_call.1} parent=39 // pred_check
          %p239 = pneg %p238
        $region42: #{tpu_custom_call.1} parent=39 // pred_check_branch
          %241 = sbr.rel (%p239) target = $region44
        $region43: #{tpu_custom_call.1} parent=39 // pred_region
          %v242 = vld [vmem:[%s2] sm:$0xff]
          %v243 = vld [vmem:[%s2 + $0x8] sm:$0xff]
          %v244 = vld [vmem:[%s2 + $0x10] sm:$0xff]
          %v245 = vld [vmem:[%s2 + $0x18] sm:$0xff]
          %v246 = vld [vmem:[%s2 + $0x20] sm:$0xff]
          %v247 = vld [vmem:[%s2 + $0x28] sm:$0xff]
          %v248 = vld [vmem:[%s2 + $0x30] sm:$0xff]
          %v249 = vld [vmem:[%s2 + $0x38] sm:$0xff]
          %v250 = vld [vmem:[%s2 + $0x40] sm:$0xff]
          %v251 = vld [vmem:[%s2 + $0x48] sm:$0xff]
          %v252 = vld [vmem:[%s2 + $0x50] sm:$0xff]
          %v253 = vld [vmem:[%s2 + $0x58] sm:$0xff]
          %v254 = vld [vmem:[%s2 + $0x60] sm:$0xff]
          %v255 = vld [vmem:[%s2 + $0x68] sm:$0xff]
          %v256 = vld [vmem:[%s2 + $0x70] sm:$0xff]
          %v257 = vld [vmem:[%s2 + $0x78] sm:$0xff]
          %v258 = vld [vmem:[%s2 + $0x80] sm:$0xff]
          %v259 = vld [vmem:[%s2 + $0x88] sm:$0xff]
          %v260 = vld [vmem:[%s2 + $0x90] sm:$0xff]
          %v261 = vld [vmem:[%s2 + $0x98] sm:$0xff]
          %v262 = vld [vmem:[%s2 + $0xa0] sm:$0xff]
          %v263 = vld [vmem:[%s2 + $0xa8] sm:$0xff]
          %v264 = vld [vmem:[%s2 + $0xb0] sm:$0xff]
          %v265 = vld [vmem:[%s2 + $0xb8] sm:$0xff]
          %v266 = vld [vmem:[%s2 + $0xc0] sm:$0xff]
          %v267 = vld [vmem:[%s2 + $0xc8] sm:$0xff]
          %v268 = vld [vmem:[%s2 + $0xd0] sm:$0xff]
          %v269 = vld [vmem:[%s2 + $0xd8] sm:$0xff]
          %v270 = vld [vmem:[%s2 + $0xe0] sm:$0xff]
          %v271 = vld [vmem:[%s2 + $0xe8] sm:$0xff]
          %v272 = vld [vmem:[%s2 + $0xf0] sm:$0xff]
          %v273 = vld [vmem:[%s2 + $0xf8] sm:$0xff]
          %v274 = vld [vmem:[%s236] sm:$0xff]
          %v276 = vcombine.high %v274, %v274
          %vm277 = vcmask 31744
          %v279 = vsel %vm277, %v242, 0
          %v282 = vsel %vm277, %v243, 0
          %v285 = vsel %vm277, %v244, 0
          %v288 = vsel %vm277, %v245, 0
          %v291 = vsel %vm277, %v246, 0
          %v294 = vsel %vm277, %v247, 0
          %v297 = vsel %vm277, %v248, 0
          %v300 = vsel %vm277, %v249, 0
          %v303 = vsel %vm277, %v250, 0
          %v306 = vsel %vm277, %v251, 0
          %v309 = vsel %vm277, %v252, 0
          %v312 = vsel %vm277, %v253, 0
          %v315 = vsel %vm277, %v254, 0
          %v318 = vsel %vm277, %v255, 0
          %v321 = vsel %vm277, %v256, 0
          %v324 = vsel %vm277, %v257, 0
          %v327 = vsel %vm277, %v258, 0
          %v330 = vsel %vm277, %v259, 0
          %v333 = vsel %vm277, %v260, 0
          %v336 = vsel %vm277, %v261, 0
          %v339 = vsel %vm277, %v262, 0
          %v342 = vsel %vm277, %v263, 0
          %v345 = vsel %vm277, %v264, 0
          %v348 = vsel %vm277, %v265, 0
          %v351 = vsel %vm277, %v266, 0
          %v354 = vsel %vm277, %v267, 0
          %v357 = vsel %vm277, %v268, 0
          %v360 = vsel %vm277, %v269, 0
          %v363 = vsel %vm277, %v270, 0
          %v366 = vsel %vm277, %v271, 0
          %v369 = vsel %vm277, %v272, 0
          %v372 = vsel %vm277, %v273, 0
          %vm374 = vcmask 1043456
          %v375 = vsel %vm374, %v274, 0
          %v377 = vsel %vm374, %v276, 0
          %379 = vmatprep.subr.mxu0 %v377
          %380 = vmatpush1.msra.mxu0 %v375
          %381 = vmatprep.subr.mxu0 0.0
          %382 = vmatpush1.msra.mxu0 0.0
          %383 = vmatprep.subr.mxu0 0.0
          %384 = vmatpush1.msra.mxu0 0.0
          %385 = vmatprep.subr.mxu0 0.0
          %386 = vmatpush1.msra.mxu0 0.0
          %387 = vmatprep.subr.mxu0 0.0
          %388 = vmatpush1.msra.mxu0 0.0
          %389 = vmatprep.subr.mxu0 0.0
          %390 = vmatpush1.msra.mxu0 0.0
          %391 = vmatprep.subr.mxu0 0.0
          %392 = vmatpush1.msra.mxu0 0.0
          %393 = vmatprep.subr.mxu0 0.0
          %394 = vmatpush1.msra.mxu0 0.0
          %395 = vmatprep.subr.mxu0 0.0
          %396 = vmatpush1.msra.mxu0 0.0
          %397 = vmatprep.subr.mxu0 0.0
          %398 = vmatpush1.msra.mxu0 0.0
          %399 = vmatprep.subr.mxu0 0.0
          %400 = vmatpush1.msra.mxu0 0.0
          %401 = vmatprep.subr.mxu0 0.0
          %402 = vmatpush1.msra.mxu0 0.0
          %403 = vmatprep.subr.mxu0 0.0
          %404 = vmatpush1.msra.mxu0 0.0
          %405 = vmatprep.subr.mxu0 0.0
          %406 = vmatpush1.msra.mxu0 0.0
          %407 = vmatprep.subr.mxu0 0.0
          %408 = vmatpush1.msra.mxu0 0.0
          %409 = vmatprep.subr.mxu0 0.0
          %410 = vmatpush1.msra.mxu0 0.0
          %411 = vmatprep.subr.mxu0 0.0
          %412 = vmatpush1.msra.mxu0 0.0
          %413 = vmatprep.subr.mxu0 0.0
          %414 = vmatpush1.msra.mxu0 0.0
          %415 = vmatprep.subr.mxu0 0.0
          %416 = vmatpush1.msra.mxu0 0.0
          %417 = vmatprep.subr.mxu0 0.0
          %418 = vmatpush1.msra.mxu0 0.0
          %419 = vmatprep.subr.mxu0 0.0
          %420 = vmatpush1.msra.mxu0 0.0
          %421 = vmatprep.subr.mxu0 0.0
          %422 = vmatpush1.msra.mxu0 0.0
          %423 = vmatprep.subr.mxu0 0.0
          %424 = vmatpush1.msra.mxu0 0.0
          %425 = vmatprep.subr.mxu0 0.0
          %426 = vmatpush1.msra.mxu0 0.0
          %427 = vmatprep.subr.mxu0 0.0
          %428 = vmatpush1.msra.mxu0 0.0
          %429 = vmatprep.subr.mxu0 0.0
          %430 = vmatpush1.msra.mxu0 0.0
          %431 = vmatprep.subr.mxu0 0.0
          %432 = vmatpush1.msra.mxu0 0.0
          %433 = vmatprep.subr.mxu0 0.0
          %434 = vmatpush1.msra.mxu0 0.0
          %435 = vmatprep.subr.mxu0 0.0
          %436 = vmatpush1.msra.mxu0 0.0
          %437 = vmatprep.subr.mxu0 0.0
          %438 = vmatpush1.msra.mxu0 0.0
          %439 = vmatprep.subr.mxu0 0.0
          %440 = vmatpush1.msra.mxu0 0.0
          %441 = vmatprep.subr.mxu0 0.0
          %442 = vmatpush1.msra.mxu0 0.0
          %443 = vmatprep.mubr.f32.mxu0 0.0
          %444 = vmatmul.mubr.f32.gmra.mrb[0].mxu0 %v279
          %v445 = vpop.f32.mrb[0].mxu0
          %v446 = vadd.f32 0.0, %v445
          %v447 = vpop.f32.mrb[0].mxu0
          %v448 = vadd.f32 0.0, %v447
          %449 = vmatprep.mubr.f32.mxu0 0.0
          %450 = vmatmul.mubr.f32.gmra.mrb[0].mxu0 %v282
          %v451 = vpop.f32.mrb[0].mxu0
          %v452 = vadd.f32 0.0, %v451
          %v453 = vpop.f32.mrb[0].mxu0
          %v454 = vadd.f32 0.0, %v453
          %455 = vmatprep.mubr.f32.mxu0 0.0
          %456 = vmatmul.mubr.f32.gmra.mrb[0].mxu0 %v285
          %v457 = vpop.f32.mrb[0].mxu0
          %v458 = vadd.f32 0.0, %v457
          %v459 = vpop.f32.mrb[0].mxu0
          %v460 = vadd.f32 0.0, %v459
          %461 = vmatprep.mubr.f32.mxu0 0.0
          %462 = vmatmul.mubr.f32.gmra.mrb[0].mxu0 %v288
          %v463 = vpop.f32.mrb[0].mxu0
          %v464 = vadd.f32 0.0, %v463
          %v465 = vpop.f32.mrb[0].mxu0
          %v466 = vadd.f32 0.0, %v465
          %467 = vmatprep.mubr.f32.mxu0 0.0
          %468 = vmatmul.mubr.f32.gmra.mrb[0].mxu0 %v291
          %v469 = vpop.f32.mrb[0].mxu0
          %v470 = vadd.f32 0.0, %v469
          %v471 = vpop.f32.mrb[0].mxu0
          %v472 = vadd.f32 0.0, %v471
          %473 = vmatprep.mubr.f32.mxu0 0.0
          %474 = vmatmul.mubr.f32.gmra.mrb[0].mxu0 %v294
          %v475 = vpop.f32.mrb[0].mxu0
          %v476 = vadd.f32 0.0, %v475
          %v477 = vpop.f32.mrb[0].mxu0
          %v478 = vadd.f32 0.0, %v477
          %479 = vmatprep.mubr.f32.mxu0 0.0
          %480 = vmatmul.mubr.f32.gmra.mrb[0].mxu0 %v297
          %v481 = vpop.f32.mrb[0].mxu0
          %v482 = vadd.f32 0.0, %v481
          %v483 = vpop.f32.mrb[0].mxu0
          %v484 = vadd.f32 0.0, %v483
          %485 = vmatprep.mubr.f32.mxu0 0.0
          %486 = vmatmul.mubr.f32.gmra.mrb[0].mxu0 %v300
          %v487 = vpop.f32.mrb[0].mxu0
          %v488 = vadd.f32 0.0, %v487
          %v489 = vpop.f32.mrb[0].mxu0
          %v490 = vadd.f32 0.0, %v489
          %491 = vmatprep.mubr.f32.mxu0 0.0
          %492 = vmatmul.mubr.f32.gmra.mrb[0].mxu0 %v303
          %v493 = vpop.f32.mrb[0].mxu0
          %v494 = vadd.f32 0.0, %v493
          %v495 = vpop.f32.mrb[0].mxu0
          %v496 = vadd.f32 0.0, %v495
          %497 = vmatprep.mubr.f32.mxu0 0.0
          %498 = vmatmul.mubr.f32.gmra.mrb[0].mxu0 %v306
          %v499 = vpop.f32.mrb[0].mxu0
          %v500 = vadd.f32 0.0, %v499
          %v501 = vpop.f32.mrb[0].mxu0
          %v502 = vadd.f32 0.0, %v501
          %503 = vmatprep.mubr.f32.mxu0 0.0
          %504 = vmatmul.mubr.f32.gmra.mrb[0].mxu0 %v309
          %v505 = vpop.f32.mrb[0].mxu0
          %v506 = vadd.f32 0.0, %v505
          %v507 = vpop.f32.mrb[0].mxu0
          %v508 = vadd.f32 0.0, %v507
          %509 = vmatprep.mubr.f32.mxu0 0.0
          %510 = vmatmul.mubr.f32.gmra.mrb[0].mxu0 %v312
          %v511 = vpop.f32.mrb[0].mxu0
          %v512 = vadd.f32 0.0, %v511
          %v513 = vpop.f32.mrb[0].mxu0
          %v514 = vadd.f32 0.0, %v513
          %515 = vmatprep.mubr.f32.mxu0 0.0
          %516 = vmatmul.mubr.f32.gmra.mrb[0].mxu0 %v315
          %v517 = vpop.f32.mrb[0].mxu0
          %v518 = vadd.f32 0.0, %v517
          %v519 = vpop.f32.mrb[0].mxu0
          %v520 = vadd.f32 0.0, %v519
          %521 = vmatprep.mubr.f32.mxu0 0.0
          %522 = vmatmul.mubr.f32.gmra.mrb[0].mxu0 %v318
          %v523 = vpop.f32.mrb[0].mxu0
          %v524 = vadd.f32 0.0, %v523
          %v525 = vpop.f32.mrb[0].mxu0
          %v526 = vadd.f32 0.0, %v525
          %527 = vmatprep.mubr.f32.mxu0 0.0
          %528 = vmatmul.mubr.f32.gmra.mrb[0].mxu0 %v321
          %v529 = vpop.f32.mrb[0].mxu0
          %v530 = vadd.f32 0.0, %v529
          %v531 = vpop.f32.mrb[0].mxu0
          %v532 = vadd.f32 0.0, %v531
          %533 = vmatprep.mubr.f32.mxu0 0.0
          %534 = vmatmul.mubr.f32.gmra.mrb[0].mxu0 %v324
          %v535 = vpop.f32.mrb[0].mxu0
          %v536 = vadd.f32 0.0, %v535
          %v537 = vpop.f32.mrb[0].mxu0
          %v538 = vadd.f32 0.0, %v537
          %539 = vmatprep.mubr.f32.mxu0 0.0
          %540 = vmatmul.mubr.f32.gmra.mrb[0].mxu0 %v327
          %v541 = vpop.f32.mrb[0].mxu0
          %v542 = vadd.f32 0.0, %v541
          %v543 = vpop.f32.mrb[0].mxu0
          %v544 = vadd.f32 0.0, %v543
          %545 = vmatprep.mubr.f32.mxu0 0.0
          %546 = vmatmul.mubr.f32.gmra.mrb[0].mxu0 %v330
          %v547 = vpop.f32.mrb[0].mxu0
          %v548 = vadd.f32 0.0, %v547
          %v549 = vpop.f32.mrb[0].mxu0
          %v550 = vadd.f32 0.0, %v549
          %551 = vmatprep.mubr.f32.mxu0 0.0
          %552 = vmatmul.mubr.f32.gmra.mrb[0].mxu0 %v333
          %v553 = vpop.f32.mrb[0].mxu0
          %v554 = vadd.f32 0.0, %v553
          %v555 = vpop.f32.mrb[0].mxu0
          %v556 = vadd.f32 0.0, %v555
          %557 = vmatprep.mubr.f32.mxu0 0.0
          %558 = vmatmul.mubr.f32.gmra.mrb[0].mxu0 %v336
          %v559 = vpop.f32.mrb[0].mxu0
          %v560 = vadd.f32 0.0, %v559
          %v561 = vpop.f32.mrb[0].mxu0
          %v562 = vadd.f32 0.0, %v561
          %563 = vmatprep.mubr.f32.mxu0 0.0
          %564 = vmatmul.mubr.f32.gmra.mrb[0].mxu0 %v339
          %v565 = vpop.f32.mrb[0].mxu0
          %v566 = vadd.f32 0.0, %v565
          %v567 = vpop.f32.mrb[0].mxu0
          %v568 = vadd.f32 0.0, %v567
          %569 = vmatprep.mubr.f32.mxu0 0.0
          %570 = vmatmul.mubr.f32.gmra.mrb[0].mxu0 %v342
          %v571 = vpop.f32.mrb[0].mxu0
          %v572 = vadd.f32 0.0, %v571
          %v573 = vpop.f32.mrb[0].mxu0
          %v574 = vadd.f32 0.0, %v573
          %575 = vmatprep.mubr.f32.mxu0 0.0
          %576 = vmatmul.mubr.f32.gmra.mrb[0].mxu0 %v345
          %v577 = vpop.f32.mrb[0].mxu0
          %v578 = vadd.f32 0.0, %v577
          %v579 = vpop.f32.mrb[0].mxu0
          %v580 = vadd.f32 0.0, %v579
          %581 = vmatprep.mubr.f32.mxu0 0.0
          %582 = vmatmul.mubr.f32.gmra.mrb[0].mxu0 %v348
          %v583 = vpop.f32.mrb[0].mxu0
          %v584 = vadd.f32 0.0, %v583
          %v585 = vpop.f32.mrb[0].mxu0
          %v586 = vadd.f32 0.0, %v585
          %587 = vmatprep.mubr.f32.mxu0 0.0
          %588 = vmatmul.mubr.f32.gmra.mrb[0].mxu0 %v351
          %v589 = vpop.f32.mrb[0].mxu0
          %v590 = vadd.f32 0.0, %v589
          %v591 = vpop.f32.mrb[0].mxu0
          %v592 = vadd.f32 0.0, %v591
          %593 = vmatprep.mubr.f32.mxu0 0.0
          %594 = vmatmul.mubr.f32.gmra.mrb[0].mxu0 %v354
          %v595 = vpop.f32.mrb[0].mxu0
          %v596 = vadd.f32 0.0, %v595
          %v597 = vpop.f32.mrb[0].mxu0
          %v598 = vadd.f32 0.0, %v597
          %599 = vmatprep.mubr.f32.mxu0 0.0
          %600 = vmatmul.mubr.f32.gmra.mrb[0].mxu0 %v357
          %v601 = vpop.f32.mrb[0].mxu0
          %v602 = vadd.f32 0.0, %v601
          %v603 = vpop.f32.mrb[0].mxu0
          %v604 = vadd.f32 0.0, %v603
          %605 = vmatprep.mubr.f32.mxu0 0.0
          %606 = vmatmul.mubr.f32.gmra.mrb[0].mxu0 %v360
          %v607 = vpop.f32.mrb[0].mxu0
          %v608 = vadd.f32 0.0, %v607
          %v609 = vpop.f32.mrb[0].mxu0
          %v610 = vadd.f32 0.0, %v609
          %611 = vmatprep.mubr.f32.mxu0 0.0
          %612 = vmatmul.mubr.f32.gmra.mrb[0].mxu0 %v363
          %v613 = vpop.f32.mrb[0].mxu0
          %v614 = vadd.f32 0.0, %v613
          %v615 = vpop.f32.mrb[0].mxu0
          %v616 = vadd.f32 0.0, %v615
          %617 = vmatprep.mubr.f32.mxu0 0.0
          %618 = vmatmul.mubr.f32.gmra.mrb[0].mxu0 %v366
          %v619 = vpop.f32.mrb[0].mxu0
          %v620 = vadd.f32 0.0, %v619
          %v621 = vpop.f32.mrb[0].mxu0
          %v622 = vadd.f32 0.0, %v621
          %623 = vmatprep.mubr.f32.mxu0 0.0
          %624 = vmatmul.mubr.f32.gmra.mrb[0].mxu0 %v369
          %v625 = vpop.f32.mrb[0].mxu0
          %v626 = vadd.f32 0.0, %v625
          %v627 = vpop.f32.mrb[0].mxu0
          %v628 = vadd.f32 0.0, %v627
          %629 = vmatprep.mubr.f32.mxu0 0.0
          %630 = vmatmul.mubr.f32.gmra.mrb[0].mxu0 %v372
          %v631 = vpop.f32.mrb[0].mxu0
          %v632 = vadd.f32 0.0, %v631
          %v633 = vpop.f32.mrb[0].mxu0
          %v634 = vadd.f32 0.0, %v633
          %635 = vdwg.mxu0
          %636 = vst [vmem:[#allocation2] sm:$0xff] %v446
          %637 = vst [vmem:[#allocation2 + $0x8] sm:$0xff] %v448
          %638 = vst [vmem:[#allocation2 + $0x10] sm:$0xff] %v452
          %639 = vst [vmem:[#allocation2 + $0x18] sm:$0xff] %v454
          %640 = vst [vmem:[#allocation2 + $0x20] sm:$0xff] %v458
          %641 = vst [vmem:[#allocation2 + $0x28] sm:$0xff] %v460
          %642 = vst [vmem:[#allocation2 + $0x30] sm:$0xff] %v464
          %643 = vst [vmem:[#allocation2 + $0x38] sm:$0xff] %v466
          %644 = vst [vmem:[#allocation2 + $0x40] sm:$0xff] %v470
          %645 = vst [vmem:[#allocation2 + $0x48] sm:$0xff] %v472
          %646 = vst [vmem:[#allocation2 + $0x50] sm:$0xff] %v476
          %647 = vst [vmem:[#allocation2 + $0x58] sm:$0xff] %v478
          %648 = vst [vmem:[#allocation2 + $0x60] sm:$0xff] %v482
          %649 = vst [vmem:[#allocation2 + $0x68] sm:$0xff] %v484
          %650 = vst [vmem:[#allocation2 + $0x70] sm:$0xff] %v488
          %651 = vst [vmem:[#allocation2 + $0x78] sm:$0xff] %v490
          %652 = vst [vmem:[#allocation2 + $0x80] sm:$0xff] %v494
          %653 = vst [vmem:[#allocation2 + $0x88] sm:$0xff] %v496
          %654 = vst [vmem:[#allocation2 + $0x90] sm:$0xff] %v500
          %655 = vst [vmem:[#allocation2 + $0x98] sm:$0xff] %v502
          %656 = vst [vmem:[#allocation2 + $0xa0] sm:$0xff] %v506
          %657 = vst [vmem:[#allocation2 + $0xa8] sm:$0xff] %v508
          %658 = vst [vmem:[#allocation2 + $0xb0] sm:$0xff] %v512
          %659 = vst [vmem:[#allocation2 + $0xb8] sm:$0xff] %v514
          %660 = vst [vmem:[#allocation2 + $0xc0] sm:$0xff] %v518
          %661 = vst [vmem:[#allocation2 + $0xc8] sm:$0xff] %v520
          %662 = vst [vmem:[#allocation2 + $0xd0] sm:$0xff] %v524
          %663 = vst [vmem:[#allocation2 + $0xd8] sm:$0xff] %v526
          %664 = vst [vmem:[#allocation2 + $0xe0] sm:$0xff] %v530
          %665 = vst [vmem:[#allocation2 + $0xe8] sm:$0xff] %v532
          %666 = vst [vmem:[#allocation2 + $0xf0] sm:$0xff] %v536
          %667 = vst [vmem:[#allocation2 + $0xf8] sm:$0xff] %v538
          %668 = vst [vmem:[#allocation2 + $0x100] sm:$0xff] %v542
          %669 = vst [vmem:[#allocation2 + $0x108] sm:$0xff] %v544
          %670 = vst [vmem:[#allocation2 + $0x110] sm:$0xff] %v548
          %671 = vst [vmem:[#allocation2 + $0x118] sm:$0xff] %v550
          %672 = vst [vmem:[#allocation2 + $0x120] sm:$0xff] %v554
          %673 = vst [vmem:[#allocation2 + $0x128] sm:$0xff] %v556
          %674 = vst [vmem:[#allocation2 + $0x130] sm:$0xff] %v560
          %675 = vst [vmem:[#allocation2 + $0x138] sm:$0xff] %v562
          %676 = vst [vmem:[#allocation2 + $0x140] sm:$0xff] %v566
          %677 = vst [vmem:[#allocation2 + $0x148] sm:$0xff] %v568
          %678 = vst [vmem:[#allocation2 + $0x150] sm:$0xff] %v572
          %679 = vst [vmem:[#allocation2 + $0x158] sm:$0xff] %v574
          %680 = vst [vmem:[#allocation2 + $0x160] sm:$0xff] %v578
          %681 = vst [vmem:[#allocation2 + $0x168] sm:$0xff] %v580
          %682 = vst [vmem:[#allocation2 + $0x170] sm:$0xff] %v584
          %683 = vst [vmem:[#allocation2 + $0x178] sm:$0xff] %v586
          %684 = vst [vmem:[#allocation2 + $0x180] sm:$0xff] %v590
          %685 = vst [vmem:[#allocation2 + $0x188] sm:$0xff] %v592
          %686 = vst [vmem:[#allocation2 + $0x190] sm:$0xff] %v596
          %687 = vst [vmem:[#allocation2 + $0x198] sm:$0xff] %v598
          %688 = vst [vmem:[#allocation2 + $0x1a0] sm:$0xff] %v602
          %689 = vst [vmem:[#allocation2 + $0x1a8] sm:$0xff] %v604
          %690 = vst [vmem:[#allocation2 + $0x1b0] sm:$0xff] %v608
          %691 = vst [vmem:[#allocation2 + $0x1b8] sm:$0xff] %v610
          %692 = vst [vmem:[#allocation2 + $0x1c0] sm:$0xff] %v614
          %693 = vst [vmem:[#allocation2 + $0x1c8] sm:$0xff] %v616
          %694 = vst [vmem:[#allocation2 + $0x1d0] sm:$0xff] %v620
          %695 = vst [vmem:[#allocation2 + $0x1d8] sm:$0xff] %v622
          %696 = vst [vmem:[#allocation2 + $0x1e0] sm:$0xff] %v626
          %697 = vst [vmem:[#allocation2 + $0x1e8] sm:$0xff] %v628
          %698 = vst [vmem:[#allocation2 + $0x1f0] sm:$0xff] %v632
          %699 = vst [vmem:[#allocation2 + $0x1f8] sm:$0xff] %v634
        $region44: #{tpu_custom_call.1} parent=39 // pred_fallthru
          _
        %v700 = vld [vmem:[%s236] sm:$0xff]
        %v701 = vld [vmem:[%s1] sm:$0xff]
        %v702 = vld [vmem:[%s1 + $0x8] sm:$0xff]
        %v703 = vld [vmem:[%s1 + $0x10] sm:$0xff]
        %v704 = vld [vmem:[%s1 + $0x18] sm:$0xff]
        %v705 = vld [vmem:[%s1 + $0x20] sm:$0xff]
        %v706 = vld [vmem:[%s1 + $0x28] sm:$0xff]
        %v707 = vld [vmem:[%s1 + $0x30] sm:$0xff]
        %v708 = vld [vmem:[%s1 + $0x38] sm:$0xff]
        %v709 = vld [vmem:[%s1 + $0x40] sm:$0xff]
        %v710 = vld [vmem:[%s1 + $0x48] sm:$0xff]
        %v711 = vld [vmem:[%s1 + $0x50] sm:$0xff]
        %v712 = vld [vmem:[%s1 + $0x58] sm:$0xff]
        %v713 = vld [vmem:[%s1 + $0x60] sm:$0xff]
        %v714 = vld [vmem:[%s1 + $0x68] sm:$0xff]
        %v715 = vld [vmem:[%s1 + $0x70] sm:$0xff]
        %v716 = vld [vmem:[%s1 + $0x78] sm:$0xff]
        %v718 = vcombine.high %v700, %v700
        %vm719 = vcmask 31744
        %v721 = vsel %vm719, %v701, 0
        %v724 = vsel %vm719, %v702, 0
        %v727 = vsel %vm719, %v703, 0
        %v730 = vsel %vm719, %v704, 0
        %v733 = vsel %vm719, %v705, 0
        %v736 = vsel %vm719, %v706, 0
        %v739 = vsel %vm719, %v707, 0
        %v742 = vsel %vm719, %v708, 0
        %v745 = vsel %vm719, %v709, 0
        %v748 = vsel %vm719, %v710, 0
        %v751 = vsel %vm719, %v711, 0
        %v754 = vsel %vm719, %v712, 0
        %v757 = vsel %vm719, %v713, 0
        %v760 = vsel %vm719, %v714, 0
        %v763 = vsel %vm719, %v715, 0
        %v766 = vsel %vm719, %v716, 0
        %vm768 = vcmask 1043456
        %v769 = vsel %vm768, %v700, 0
        %v771 = vsel %vm768, %v718, 0
        %773 = vmatprep.subr.mxu0 %v771
        %774 = vmatpush1.msra.mxu0 %v769
        %775 = vmatprep.subr.mxu0 0.0
        %776 = vmatpush1.msra.mxu0 0.0
        %777 = vmatprep.subr.mxu0 0.0
        %778 = vmatpush1.msra.mxu0 0.0
        %779 = vmatprep.subr.mxu0 0.0
        %780 = vmatpush1.msra.mxu0 0.0
        %781 = vmatprep.subr.mxu0 0.0
        %782 = vmatpush1.msra.mxu0 0.0
        %783 = vmatprep.subr.mxu0 0.0
        %784 = vmatpush1.msra.mxu0 0.0
        %785 = vmatprep.subr.mxu0 0.0
        %786 = vmatpush1.msra.mxu0 0.0
        %787 = vmatprep.subr.mxu0 0.0
        %788 = vmatpush1.msra.mxu0 0.0
        %789 = vmatprep.subr.mxu0 0.0
        %790 = vmatpush1.msra.mxu0 0.0
        %791 = vmatprep.subr.mxu0 0.0
        %792 = vmatpush1.msra.mxu0 0.0
        %793 = vmatprep.subr.mxu0 0.0
        %794 = vmatpush1.msra.mxu0 0.0
        %795 = vmatprep.subr.mxu0 0.0
        %796 = vmatpush1.msra.mxu0 0.0
        %797 = vmatprep.subr.mxu0 0.0
        %798 = vmatpush1.msra.mxu0 0.0
        %799 = vmatprep.subr.mxu0 0.0
        %800 = vmatpush1.msra.mxu0 0.0
        %801 = vmatprep.subr.mxu0 0.0
        %802 = vmatpush1.msra.mxu0 0.0
        %803 = vmatprep.subr.mxu0 0.0
        %804 = vmatpush1.msra.mxu0 0.0
        %805 = vmatprep.subr.mxu0 0.0
        %806 = vmatpush1.msra.mxu0 0.0
        %807 = vmatprep.subr.mxu0 0.0
        %808 = vmatpush1.msra.mxu0 0.0
        %809 = vmatprep.subr.mxu0 0.0
        %810 = vmatpush1.msra.mxu0 0.0
        %811 = vmatprep.subr.mxu0 0.0
        %812 = vmatpush1.msra.mxu0 0.0
        %813 = vmatprep.subr.mxu0 0.0
        %814 = vmatpush1.msra.mxu0 0.0
        %815 = vmatprep.subr.mxu0 0.0
        %816 = vmatpush1.msra.mxu0 0.0
        %817 = vmatprep.subr.mxu0 0.0
        %818 = vmatpush1.msra.mxu0 0.0
        %819 = vmatprep.subr.mxu0 0.0
        %820 = vmatpush1.msra.mxu0 0.0
        %821 = vmatprep.subr.mxu0 0.0
        %822 = vmatpush1.msra.mxu0 0.0
        %823 = vmatprep.subr.mxu0 0.0
        %824 = vmatpush1.msra.mxu0 0.0
        %825 = vmatprep.subr.mxu0 0.0
        %826 = vmatpush1.msra.mxu0 0.0
        %827 = vmatprep.subr.mxu0 0.0
        %828 = vmatpush1.msra.mxu0 0.0
        %829 = vmatprep.subr.mxu0 0.0
        %830 = vmatpush1.msra.mxu0 0.0
        %831 = vmatprep.subr.mxu0 0.0
        %832 = vmatpush1.msra.mxu0 0.0
        %833 = vmatprep.subr.mxu0 0.0
        %834 = vmatpush1.msra.mxu0 0.0
        %835 = vmatprep.subr.mxu0 0.0
        %836 = vmatpush1.msra.mxu0 0.0
        %837 = vmatprep.mubr.f32.mxu0 0.0
        %838 = vmatmul.mubr.f32.gmra.mrb[0].mxu0 %v721
        %v839 = vpop.f32.mrb[0].mxu0
        %v840 = vadd.f32 0.0, %v839
        %v841 = vpop.f32.mrb[0].mxu0
        %v842 = vadd.f32 0.0, %v841
        %843 = vmatprep.mubr.f32.mxu0 0.0
        %844 = vmatmul.mubr.f32.gmra.mrb[0].mxu0 %v724
        %v845 = vpop.f32.mrb[0].mxu0
        %v846 = vadd.f32 0.0, %v845
        %v847 = vpop.f32.mrb[0].mxu0
        %v848 = vadd.f32 0.0, %v847
        %849 = vmatprep.mubr.f32.mxu0 0.0
        %850 = vmatmul.mubr.f32.gmra.mrb[0].mxu0 %v727
        %v851 = vpop.f32.mrb[0].mxu0
        %v852 = vadd.f32 0.0, %v851
        %v853 = vpop.f32.mrb[0].mxu0
        %v854 = vadd.f32 0.0, %v853
        %855 = vmatprep.mubr.f32.mxu0 0.0
        %856 = vmatmul.mubr.f32.gmra.mrb[0].mxu0 %v730
        %v857 = vpop.f32.mrb[0].mxu0
        %v858 = vadd.f32 0.0, %v857
        %v859 = vpop.f32.mrb[0].mxu0
        %v860 = vadd.f32 0.0, %v859
        %861 = vmatprep.mubr.f32.mxu0 0.0
        %862 = vmatmul.mubr.f32.gmra.mrb[0].mxu0 %v733
        %v863 = vpop.f32.mrb[0].mxu0
        %v864 = vadd.f32 0.0, %v863
        %v865 = vpop.f32.mrb[0].mxu0
        %v866 = vadd.f32 0.0, %v865
        %867 = vmatprep.mubr.f32.mxu0 0.0
        %868 = vmatmul.mubr.f32.gmra.mrb[0].mxu0 %v736
        %v869 = vpop.f32.mrb[0].mxu0
        %v870 = vadd.f32 0.0, %v869
        %v871 = vpop.f32.mrb[0].mxu0
        %v872 = vadd.f32 0.0, %v871
        %873 = vmatprep.mubr.f32.mxu0 0.0
        %874 = vmatmul.mubr.f32.gmra.mrb[0].mxu0 %v739
        %v875 = vpop.f32.mrb[0].mxu0
        %v876 = vadd.f32 0.0, %v875
        %v877 = vpop.f32.mrb[0].mxu0
        %v878 = vadd.f32 0.0, %v877
        %879 = vmatprep.mubr.f32.mxu0 0.0
        %880 = vmatmul.mubr.f32.gmra.mrb[0].mxu0 %v742
        %v881 = vpop.f32.mrb[0].mxu0
        %v882 = vadd.f32 0.0, %v881
        %v883 = vpop.f32.mrb[0].mxu0
        %v884 = vadd.f32 0.0, %v883
        %885 = vmatprep.mubr.f32.mxu0 0.0
        %886 = vmatmul.mubr.f32.gmra.mrb[0].mxu0 %v745
        %v887 = vpop.f32.mrb[0].mxu0
        %v888 = vadd.f32 0.0, %v887
        %v889 = vpop.f32.mrb[0].mxu0
        %v890 = vadd.f32 0.0, %v889
        %891 = vmatprep.mubr.f32.mxu0 0.0
        %892 = vmatmul.mubr.f32.gmra.mrb[0].mxu0 %v748
        %v893 = vpop.f32.mrb[0].mxu0
        %v894 = vadd.f32 0.0, %v893
        %v895 = vpop.f32.mrb[0].mxu0
        %v896 = vadd.f32 0.0, %v895
        %897 = vmatprep.mubr.f32.mxu0 0.0
        %898 = vmatmul.mubr.f32.gmra.mrb[0].mxu0 %v751
        %v899 = vpop.f32.mrb[0].mxu0
        %v900 = vadd.f32 0.0, %v899
        %v901 = vpop.f32.mrb[0].mxu0
        %v902 = vadd.f32 0.0, %v901
        %903 = vmatprep.mubr.f32.mxu0 0.0
        %904 = vmatmul.mubr.f32.gmra.mrb[0].mxu0 %v754
        %v905 = vpop.f32.mrb[0].mxu0
        %v906 = vadd.f32 0.0, %v905
        %v907 = vpop.f32.mrb[0].mxu0
        %v908 = vadd.f32 0.0, %v907
        %909 = vmatprep.mubr.f32.mxu0 0.0
        %910 = vmatmul.mubr.f32.gmra.mrb[0].mxu0 %v757
        %v911 = vpop.f32.mrb[0].mxu0
        %v912 = vadd.f32 0.0, %v911
        %v913 = vpop.f32.mrb[0].mxu0
        %v914 = vadd.f32 0.0, %v913
        %915 = vmatprep.mubr.f32.mxu0 0.0
        %916 = vmatmul.mubr.f32.gmra.mrb[0].mxu0 %v760
        %v917 = vpop.f32.mrb[0].mxu0
        %v918 = vadd.f32 0.0, %v917
        %v919 = vpop.f32.mrb[0].mxu0
        %v920 = vadd.f32 0.0, %v919
        %921 = vmatprep.mubr.f32.mxu0 0.0
        %922 = vmatmul.mubr.f32.gmra.mrb[0].mxu0 %v763
        %v923 = vpop.f32.mrb[0].mxu0
        %v924 = vadd.f32 0.0, %v923
        %v925 = vpop.f32.mrb[0].mxu0
        %v926 = vadd.f32 0.0, %v925
        %927 = vmatprep.mubr.f32.mxu0 0.0
        %928 = vmatmul.mubr.f32.gmra.mrb[0].mxu0 %v766
        %v929 = vpop.f32.mrb[0].mxu0
        %v930 = vadd.f32 0.0, %v929
        %v931 = vpop.f32.mrb[0].mxu0
        %v932 = vadd.f32 0.0, %v931
        %933 = vdwg.mxu0
        %v934 = vld [vmem:[#allocation2] sm:$0xff]
        %v935 = vld [vmem:[#allocation2 + $0x8] sm:$0xff]
        %v936 = vld [vmem:[#allocation2 + $0x10] sm:$0xff]
        %v937 = vld [vmem:[#allocation2 + $0x18] sm:$0xff]
        %v938 = vld [vmem:[#allocation2 + $0x20] sm:$0xff]
        %v939 = vld [vmem:[#allocation2 + $0x28] sm:$0xff]
        %v940 = vld [vmem:[#allocation2 + $0x30] sm:$0xff]
        %v941 = vld [vmem:[#allocation2 + $0x38] sm:$0xff]
        %v942 = vld [vmem:[#allocation2 + $0x40] sm:$0xff]
        %v943 = vld [vmem:[#allocation2 + $0x48] sm:$0xff]
        %v944 = vld [vmem:[#allocation2 + $0x50] sm:$0xff]
        %v945 = vld [vmem:[#allocation2 + $0x58] sm:$0xff]
        %v946 = vld [vmem:[#allocation2 + $0x60] sm:$0xff]
        %v947 = vld [vmem:[#allocation2 + $0x68] sm:$0xff]
        %v948 = vld [vmem:[#allocation2 + $0x70] sm:$0xff]
        %v949 = vld [vmem:[#allocation2 + $0x78] sm:$0xff]
        %v950 = vld [vmem:[#allocation2 + $0x80] sm:$0xff]
        %v951 = vld [vmem:[#allocation2 + $0x88] sm:$0xff]
        %v952 = vld [vmem:[#allocation2 + $0x90] sm:$0xff]
        %v953 = vld [vmem:[#allocation2 + $0x98] sm:$0xff]
        %v954 = vld [vmem:[#allocation2 + $0xa0] sm:$0xff]
        %v955 = vld [vmem:[#allocation2 + $0xa8] sm:$0xff]
        %v956 = vld [vmem:[#allocation2 + $0xb0] sm:$0xff]
        %v957 = vld [vmem:[#allocation2 + $0xb8] sm:$0xff]
        %v958 = vld [vmem:[#allocation2 + $0xc0] sm:$0xff]
        %v959 = vld [vmem:[#allocation2 + $0xc8] sm:$0xff]
        %v960 = vld [vmem:[#allocation2 + $0xd0] sm:$0xff]
        %v961 = vld [vmem:[#allocation2 + $0xd8] sm:$0xff]
        %v962 = vld [vmem:[#allocation2 + $0xe0] sm:$0xff]
        %v963 = vld [vmem:[#allocation2 + $0xe8] sm:$0xff]
        %v964 = vld [vmem:[#allocation2 + $0xf0] sm:$0xff]
        %v965 = vld [vmem:[#allocation2 + $0xf8] sm:$0xff]
        %s966 = scalar_lea.vmem [#allocation2], 256
        %v967 = vld [vmem:[%s966] sm:$0xff]
        %v968 = vld [vmem:[%s966 + $0x8] sm:$0xff]
        %v969 = vld [vmem:[%s966 + $0x10] sm:$0xff]
        %v970 = vld [vmem:[%s966 + $0x18] sm:$0xff]
        %v971 = vld [vmem:[%s966 + $0x20] sm:$0xff]
        %v972 = vld [vmem:[%s966 + $0x28] sm:$0xff]
        %v973 = vld [vmem:[%s966 + $0x30] sm:$0xff]
        %v974 = vld [vmem:[%s966 + $0x38] sm:$0xff]
        %v975 = vld [vmem:[%s966 + $0x40] sm:$0xff]
        %v976 = vld [vmem:[%s966 + $0x48] sm:$0xff]
        %v977 = vld [vmem:[%s966 + $0x50] sm:$0xff]
        %v978 = vld [vmem:[%s966 + $0x58] sm:$0xff]
        %v979 = vld [vmem:[%s966 + $0x60] sm:$0xff]
        %v980 = vld [vmem:[%s966 + $0x68] sm:$0xff]
        %v981 = vld [vmem:[%s966 + $0x70] sm:$0xff]
        %v982 = vld [vmem:[%s966 + $0x78] sm:$0xff]
        %v983 = vld [vmem:[%s966 + $0x80] sm:$0xff]
        %v984 = vld [vmem:[%s966 + $0x88] sm:$0xff]
        %v985 = vld [vmem:[%s966 + $0x90] sm:$0xff]
        %v986 = vld [vmem:[%s966 + $0x98] sm:$0xff]
        %v987 = vld [vmem:[%s966 + $0xa0] sm:$0xff]
        %v988 = vld [vmem:[%s966 + $0xa8] sm:$0xff]
        %v989 = vld [vmem:[%s966 + $0xb0] sm:$0xff]
        %v990 = vld [vmem:[%s966 + $0xb8] sm:$0xff]
        %v991 = vld [vmem:[%s966 + $0xc0] sm:$0xff]
        %v992 = vld [vmem:[%s966 + $0xc8] sm:$0xff]
        %v993 = vld [vmem:[%s966 + $0xd0] sm:$0xff]
        %v994 = vld [vmem:[%s966 + $0xd8] sm:$0xff]
        %v995 = vld [vmem:[%s966 + $0xe0] sm:$0xff]
        %v996 = vld [vmem:[%s966 + $0xe8] sm:$0xff]
        %v997 = vld [vmem:[%s966 + $0xf0] sm:$0xff]
        %v998 = vld [vmem:[%s966 + $0xf8] sm:$0xff]
        %999 = vxpose.xlu0.b32.start [1/16] %v934, 128
        %1000 = vxpose.xlu0.b32.cont [2/16] %v936, 128
        %1001 = vxpose.xlu0.b32.cont [3/16] %v938, 128
        %1002 = vxpose.xlu0.b32.cont [4/16] %v940, 128
        %1003 = vxpose.xlu0.b32.cont [5/16] 0.0, 128
        %1004 = vxpose.xlu0.b32.cont [6/16] 0.0, 128
        %1005 = vxpose.xlu0.b32.cont [7/16] 0.0, 128
        %1006 = vxpose.xlu0.b32.cont [8/16] 0.0, 128
        %1007 = vxpose.xlu0.b32.cont [9/16] 0.0, 128
        %1008 = vxpose.xlu0.b32.cont [10/16] 0.0, 128
        %1009 = vxpose.xlu0.b32.cont [11/16] 0.0, 128
        %1010 = vxpose.xlu0.b32.cont [12/16] 0.0, 128
        %1011 = vxpose.xlu0.b32.cont [13/16] 0.0, 128
        %1012 = vxpose.xlu0.b32.cont [14/16] 0.0, 128
        %1013 = vxpose.xlu0.b32.cont [15/16] 0.0, 128
        %1014 = vxpose.xlu0.b32.end [16/16] 0.0, 128
        %v1015 = vpop.trf.xlu0
        %v1016 = vpop.trf.xlu0
        %v1017 = vpop.trf.xlu0
        %v1018 = vpop.trf.xlu0
        %v1019 = vpop.trf.xlu0
        %v1020 = vpop.trf.xlu0
        %v1021 = vpop.trf.xlu0
        %v1022 = vpop.trf.xlu0
        %v1023 = vpop.trf.xlu0
        %v1024 = vpop.trf.xlu0
        %v1025 = vpop.trf.xlu0
        %v1026 = vpop.trf.xlu0
        %v1027 = vpop.trf.xlu0
        %v1028 = vpop.trf.xlu0
        %v1029 = vpop.trf.xlu0
        %v1030 = vpop.trf.xlu0
        %1031 = vxpose.xlu0.b32.start [1/16] %v935, 128
        %1032 = vxpose.xlu0.b32.cont [2/16] %v937, 128
        %1033 = vxpose.xlu0.b32.cont [3/16] %v939, 128
        %1034 = vxpose.xlu0.b32.cont [4/16] %v941, 128
        %1035 = vxpose.xlu0.b32.cont [5/16] 0.0, 128
        %1036 = vxpose.xlu0.b32.cont [6/16] 0.0, 128
        %1037 = vxpose.xlu0.b32.cont [7/16] 0.0, 128
        %1038 = vxpose.xlu0.b32.cont [8/16] 0.0, 128
        %1039 = vxpose.xlu0.b32.cont [9/16] 0.0, 128
        %1040 = vxpose.xlu0.b32.cont [10/16] 0.0, 128
        %1041 = vxpose.xlu0.b32.cont [11/16] 0.0, 128
        %1042 = vxpose.xlu0.b32.cont [12/16] 0.0, 128
        %1043 = vxpose.xlu0.b32.cont [13/16] 0.0, 128
        %1044 = vxpose.xlu0.b32.cont [14/16] 0.0, 128
        %1045 = vxpose.xlu0.b32.cont [15/16] 0.0, 128
        %1046 = vxpose.xlu0.b32.end [16/16] 0.0, 128
        %v1047 = vpop.trf.xlu0
        %v1048 = vpop.trf.xlu0
        %v1049 = vpop.trf.xlu0
        %v1050 = vpop.trf.xlu0
        %v1051 = vpop.trf.xlu0
        %v1052 = vpop.trf.xlu0
        %v1053 = vpop.trf.xlu0
        %v1054 = vpop.trf.xlu0
        %v1055 = vpop.trf.xlu0
        %v1056 = vpop.trf.xlu0
        %v1057 = vpop.trf.xlu0
        %v1058 = vpop.trf.xlu0
        %v1059 = vpop.trf.xlu0
        %v1060 = vpop.trf.xlu0
        %v1061 = vpop.trf.xlu0
        %v1062 = vpop.trf.xlu0
        %vm1063 = vcmask 261120
        %v1065 = vsel %vm1063, %v1015, 0
        %v1068 = vsel %vm1063, %v1016, 0
        %v1071 = vsel %vm1063, %v1017, 0
        %v1074 = vsel %vm1063, %v1018, 0
        %v1077 = vsel %vm1063, %v1019, 0
        %v1080 = vsel %vm1063, %v1020, 0
        %v1083 = vsel %vm1063, %v1021, 0
        %v1086 = vsel %vm1063, %v1022, 0
        %v1089 = vsel %vm1063, %v1023, 0
        %v1092 = vsel %vm1063, %v1024, 0
        %v1095 = vsel %vm1063, %v1025, 0
        %v1098 = vsel %vm1063, %v1026, 0
        %v1101 = vsel %vm1063, %v1027, 0
        %v1104 = vsel %vm1063, %v1028, 0
        %v1107 = vsel %vm1063, %v1029, 0
        %v1110 = vsel %vm1063, %v1030, 0
        %v1113 = vsel %vm1063, %v1047, 0
        %v1116 = vsel %vm1063, %v1048, 0
        %v1119 = vsel %vm1063, %v1049, 0
        %v1122 = vsel %vm1063, %v1050, 0
        %v1125 = vsel %vm1063, %v1051, 0
        %v1128 = vsel %vm1063, %v1052, 0
        %v1131 = vsel %vm1063, %v1053, 0
        %v1134 = vsel %vm1063, %v1054, 0
        %v1137 = vsel %vm1063, %v1055, 0
        %v1140 = vsel %vm1063, %v1056, 0
        %v1143 = vsel %vm1063, %v1057, 0
        %v1146 = vsel %vm1063, %v1058, 0
        %v1149 = vsel %vm1063, %v1059, 0
        %v1152 = vsel %vm1063, %v1060, 0
        %v1155 = vsel %vm1063, %v1061, 0
        %v1158 = vsel %vm1063, %v1062, 0
        %1160 = vmatprep.subr.mxu0 %v842
        %1161 = vmatpush1.msra.mxu0 %v840
        %1162 = vmatprep.subr.mxu0 %v848
        %1163 = vmatpush1.msra.mxu0 %v846
        %1164 = vmatprep.subr.mxu0 %v854
        %1165 = vmatpush1.msra.mxu0 %v852
        %1166 = vmatprep.subr.mxu0 %v860
        %1167 = vmatpush1.msra.mxu0 %v858
        %1168 = vmatprep.subr.mxu0 0.0
        %1169 = vmatpush1.msra.mxu0 0.0
        %1170 = vmatprep.subr.mxu0 0.0
        %1171 = vmatpush1.msra.mxu0 0.0
        %1172 = vmatprep.subr.mxu0 0.0
        %1173 = vmatpush1.msra.mxu0 0.0
        %1174 = vmatprep.subr.mxu0 0.0
        %1175 = vmatpush1.msra.mxu0 0.0
        %1176 = vmatprep.subr.mxu0 0.0
        %1177 = vmatpush1.msra.mxu0 0.0
        %1178 = vmatprep.subr.mxu0 0.0
        %1179 = vmatpush1.msra.mxu0 0.0
        %1180 = vmatprep.subr.mxu0 0.0
        %1181 = vmatpush1.msra.mxu0 0.0
        %1182 = vmatprep.subr.mxu0 0.0
        %1183 = vmatpush1.msra.mxu0 0.0
        %1184 = vmatprep.subr.mxu0 0.0
        %1185 = vmatpush1.msra.mxu0 0.0
        %1186 = vmatprep.subr.mxu0 0.0
        %1187 = vmatpush1.msra.mxu0 0.0
        %1188 = vmatprep.subr.mxu0 0.0
        %1189 = vmatpush1.msra.mxu0 0.0
        %1190 = vmatprep.subr.mxu0 0.0
        %1191 = vmatpush1.msra.mxu0 0.0
        %1192 = vmatprep.subr.mxu0 0.0
        %1193 = vmatpush1.msra.mxu0 0.0
        %1194 = vmatprep.subr.mxu0 0.0
        %1195 = vmatpush1.msra.mxu0 0.0
        %1196 = vmatprep.subr.mxu0 0.0
        %1197 = vmatpush1.msra.mxu0 0.0
        %1198 = vmatprep.subr.mxu0 0.0
        %1199 = vmatpush1.msra.mxu0 0.0
        %1200 = vmatprep.subr.mxu0 0.0
        %1201 = vmatpush1.msra.mxu0 0.0
        %1202 = vmatprep.subr.mxu0 0.0
        %1203 = vmatpush1.msra.mxu0 0.0
        %1204 = vmatprep.subr.mxu0 0.0
        %1205 = vmatpush1.msra.mxu0 0.0
        %1206 = vmatprep.subr.mxu0 0.0
        %1207 = vmatpush1.msra.mxu0 0.0
        %1208 = vmatprep.subr.mxu0 0.0
        %1209 = vmatpush1.msra.mxu0 0.0
        %1210 = vmatprep.subr.mxu0 0.0
        %1211 = vmatpush1.msra.mxu0 0.0
        %1212 = vmatprep.subr.mxu0 0.0
        %1213 = vmatpush1.msra.mxu0 0.0
        %1214 = vmatprep.subr.mxu0 0.0
        %1215 = vmatpush1.msra.mxu0 0.0
        %1216 = vmatprep.subr.mxu0 0.0
        %1217 = vmatpush1.msra.mxu0 0.0
        %1218 = vmatprep.subr.mxu0 0.0
        %1219 = vmatpush1.msra.mxu0 0.0
        %1220 = vmatprep.subr.mxu0 0.0
        %1221 = vmatpush1.msra.mxu0 0.0
        %1222 = vmatprep.subr.mxu0 0.0
        %1223 = vmatpush1.msra.mxu0 0.0
        %1224 = vmatprep.mubr.f32.mxu0 0.0
        %1225 = vmatmul.mubr.f32.gmra.mrb[0].mxu0 %v1065
        %v1226 = vpop.f32.mrb[0].mxu0
        %v1227 = vadd.f32 0.0, %v1226
        %v1228 = vpop.f32.mrb[0].mxu0
        %v1229 = vadd.f32 0.0, %v1228
        %1230 = vmatprep.mubr.f32.mxu0 0.0
        %1231 = vmatmul.mubr.f32.gmra.mrb[0].mxu0 %v1068
        %v1232 = vpop.f32.mrb[0].mxu0
        %v1233 = vadd.f32 0.0, %v1232
        %v1234 = vpop.f32.mrb[0].mxu0
        %v1235 = vadd.f32 0.0, %v1234
        %1236 = vmatprep.mubr.f32.mxu0 0.0
        %1237 = vmatmul.mubr.f32.gmra.mrb[0].mxu0 %v1071
        %v1238 = vpop.f32.mrb[0].mxu0
        %v1239 = vadd.f32 0.0, %v1238
        %v1240 = vpop.f32.mrb[0].mxu0
        %v1241 = vadd.f32 0.0, %v1240
        %1242 = vmatprep.mubr.f32.mxu0 0.0
        %1243 = vmatmul.mubr.f32.gmra.mrb[0].mxu0 %v1074
        %v1244 = vpop.f32.mrb[0].mxu0
        %v1245 = vadd.f32 0.0, %v1244
        %v1246 = vpop.f32.mrb[0].mxu0
        %v1247 = vadd.f32 0.0, %v1246
        %1248 = vmatprep.mubr.f32.mxu0 0.0
        %1249 = vmatmul.mubr.f32.gmra.mrb[0].mxu0 %v1077
        %v1250 = vpop.f32.mrb[0].mxu0
        %v1251 = vadd.f32 0.0, %v1250
        %v1252 = vpop.f32.mrb[0].mxu0
        %v1253 = vadd.f32 0.0, %v1252
        %1254 = vmatprep.mubr.f32.mxu0 0.0
        %1255 = vmatmul.mubr.f32.gmra.mrb[0].mxu0 %v1080
        %v1256 = vpop.f32.mrb[0].mxu0
        %v1257 = vadd.f32 0.0, %v1256
        %v1258 = vpop.f32.mrb[0].mxu0
        %v1259 = vadd.f32 0.0, %v1258
        %1260 = vmatprep.mubr.f32.mxu0 0.0
        %1261 = vmatmul.mubr.f32.gmra.mrb[0].mxu0 %v1083
        %v1262 = vpop.f32.mrb[0].mxu0
        %v1263 = vadd.f32 0.0, %v1262
        %v1264 = vpop.f32.mrb[0].mxu0
        %v1265 = vadd.f32 0.0, %v1264
        %1266 = vmatprep.mubr.f32.mxu0 0.0
        %1267 = vmatmul.mubr.f32.gmra.mrb[0].mxu0 %v1086
        %v1268 = vpop.f32.mrb[0].mxu0
        %v1269 = vadd.f32 0.0, %v1268
        %v1270 = vpop.f32.mrb[0].mxu0
        %v1271 = vadd.f32 0.0, %v1270
        %1272 = vmatprep.mubr.f32.mxu0 0.0
        %1273 = vmatmul.mubr.f32.gmra.mrb[0].mxu0 %v1089
        %v1274 = vpop.f32.mrb[0].mxu0
        %v1275 = vadd.f32 0.0, %v1274
        %v1276 = vpop.f32.mrb[0].mxu0
        %v1277 = vadd.f32 0.0, %v1276
        %1278 = vmatprep.mubr.f32.mxu0 0.0
        %1279 = vmatmul.mubr.f32.gmra.mrb[0].mxu0 %v1092
        %v1280 = vpop.f32.mrb[0].mxu0
        %v1281 = vadd.f32 0.0, %v1280
        %v1282 = vpop.f32.mrb[0].mxu0
        %v1283 = vadd.f32 0.0, %v1282
        %1284 = vmatprep.mubr.f32.mxu0 0.0
        %1285 = vmatmul.mubr.f32.gmra.mrb[0].mxu0 %v1095
        %v1286 = vpop.f32.mrb[0].mxu0
        %v1287 = vadd.f32 0.0, %v1286
        %v1288 = vpop.f32.mrb[0].mxu0
        %v1289 = vadd.f32 0.0, %v1288
        %1290 = vmatprep.mubr.f32.mxu0 0.0
        %1291 = vmatmul.mubr.f32.gmra.mrb[0].mxu0 %v1098
        %v1292 = vpop.f32.mrb[0].mxu0
        %v1293 = vadd.f32 0.0, %v1292
        %v1294 = vpop.f32.mrb[0].mxu0
        %v1295 = vadd.f32 0.0, %v1294
        %1296 = vmatprep.mubr.f32.mxu0 0.0
        %1297 = vmatmul.mubr.f32.gmra.mrb[0].mxu0 %v1101
        %v1298 = vpop.f32.mrb[0].mxu0
        %v1299 = vadd.f32 0.0, %v1298
        %v1300 = vpop.f32.mrb[0].mxu0
        %v1301 = vadd.f32 0.0, %v1300
        %1302 = vmatprep.mubr.f32.mxu0 0.0
        %1303 = vmatmul.mubr.f32.gmra.mrb[0].mxu0 %v1104
        %v1304 = vpop.f32.mrb[0].mxu0
        %v1305 = vadd.f32 0.0, %v1304
        %v1306 = vpop.f32.mrb[0].mxu0
        %v1307 = vadd.f32 0.0, %v1306
        %1308 = vmatprep.mubr.f32.mxu0 0.0
        %1309 = vmatmul.mubr.f32.gmra.mrb[0].mxu0 %v1107
        %v1310 = vpop.f32.mrb[0].mxu0
        %v1311 = vadd.f32 0.0, %v1310
        %v1312 = vpop.f32.mrb[0].mxu0
        %v1313 = vadd.f32 0.0, %v1312
        %1314 = vmatprep.mubr.f32.mxu0 0.0
        %1315 = vmatmul.mubr.f32.gmra.mrb[0].mxu0 %v1110
        %v1316 = vpop.f32.mrb[0].mxu0
        %v1317 = vadd.f32 0.0, %v1316
        %v1318 = vpop.f32.mrb[0].mxu0
        %v1319 = vadd.f32 0.0, %v1318
        %1320 = vmatprep.mubr.f32.mxu0 0.0
        %1321 = vmatmul.mubr.f32.gmra.mrb[0].mxu0 %v1113
        %v1322 = vpop.f32.mrb[0].mxu0
        %v1323 = vadd.f32 0.0, %v1322
        %v1324 = vpop.f32.mrb[0].mxu0
        %v1325 = vadd.f32 0.0, %v1324
        %1326 = vmatprep.mubr.f32.mxu0 0.0
        %1327 = vmatmul.mubr.f32.gmra.mrb[0].mxu0 %v1116
        %v1328 = vpop.f32.mrb[0].mxu0
        %v1329 = vadd.f32 0.0, %v1328
        %v1330 = vpop.f32.mrb[0].mxu0
        %v1331 = vadd.f32 0.0, %v1330
        %1332 = vmatprep.mubr.f32.mxu0 0.0
        %1333 = vmatmul.mubr.f32.gmra.mrb[0].mxu0 %v1119
        %v1334 = vpop.f32.mrb[0].mxu0
        %v1335 = vadd.f32 0.0, %v1334
        %v1336 = vpop.f32.mrb[0].mxu0
        %v1337 = vadd.f32 0.0, %v1336
        %1338 = vmatprep.mubr.f32.mxu0 0.0
        %1339 = vmatmul.mubr.f32.gmra.mrb[0].mxu0 %v1122
        %v1340 = vpop.f32.mrb[0].mxu0
        %v1341 = vadd.f32 0.0, %v1340
        %v1342 = vpop.f32.mrb[0].mxu0
        %v1343 = vadd.f32 0.0, %v1342
        %1344 = vmatprep.mubr.f32.mxu0 0.0
        %1345 = vmatmul.mubr.f32.gmra.mrb[0].mxu0 %v1125
        %v1346 = vpop.f32.mrb[0].mxu0
        %v1347 = vadd.f32 0.0, %v1346
        %v1348 = vpop.f32.mrb[0].mxu0
        %v1349 = vadd.f32 0.0, %v1348
        %1350 = vmatprep.mubr.f32.mxu0 0.0
        %1351 = vmatmul.mubr.f32.gmra.mrb[0].mxu0 %v1128
        %v1352 = vpop.f32.mrb[0].mxu0
        %v1353 = vadd.f32 0.0, %v1352
        %v1354 = vpop.f32.mrb[0].mxu0
        %v1355 = vadd.f32 0.0, %v1354
        %1356 = vmatprep.mubr.f32.mxu0 0.0
        %1357 = vmatmul.mubr.f32.gmra.mrb[0].mxu0 %v1131
        %v1358 = vpop.f32.mrb[0].mxu0
        %v1359 = vadd.f32 0.0, %v1358
        %v1360 = vpop.f32.mrb[0].mxu0
        %v1361 = vadd.f32 0.0, %v1360
        %1362 = vmatprep.mubr.f32.mxu0 0.0
        %1363 = vmatmul.mubr.f32.gmra.mrb[0].mxu0 %v1134
        %v1364 = vpop.f32.mrb[0].mxu0
        %v1365 = vadd.f32 0.0, %v1364
        %v1366 = vpop.f32.mrb[0].mxu0
        %v1367 = vadd.f32 0.0, %v1366
        %1368 = vmatprep.mubr.f32.mxu0 0.0
        %1369 = vmatmul.mubr.f32.gmra.mrb[0].mxu0 %v1137
        %v1370 = vpop.f32.mrb[0].mxu0
        %v1371 = vadd.f32 0.0, %v1370
        %v1372 = vpop.f32.mrb[0].mxu0
        %v1373 = vadd.f32 0.0, %v1372
        %1374 = vmatprep.mubr.f32.mxu0 0.0
        %1375 = vmatmul.mubr.f32.gmra.mrb[0].mxu0 %v1140
        %v1376 = vpop.f32.mrb[0].mxu0
        %v1377 = vadd.f32 0.0, %v1376
        %v1378 = vpop.f32.mrb[0].mxu0
        %v1379 = vadd.f32 0.0, %v1378
        %1380 = vmatprep.mubr.f32.mxu0 0.0
        %1381 = vmatmul.mubr.f32.gmra.mrb[0].mxu0 %v1143
        %v1382 = vpop.f32.mrb[0].mxu0
        %v1383 = vadd.f32 0.0, %v1382
        %v1384 = vpop.f32.mrb[0].mxu0
        %v1385 = vadd.f32 0.0, %v1384
        %1386 = vmatprep.mubr.f32.mxu0 0.0
        %1387 = vmatmul.mubr.f32.gmra.mrb[0].mxu0 %v1146
        %v1388 = vpop.f32.mrb[0].mxu0
        %v1389 = vadd.f32 0.0, %v1388
        %v1390 = vpop.f32.mrb[0].mxu0
        %v1391 = vadd.f32 0.0, %v1390
        %1392 = vmatprep.mubr.f32.mxu0 0.0
        %1393 = vmatmul.mubr.f32.gmra.mrb[0].mxu0 %v1149
        %v1394 = vpop.f32.mrb[0].mxu0
        %v1395 = vadd.f32 0.0, %v1394
        %v1396 = vpop.f32.mrb[0].mxu0
        %v1397 = vadd.f32 0.0, %v1396
        %1398 = vmatprep.mubr.f32.mxu0 0.0
        %1399 = vmatmul.mubr.f32.gmra.mrb[0].mxu0 %v1152
        %v1400 = vpop.f32.mrb[0].mxu0
        %v1401 = vadd.f32 0.0, %v1400
        %v1402 = vpop.f32.mrb[0].mxu0
        %v1403 = vadd.f32 0.0, %v1402
        %1404 = vmatprep.mubr.f32.mxu0 0.0
        %1405 = vmatmul.mubr.f32.gmra.mrb[0].mxu0 %v1155
        %v1406 = vpop.f32.mrb[0].mxu0
        %v1407 = vadd.f32 0.0, %v1406
        %v1408 = vpop.f32.mrb[0].mxu0
        %v1409 = vadd.f32 0.0, %v1408
        %1410 = vmatprep.mubr.f32.mxu0 0.0
        %1411 = vmatmul.mubr.f32.gmra.mrb[0].mxu0 %v1158
        %v1412 = vpop.f32.mrb[0].mxu0
        %v1413 = vadd.f32 0.0, %v1412
        %v1414 = vpop.f32.mrb[0].mxu0
        %v1415 = vadd.f32 0.0, %v1414
        %1416 = vdwg.mxu0
        %1417 = vxpose.xlu0.b32.start [1/16] %v942, 128
        %1418 = vxpose.xlu0.b32.cont [2/16] %v944, 128
        %1419 = vxpose.xlu0.b32.cont [3/16] %v946, 128
        %1420 = vxpose.xlu0.b32.cont [4/16] %v948, 128
        %1421 = vxpose.xlu0.b32.cont [5/16] 0.0, 128
        %1422 = vxpose.xlu0.b32.cont [6/16] 0.0, 128
        %1423 = vxpose.xlu0.b32.cont [7/16] 0.0, 128
        %1424 = vxpose.xlu0.b32.cont [8/16] 0.0, 128
        %1425 = vxpose.xlu0.b32.cont [9/16] 0.0, 128
        %1426 = vxpose.xlu0.b32.cont [10/16] 0.0, 128
        %1427 = vxpose.xlu0.b32.cont [11/16] 0.0, 128
        %1428 = vxpose.xlu0.b32.cont [12/16] 0.0, 128
        %1429 = vxpose.xlu0.b32.cont [13/16] 0.0, 128
        %1430 = vxpose.xlu0.b32.cont [14/16] 0.0, 128
        %1431 = vxpose.xlu0.b32.cont [15/16] 0.0, 128
        %1432 = vxpose.xlu0.b32.end [16/16] 0.0, 128
        %v1433 = vpop.trf.xlu0
        %v1434 = vpop.trf.xlu0
        %v1435 = vpop.trf.xlu0
        %v1436 = vpop.trf.xlu0
        %v1437 = vpop.trf.xlu0
        %v1438 = vpop.trf.xlu0
        %v1439 = vpop.trf.xlu0
        %v1440 = vpop.trf.xlu0
        %v1441 = vpop.trf.xlu0
        %v1442 = vpop.trf.xlu0
        %v1443 = vpop.trf.xlu0
        %v1444 = vpop.trf.xlu0
        %v1445 = vpop.trf.xlu0
        %v1446 = vpop.trf.xlu0
        %v1447 = vpop.trf.xlu0
        %v1448 = vpop.trf.xlu0
        %1449 = vxpose.xlu0.b32.start [1/16] %v943, 128
        %1450 = vxpose.xlu0.b32.cont [2/16] %v945, 128
        %1451 = vxpose.xlu0.b32.cont [3/16] %v947, 128
        %1452 = vxpose.xlu0.b32.cont [4/16] %v949, 128
        %1453 = vxpose.xlu0.b32.cont [5/16] 0.0, 128
        %1454 = vxpose.xlu0.b32.cont [6/16] 0.0, 128
        %1455 = vxpose.xlu0.b32.cont [7/16] 0.0, 128
        %1456 = vxpose.xlu0.b32.cont [8/16] 0.0, 128
        %1457 = vxpose.xlu0.b32.cont [9/16] 0.0, 128
        %1458 = vxpose.xlu0.b32.cont [10/16] 0.0, 128
        %1459 = vxpose.xlu0.b32.cont [11/16] 0.0, 128
        %1460 = vxpose.xlu0.b32.cont [12/16] 0.0, 128
        %1461 = vxpose.xlu0.b32.cont [13/16] 0.0, 128
        %1462 = vxpose.xlu0.b32.cont [14/16] 0.0, 128
        %1463 = vxpose.xlu0.b32.cont [15/16] 0.0, 128
        %1464 = vxpose.xlu0.b32.end [16/16] 0.0, 128
        %v1465 = vpop.trf.xlu0
        %v1466 = vpop.trf.xlu0
        %v1467 = vpop.trf.xlu0
        %v1468 = vpop.trf.xlu0
        %v1469 = vpop.trf.xlu0
        %v1470 = vpop.trf.xlu0
        %v1471 = vpop.trf.xlu0
        %v1472 = vpop.trf.xlu0
        %v1473 = vpop.trf.xlu0
        %v1474 = vpop.trf.xlu0
        %v1475 = vpop.trf.xlu0
        %v1476 = vpop.trf.xlu0
        %v1477 = vpop.trf.xlu0
        %v1478 = vpop.trf.xlu0
        %v1479 = vpop.trf.xlu0
        %v1480 = vpop.trf.xlu0
        %v1482 = vsel %vm1063, %v1433, 0
        %v1485 = vsel %vm1063, %v1434, 0
        %v1488 = vsel %vm1063, %v1435, 0
        %v1491 = vsel %vm1063, %v1436, 0
        %v1494 = vsel %vm1063, %v1437, 0
        %v1497 = vsel %vm1063, %v1438, 0
        %v1500 = vsel %vm1063, %v1439, 0
        %v1503 = vsel %vm1063, %v1440, 0
        %v1506 = vsel %vm1063, %v1441, 0
        %v1509 = vsel %vm1063, %v1442, 0
        %v1512 = vsel %vm1063, %v1443, 0
        %v1515 = vsel %vm1063, %v1444, 0
        %v1518 = vsel %vm1063, %v1445, 0
        %v1521 = vsel %vm1063, %v1446, 0
        %v1524 = vsel %vm1063, %v1447, 0
        %v1527 = vsel %vm1063, %v1448, 0
        %v1530 = vsel %vm1063, %v1465, 0
        %v1533 = vsel %vm1063, %v1466, 0
        %v1536 = vsel %vm1063, %v1467, 0
        %v1539 = vsel %vm1063, %v1468, 0
        %v1542 = vsel %vm1063, %v1469, 0
        %v1545 = vsel %vm1063, %v1470, 0
        %v1548 = vsel %vm1063, %v1471, 0
        %v1551 = vsel %vm1063, %v1472, 0
        %v1554 = vsel %vm1063, %v1473, 0
        %v1557 = vsel %vm1063, %v1474, 0
        %v1560 = vsel %vm1063, %v1475, 0
        %v1563 = vsel %vm1063, %v1476, 0
        %v1566 = vsel %vm1063, %v1477, 0
        %v1569 = vsel %vm1063, %v1478, 0
        %v1572 = vsel %vm1063, %v1479, 0
        %v1575 = vsel %vm1063, %v1480, 0
        %1577 = vmatprep.subr.mxu0 %v866
        %1578 = vmatpush1.msra.mxu0 %v864
        %1579 = vmatprep.subr.mxu0 %v872
        %1580 = vmatpush1.msra.mxu0 %v870
        %1581 = vmatprep.subr.mxu0 %v878
        %1582 = vmatpush1.msra.mxu0 %v876
        %1583 = vmatprep.subr.mxu0 %v884
        %1584 = vmatpush1.msra.mxu0 %v882
        %1585 = vmatprep.subr.mxu0 0.0
        %1586 = vmatpush1.msra.mxu0 0.0
        %1587 = vmatprep.subr.mxu0 0.0
        %1588 = vmatpush1.msra.mxu0 0.0
        %1589 = vmatprep.subr.mxu0 0.0
        %1590 = vmatpush1.msra.mxu0 0.0
        %1591 = vmatprep.subr.mxu0 0.0
        %1592 = vmatpush1.msra.mxu0 0.0
        %1593 = vmatprep.subr.mxu0 0.0
        %1594 = vmatpush1.msra.mxu0 0.0
        %1595 = vmatprep.subr.mxu0 0.0
        %1596 = vmatpush1.msra.mxu0 0.0
        %1597 = vmatprep.subr.mxu0 0.0
        %1598 = vmatpush1.msra.mxu0 0.0
        %1599 = vmatprep.subr.mxu0 0.0
        %1600 = vmatpush1.msra.mxu0 0.0
        %1601 = vmatprep.subr.mxu0 0.0
        %1602 = vmatpush1.msra.mxu0 0.0
        %1603 = vmatprep.subr.mxu0 0.0
        %1604 = vmatpush1.msra.mxu0 0.0
        %1605 = vmatprep.subr.mxu0 0.0
        %1606 = vmatpush1.msra.mxu0 0.0
        %1607 = vmatprep.subr.mxu0 0.0
        %1608 = vmatpush1.msra.mxu0 0.0
        %1609 = vmatprep.subr.mxu0 0.0
        %1610 = vmatpush1.msra.mxu0 0.0
        %1611 = vmatprep.subr.mxu0 0.0
        %1612 = vmatpush1.msra.mxu0 0.0
        %1613 = vmatprep.subr.mxu0 0.0
        %1614 = vmatpush1.msra.mxu0 0.0
        %1615 = vmatprep.subr.mxu0 0.0
        %1616 = vmatpush1.msra.mxu0 0.0
        %1617 = vmatprep.subr.mxu0 0.0
        %1618 = vmatpush1.msra.mxu0 0.0
        %1619 = vmatprep.subr.mxu0 0.0
        %1620 = vmatpush1.msra.mxu0 0.0
        %1621 = vmatprep.subr.mxu0 0.0
        %1622 = vmatpush1.msra.mxu0 0.0
        %1623 = vmatprep.subr.mxu0 0.0
        %1624 = vmatpush1.msra.mxu0 0.0
        %1625 = vmatprep.subr.mxu0 0.0
        %1626 = vmatpush1.msra.mxu0 0.0
        %1627 = vmatprep.subr.mxu0 0.0
        %1628 = vmatpush1.msra.mxu0 0.0
        %1629 = vmatprep.subr.mxu0 0.0
        %1630 = vmatpush1.msra.mxu0 0.0
        %1631 = vmatprep.subr.mxu0 0.0
        %1632 = vmatpush1.msra.mxu0 0.0
        %1633 = vmatprep.subr.mxu0 0.0
        %1634 = vmatpush1.msra.mxu0 0.0
        %1635 = vmatprep.subr.mxu0 0.0
        %1636 = vmatpush1.msra.mxu0 0.0
        %1637 = vmatprep.subr.mxu0 0.0
        %1638 = vmatpush1.msra.mxu0 0.0
        %1639 = vmatprep.subr.mxu0 0.0
        %1640 = vmatpush1.msra.mxu0 0.0
        %1641 = vmatprep.mubr.f32.mxu0 0.0
        %1642 = vmatmul.mubr.f32.gmra.mrb[0].mxu0 %v1482
        %v1643 = vpop.f32.mrb[0].mxu0
        %v1644 = vadd.f32 0.0, %v1643
        %v1645 = vpop.f32.mrb[0].mxu0
        %v1646 = vadd.f32 0.0, %v1645
        %1647 = vmatprep.mubr.f32.mxu0 0.0
        %1648 = vmatmul.mubr.f32.gmra.mrb[0].mxu0 %v1485
        %v1649 = vpop.f32.mrb[0].mxu0
        %v1650 = vadd.f32 0.0, %v1649
        %v1651 = vpop.f32.mrb[0].mxu0
        %v1652 = vadd.f32 0.0, %v1651
        %1653 = vmatprep.mubr.f32.mxu0 0.0
        %1654 = vmatmul.mubr.f32.gmra.mrb[0].mxu0 %v1488
        %v1655 = vpop.f32.mrb[0].mxu0
        %v1656 = vadd.f32 0.0, %v1655
        %v1657 = vpop.f32.mrb[0].mxu0
        %v1658 = vadd.f32 0.0, %v1657
        %1659 = vmatprep.mubr.f32.mxu0 0.0
        %1660 = vmatmul.mubr.f32.gmra.mrb[0].mxu0 %v1491
        %v1661 = vpop.f32.mrb[0].mxu0
        %v1662 = vadd.f32 0.0, %v1661
        %v1663 = vpop.f32.mrb[0].mxu0
        %v1664 = vadd.f32 0.0, %v1663
        %1665 = vmatprep.mubr.f32.mxu0 0.0
        %1666 = vmatmul.mubr.f32.gmra.mrb[0].mxu0 %v1494
        %v1667 = vpop.f32.mrb[0].mxu0
        %v1668 = vadd.f32 0.0, %v1667
        %v1669 = vpop.f32.mrb[0].mxu0
        %v1670 = vadd.f32 0.0, %v1669
        %1671 = vmatprep.mubr.f32.mxu0 0.0
        %1672 = vmatmul.mubr.f32.gmra.mrb[0].mxu0 %v1497
        %v1673 = vpop.f32.mrb[0].mxu0
        %v1674 = vadd.f32 0.0, %v1673
        %v1675 = vpop.f32.mrb[0].mxu0
        %v1676 = vadd.f32 0.0, %v1675
        %1677 = vmatprep.mubr.f32.mxu0 0.0
        %1678 = vmatmul.mubr.f32.gmra.mrb[0].mxu0 %v1500
        %v1679 = vpop.f32.mrb[0].mxu0
        %v1680 = vadd.f32 0.0, %v1679
        %v1681 = vpop.f32.mrb[0].mxu0
        %v1682 = vadd.f32 0.0, %v1681
        %1683 = vmatprep.mubr.f32.mxu0 0.0
        %1684 = vmatmul.mubr.f32.gmra.mrb[0].mxu0 %v1503
        %v1685 = vpop.f32.mrb[0].mxu0
        %v1686 = vadd.f32 0.0, %v1685
        %v1687 = vpop.f32.mrb[0].mxu0
        %v1688 = vadd.f32 0.0, %v1687
        %1689 = vmatprep.mubr.f32.mxu0 0.0
        %1690 = vmatmul.mubr.f32.gmra.mrb[0].mxu0 %v1506
        %v1691 = vpop.f32.mrb[0].mxu0
        %v1692 = vadd.f32 0.0, %v1691
        %v1693 = vpop.f32.mrb[0].mxu0
        %v1694 = vadd.f32 0.0, %v1693
        %1695 = vmatprep.mubr.f32.mxu0 0.0
        %1696 = vmatmul.mubr.f32.gmra.mrb[0].mxu0 %v1509
        %v1697 = vpop.f32.mrb[0].mxu0
        %v1698 = vadd.f32 0.0, %v1697
        %v1699 = vpop.f32.mrb[0].mxu0
        %v1700 = vadd.f32 0.0, %v1699
        %1701 = vmatprep.mubr.f32.mxu0 0.0
        %1702 = vmatmul.mubr.f32.gmra.mrb[0].mxu0 %v1512
        %v1703 = vpop.f32.mrb[0].mxu0
        %v1704 = vadd.f32 0.0, %v1703
        %v1705 = vpop.f32.mrb[0].mxu0
        %v1706 = vadd.f32 0.0, %v1705
        %1707 = vmatprep.mubr.f32.mxu0 0.0
        %1708 = vmatmul.mubr.f32.gmra.mrb[0].mxu0 %v1515
        %v1709 = vpop.f32.mrb[0].mxu0
        %v1710 = vadd.f32 0.0, %v1709
        %v1711 = vpop.f32.mrb[0].mxu0
        %v1712 = vadd.f32 0.0, %v1711
        %1713 = vmatprep.mubr.f32.mxu0 0.0
        %1714 = vmatmul.mubr.f32.gmra.mrb[0].mxu0 %v1518
        %v1715 = vpop.f32.mrb[0].mxu0
        %v1716 = vadd.f32 0.0, %v1715
        %v1717 = vpop.f32.mrb[0].mxu0
        %v1718 = vadd.f32 0.0, %v1717
        %1719 = vmatprep.mubr.f32.mxu0 0.0
        %1720 = vmatmul.mubr.f32.gmra.mrb[0].mxu0 %v1521
        %v1721 = vpop.f32.mrb[0].mxu0
        %v1722 = vadd.f32 0.0, %v1721
        %v1723 = vpop.f32.mrb[0].mxu0
        %v1724 = vadd.f32 0.0, %v1723
        %1725 = vmatprep.mubr.f32.mxu0 0.0
        %1726 = vmatmul.mubr.f32.gmra.mrb[0].mxu0 %v1524
        %v1727 = vpop.f32.mrb[0].mxu0
        %v1728 = vadd.f32 0.0, %v1727
        %v1729 = vpop.f32.mrb[0].mxu0
        %v1730 = vadd.f32 0.0, %v1729
        %1731 = vmatprep.mubr.f32.mxu0 0.0
        %1732 = vmatmul.mubr.f32.gmra.mrb[0].mxu0 %v1527
        %v1733 = vpop.f32.mrb[0].mxu0
        %v1734 = vadd.f32 0.0, %v1733
        %v1735 = vpop.f32.mrb[0].mxu0
        %v1736 = vadd.f32 0.0, %v1735
        %1737 = vmatprep.mubr.f32.mxu0 0.0
        %1738 = vmatmul.mubr.f32.gmra.mrb[0].mxu0 %v1530
        %v1739 = vpop.f32.mrb[0].mxu0
        %v1740 = vadd.f32 0.0, %v1739
        %v1741 = vpop.f32.mrb[0].mxu0
        %v1742 = vadd.f32 0.0, %v1741
        %1743 = vmatprep.mubr.f32.mxu0 0.0
        %1744 = vmatmul.mubr.f32.gmra.mrb[0].mxu0 %v1533
        %v1745 = vpop.f32.mrb[0].mxu0
        %v1746 = vadd.f32 0.0, %v1745
        %v1747 = vpop.f32.mrb[0].mxu0
        %v1748 = vadd.f32 0.0, %v1747
        %1749 = vmatprep.mubr.f32.mxu0 0.0
        %1750 = vmatmul.mubr.f32.gmra.mrb[0].mxu0 %v1536
        %v1751 = vpop.f32.mrb[0].mxu0
        %v1752 = vadd.f32 0.0, %v1751
        %v1753 = vpop.f32.mrb[0].mxu0
        %v1754 = vadd.f32 0.0, %v1753
        %1755 = vmatprep.mubr.f32.mxu0 0.0
        %1756 = vmatmul.mubr.f32.gmra.mrb[0].mxu0 %v1539
        %v1757 = vpop.f32.mrb[0].mxu0
        %v1758 = vadd.f32 0.0, %v1757
        %v1759 = vpop.f32.mrb[0].mxu0
        %v1760 = vadd.f32 0.0, %v1759
        %1761 = vmatprep.mubr.f32.mxu0 0.0
        %1762 = vmatmul.mubr.f32.gmra.mrb[0].mxu0 %v1542
        %v1763 = vpop.f32.mrb[0].mxu0
        %v1764 = vadd.f32 0.0, %v1763
        %v1765 = vpop.f32.mrb[0].mxu0
        %v1766 = vadd.f32 0.0, %v1765
        %1767 = vmatprep.mubr.f32.mxu0 0.0
        %1768 = vmatmul.mubr.f32.gmra.mrb[0].mxu0 %v1545
        %v1769 = vpop.f32.mrb[0].mxu0
        %v1770 = vadd.f32 0.0, %v1769
        %v1771 = vpop.f32.mrb[0].mxu0
        %v1772 = vadd.f32 0.0, %v1771
        %1773 = vmatprep.mubr.f32.mxu0 0.0
        %1774 = vmatmul.mubr.f32.gmra.mrb[0].mxu0 %v1548
        %v1775 = vpop.f32.mrb[0].mxu0
        %v1776 = vadd.f32 0.0, %v1775
        %v1777 = vpop.f32.mrb[0].mxu0
        %v1778 = vadd.f32 0.0, %v1777
        %1779 = vmatprep.mubr.f32.mxu0 0.0
        %1780 = vmatmul.mubr.f32.gmra.mrb[0].mxu0 %v1551
        %v1781 = vpop.f32.mrb[0].mxu0
        %v1782 = vadd.f32 0.0, %v1781
        %v1783 = vpop.f32.mrb[0].mxu0
        %v1784 = vadd.f32 0.0, %v1783
        %1785 = vmatprep.mubr.f32.mxu0 0.0
        %1786 = vmatmul.mubr.f32.gmra.mrb[0].mxu0 %v1554
        %v1787 = vpop.f32.mrb[0].mxu0
        %v1788 = vadd.f32 0.0, %v1787
        %v1789 = vpop.f32.mrb[0].mxu0
        %v1790 = vadd.f32 0.0, %v1789
        %1791 = vmatprep.mubr.f32.mxu0 0.0
        %1792 = vmatmul.mubr.f32.gmra.mrb[0].mxu0 %v1557
        %v1793 = vpop.f32.mrb[0].mxu0
        %v1794 = vadd.f32 0.0, %v1793
        %v1795 = vpop.f32.mrb[0].mxu0
        %v1796 = vadd.f32 0.0, %v1795
        %1797 = vmatprep.mubr.f32.mxu0 0.0
        %1798 = vmatmul.mubr.f32.gmra.mrb[0].mxu0 %v1560
        %v1799 = vpop.f32.mrb[0].mxu0
        %v1800 = vadd.f32 0.0, %v1799
        %v1801 = vpop.f32.mrb[0].mxu0
        %v1802 = vadd.f32 0.0, %v1801
        %1803 = vmatprep.mubr.f32.mxu0 0.0
        %1804 = vmatmul.mubr.f32.gmra.mrb[0].mxu0 %v1563
        %v1805 = vpop.f32.mrb[0].mxu0
        %v1806 = vadd.f32 0.0, %v1805
        %v1807 = vpop.f32.mrb[0].mxu0
        %v1808 = vadd.f32 0.0, %v1807
        %1809 = vmatprep.mubr.f32.mxu0 0.0
        %1810 = vmatmul.mubr.f32.gmra.mrb[0].mxu0 %v1566
        %v1811 = vpop.f32.mrb[0].mxu0
        %v1812 = vadd.f32 0.0, %v1811
        %v1813 = vpop.f32.mrb[0].mxu0
        %v1814 = vadd.f32 0.0, %v1813
        %1815 = vmatprep.mubr.f32.mxu0 0.0
        %1816 = vmatmul.mubr.f32.gmra.mrb[0].mxu0 %v1569
        %v1817 = vpop.f32.mrb[0].mxu0
        %v1818 = vadd.f32 0.0, %v1817
        %v1819 = vpop.f32.mrb[0].mxu0
        %v1820 = vadd.f32 0.0, %v1819
        %1821 = vmatprep.mubr.f32.mxu0 0.0
        %1822 = vmatmul.mubr.f32.gmra.mrb[0].mxu0 %v1572
        %v1823 = vpop.f32.mrb[0].mxu0
        %v1824 = vadd.f32 0.0, %v1823
        %v1825 = vpop.f32.mrb[0].mxu0
        %v1826 = vadd.f32 0.0, %v1825
        %1827 = vmatprep.mubr.f32.mxu0 0.0
        %1828 = vmatmul.mubr.f32.gmra.mrb[0].mxu0 %v1575
        %v1829 = vpop.f32.mrb[0].mxu0
        %v1830 = vadd.f32 0.0, %v1829
        %v1831 = vpop.f32.mrb[0].mxu0
        %v1832 = vadd.f32 0.0, %v1831
        %1833 = vdwg.mxu0
        %1834 = vxpose.xlu0.b32.start [1/16] %v950, 128
        %1835 = vxpose.xlu0.b32.cont [2/16] %v952, 128
        %1836 = vxpose.xlu0.b32.cont [3/16] %v954, 128
        %1837 = vxpose.xlu0.b32.cont [4/16] %v956, 128
        %1838 = vxpose.xlu0.b32.cont [5/16] 0.0, 128
        %1839 = vxpose.xlu0.b32.cont [6/16] 0.0, 128
        %1840 = vxpose.xlu0.b32.cont [7/16] 0.0, 128
        %1841 = vxpose.xlu0.b32.cont [8/16] 0.0, 128
        %1842 = vxpose.xlu0.b32.cont [9/16] 0.0, 128
        %1843 = vxpose.xlu0.b32.cont [10/16] 0.0, 128
        %1844 = vxpose.xlu0.b32.cont [11/16] 0.0, 128
        %1845 = vxpose.xlu0.b32.cont [12/16] 0.0, 128
        %1846 = vxpose.xlu0.b32.cont [13/16] 0.0, 128
        %1847 = vxpose.xlu0.b32.cont [14/16] 0.0, 128
        %1848 = vxpose.xlu0.b32.cont [15/16] 0.0, 128
        %1849 = vxpose.xlu0.b32.end [16/16] 0.0, 128
        %v1850 = vpop.trf.xlu0
        %v1851 = vpop.trf.xlu0
        %v1852 = vpop.trf.xlu0
        %v1853 = vpop.trf.xlu0
        %v1854 = vpop.trf.xlu0
        %v1855 = vpop.trf.xlu0
        %v1856 = vpop.trf.xlu0
        %v1857 = vpop.trf.xlu0
        %v1858 = vpop.trf.xlu0
        %v1859 = vpop.trf.xlu0
        %v1860 = vpop.trf.xlu0
        %v1861 = vpop.trf.xlu0
        %v1862 = vpop.trf.xlu0
        %v1863 = vpop.trf.xlu0
        %v1864 = vpop.trf.xlu0
        %v1865 = vpop.trf.xlu0
        %1866 = vxpose.xlu0.b32.start [1/16] %v951, 128
        %1867 = vxpose.xlu0.b32.cont [2/16] %v953, 128
        %1868 = vxpose.xlu0.b32.cont [3/16] %v955, 128
        %1869 = vxpose.xlu0.b32.cont [4/16] %v957, 128
        %1870 = vxpose.xlu0.b32.cont [5/16] 0.0, 128
        %1871 = vxpose.xlu0.b32.cont [6/16] 0.0, 128
        %1872 = vxpose.xlu0.b32.cont [7/16] 0.0, 128
        %1873 = vxpose.xlu0.b32.cont [8/16] 0.0, 128
        %1874 = vxpose.xlu0.b32.cont [9/16] 0.0, 128
        %1875 = vxpose.xlu0.b32.cont [10/16] 0.0, 128
        %1876 = vxpose.xlu0.b32.cont [11/16] 0.0, 128
        %1877 = vxpose.xlu0.b32.cont [12/16] 0.0, 128
        %1878 = vxpose.xlu0.b32.cont [13/16] 0.0, 128
        %1879 = vxpose.xlu0.b32.cont [14/16] 0.0, 128
        %1880 = vxpose.xlu0.b32.cont [15/16] 0.0, 128
        %1881 = vxpose.xlu0.b32.end [16/16] 0.0, 128
        %v1882 = vpop.trf.xlu0
        %v1883 = vpop.trf.xlu0
        %v1884 = vpop.trf.xlu0
        %v1885 = vpop.trf.xlu0
        %v1886 = vpop.trf.xlu0
        %v1887 = vpop.trf.xlu0
        %v1888 = vpop.trf.xlu0
        %v1889 = vpop.trf.xlu0
        %v1890 = vpop.trf.xlu0
        %v1891 = vpop.trf.xlu0
        %v1892 = vpop.trf.xlu0
        %v1893 = vpop.trf.xlu0
        %v1894 = vpop.trf.xlu0
        %v1895 = vpop.trf.xlu0
        %v1896 = vpop.trf.xlu0
        %v1897 = vpop.trf.xlu0
        %v1899 = vsel %vm1063, %v1850, 0
        %v1902 = vsel %vm1063, %v1851, 0
        %v1905 = vsel %vm1063, %v1852, 0
        %v1908 = vsel %vm1063, %v1853, 0
        %v1911 = vsel %vm1063, %v1854, 0
        %v1914 = vsel %vm1063, %v1855, 0
        %v1917 = vsel %vm1063, %v1856, 0
        %v1920 = vsel %vm1063, %v1857, 0
        %v1923 = vsel %vm1063, %v1858, 0
        %v1926 = vsel %vm1063, %v1859, 0
        %v1929 = vsel %vm1063, %v1860, 0
        %v1932 = vsel %vm1063, %v1861, 0
        %v1935 = vsel %vm1063, %v1862, 0
        %v1938 = vsel %vm1063, %v1863, 0
        %v1941 = vsel %vm1063, %v1864, 0
        %v1944 = vsel %vm1063, %v1865, 0
        %v1947 = vsel %vm1063, %v1882, 0
        %v1950 = vsel %vm1063, %v1883, 0
        %v1953 = vsel %vm1063, %v1884, 0
        %v1956 = vsel %vm1063, %v1885, 0
        %v1959 = vsel %vm1063, %v1886, 0
        %v1962 = vsel %vm1063, %v1887, 0
        %v1965 = vsel %vm1063, %v1888, 0
        %v1968 = vsel %vm1063, %v1889, 0
        %v1971 = vsel %vm1063, %v1890, 0
        %v1974 = vsel %vm1063, %v1891, 0
        %v1977 = vsel %vm1063, %v1892, 0
        %v1980 = vsel %vm1063, %v1893, 0
        %v1983 = vsel %vm1063, %v1894, 0
        %v1986 = vsel %vm1063, %v1895, 0
        %v1989 = vsel %vm1063, %v1896, 0
        %v1992 = vsel %vm1063, %v1897, 0
        %1994 = vmatprep.subr.mxu0 %v890
        %1995 = vmatpush1.msra.mxu0 %v888
        %1996 = vmatprep.subr.mxu0 %v896
        %1997 = vmatpush1.msra.mxu0 %v894
        %1998 = vmatprep.subr.mxu0 %v902
        %1999 = vmatpush1.msra.mxu0 %v900
        %2000 = vmatprep.subr.mxu0 %v908
        %2001 = vmatpush1.msra.mxu0 %v906
        %2002 = vmatprep.subr.mxu0 0.0
        %2003 = vmatpush1.msra.mxu0 0.0
        %2004 = vmatprep.subr.mxu0 0.0
        %2005 = vmatpush1.msra.mxu0 0.0
        %2006 = vmatprep.subr.mxu0 0.0
        %2007 = vmatpush1.msra.mxu0 0.0
        %2008 = vmatprep.subr.mxu0 0.0
        %2009 = vmatpush1.msra.mxu0 0.0
        %2010 = vmatprep.subr.mxu0 0.0
        %2011 = vmatpush1.msra.mxu0 0.0
        %2012 = vmatprep.subr.mxu0 0.0
        %2013 = vmatpush1.msra.mxu0 0.0
        %2014 = vmatprep.subr.mxu0 0.0
        %2015 = vmatpush1.msra.mxu0 0.0
        %2016 = vmatprep.subr.mxu0 0.0
        %2017 = vmatpush1.msra.mxu0 0.0
        %2018 = vmatprep.subr.mxu0 0.0
        %2019 = vmatpush1.msra.mxu0 0.0
        %2020 = vmatprep.subr.mxu0 0.0
        %2021 = vmatpush1.msra.mxu0 0.0
        %2022 = vmatprep.subr.mxu0 0.0
        %2023 = vmatpush1.msra.mxu0 0.0
        %2024 = vmatprep.subr.mxu0 0.0
        %2025 = vmatpush1.msra.mxu0 0.0
        %2026 = vmatprep.subr.mxu0 0.0
        %2027 = vmatpush1.msra.mxu0 0.0
        %2028 = vmatprep.subr.mxu0 0.0
        %2029 = vmatpush1.msra.mxu0 0.0
        %2030 = vmatprep.subr.mxu0 0.0
        %2031 = vmatpush1.msra.mxu0 0.0
        %2032 = vmatprep.subr.mxu0 0.0
        %2033 = vmatpush1.msra.mxu0 0.0
        %2034 = vmatprep.subr.mxu0 0.0
        %2035 = vmatpush1.msra.mxu0 0.0
        %2036 = vmatprep.subr.mxu0 0.0
        %2037 = vmatpush1.msra.mxu0 0.0
        %2038 = vmatprep.subr.mxu0 0.0
        %2039 = vmatpush1.msra.mxu0 0.0
        %2040 = vmatprep.subr.mxu0 0.0
        %2041 = vmatpush1.msra.mxu0 0.0
        %2042 = vmatprep.subr.mxu0 0.0
        %2043 = vmatpush1.msra.mxu0 0.0
        %2044 = vmatprep.subr.mxu0 0.0
        %2045 = vmatpush1.msra.mxu0 0.0
        %2046 = vmatprep.subr.mxu0 0.0
        %2047 = vmatpush1.msra.mxu0 0.0
        %2048 = vmatprep.subr.mxu0 0.0
        %2049 = vmatpush1.msra.mxu0 0.0
        %2050 = vmatprep.subr.mxu0 0.0
        %2051 = vmatpush1.msra.mxu0 0.0
        %2052 = vmatprep.subr.mxu0 0.0
        %2053 = vmatpush1.msra.mxu0 0.0
        %2054 = vmatprep.subr.mxu0 0.0
        %2055 = vmatpush1.msra.mxu0 0.0
        %2056 = vmatprep.subr.mxu0 0.0
        %2057 = vmatpush1.msra.mxu0 0.0
        %2058 = vmatprep.mubr.f32.mxu0 0.0
        %2059 = vmatmul.mubr.f32.gmra.mrb[0].mxu0 %v1899
        %v2060 = vpop.f32.mrb[0].mxu0
        %v2061 = vadd.f32 0.0, %v2060
        %v2062 = vpop.f32.mrb[0].mxu0
        %v2063 = vadd.f32 0.0, %v2062
        %2064 = vmatprep.mubr.f32.mxu0 0.0
        %2065 = vmatmul.mubr.f32.gmra.mrb[0].mxu0 %v1902
        %v2066 = vpop.f32.mrb[0].mxu0
        %v2067 = vadd.f32 0.0, %v2066
        %v2068 = vpop.f32.mrb[0].mxu0
        %v2069 = vadd.f32 0.0, %v2068
        %2070 = vmatprep.mubr.f32.mxu0 0.0
        %2071 = vmatmul.mubr.f32.gmra.mrb[0].mxu0 %v1905
        %v2072 = vpop.f32.mrb[0].mxu0
        %v2073 = vadd.f32 0.0, %v2072
        %v2074 = vpop.f32.mrb[0].mxu0
        %v2075 = vadd.f32 0.0, %v2074
        %2076 = vmatprep.mubr.f32.mxu0 0.0
        %2077 = vmatmul.mubr.f32.gmra.mrb[0].mxu0 %v1908
        %v2078 = vpop.f32.mrb[0].mxu0
        %v2079 = vadd.f32 0.0, %v2078
        %v2080 = vpop.f32.mrb[0].mxu0
        %v2081 = vadd.f32 0.0, %v2080
        %2082 = vmatprep.mubr.f32.mxu0 0.0
        %2083 = vmatmul.mubr.f32.gmra.mrb[0].mxu0 %v1911
        %v2084 = vpop.f32.mrb[0].mxu0
        %v2085 = vadd.f32 0.0, %v2084
        %v2086 = vpop.f32.mrb[0].mxu0
        %v2087 = vadd.f32 0.0, %v2086
        %2088 = vmatprep.mubr.f32.mxu0 0.0
        %2089 = vmatmul.mubr.f32.gmra.mrb[0].mxu0 %v1914
        %v2090 = vpop.f32.mrb[0].mxu0
        %v2091 = vadd.f32 0.0, %v2090
        %v2092 = vpop.f32.mrb[0].mxu0
        %v2093 = vadd.f32 0.0, %v2092
        %2094 = vmatprep.mubr.f32.mxu0 0.0
        %2095 = vmatmul.mubr.f32.gmra.mrb[0].mxu0 %v1917
        %v2096 = vpop.f32.mrb[0].mxu0
        %v2097 = vadd.f32 0.0, %v2096
        %v2098 = vpop.f32.mrb[0].mxu0
        %v2099 = vadd.f32 0.0, %v2098
        %2100 = vmatprep.mubr.f32.mxu0 0.0
        %2101 = vmatmul.mubr.f32.gmra.mrb[0].mxu0 %v1920
        %v2102 = vpop.f32.mrb[0].mxu0
        %v2103 = vadd.f32 0.0, %v2102
        %v2104 = vpop.f32.mrb[0].mxu0
        %v2105 = vadd.f32 0.0, %v2104
        %2106 = vmatprep.mubr.f32.mxu0 0.0
        %2107 = vmatmul.mubr.f32.gmra.mrb[0].mxu0 %v1923
        %v2108 = vpop.f32.mrb[0].mxu0
        %v2109 = vadd.f32 0.0, %v2108
        %v2110 = vpop.f32.mrb[0].mxu0
        %v2111 = vadd.f32 0.0, %v2110
        %2112 = vmatprep.mubr.f32.mxu0 0.0
        %2113 = vmatmul.mubr.f32.gmra.mrb[0].mxu0 %v1926
        %v2114 = vpop.f32.mrb[0].mxu0
        %v2115 = vadd.f32 0.0, %v2114
        %v2116 = vpop.f32.mrb[0].mxu0
        %v2117 = vadd.f32 0.0, %v2116
        %2118 = vmatprep.mubr.f32.mxu0 0.0
        %2119 = vmatmul.mubr.f32.gmra.mrb[0].mxu0 %v1929
        %v2120 = vpop.f32.mrb[0].mxu0
        %v2121 = vadd.f32 0.0, %v2120
        %v2122 = vpop.f32.mrb[0].mxu0
        %v2123 = vadd.f32 0.0, %v2122
        %2124 = vmatprep.mubr.f32.mxu0 0.0
        %2125 = vmatmul.mubr.f32.gmra.mrb[0].mxu0 %v1932
        %v2126 = vpop.f32.mrb[0].mxu0
        %v2127 = vadd.f32 0.0, %v2126
        %v2128 = vpop.f32.mrb[0].mxu0
        %v2129 = vadd.f32 0.0, %v2128
        %2130 = vmatprep.mubr.f32.mxu0 0.0
        %2131 = vmatmul.mubr.f32.gmra.mrb[0].mxu0 %v1935
        %v2132 = vpop.f32.mrb[0].mxu0
        %v2133 = vadd.f32 0.0, %v2132
        %v2134 = vpop.f32.mrb[0].mxu0
        %v2135 = vadd.f32 0.0, %v2134
        %2136 = vmatprep.mubr.f32.mxu0 0.0
        %2137 = vmatmul.mubr.f32.gmra.mrb[0].mxu0 %v1938
        %v2138 = vpop.f32.mrb[0].mxu0
        %v2139 = vadd.f32 0.0, %v2138
        %v2140 = vpop.f32.mrb[0].mxu0
        %v2141 = vadd.f32 0.0, %v2140
        %2142 = vmatprep.mubr.f32.mxu0 0.0
        %2143 = vmatmul.mubr.f32.gmra.mrb[0].mxu0 %v1941
        %v2144 = vpop.f32.mrb[0].mxu0
        %v2145 = vadd.f32 0.0, %v2144
        %v2146 = vpop.f32.mrb[0].mxu0
        %v2147 = vadd.f32 0.0, %v2146
        %2148 = vmatprep.mubr.f32.mxu0 0.0
        %2149 = vmatmul.mubr.f32.gmra.mrb[0].mxu0 %v1944
        %v2150 = vpop.f32.mrb[0].mxu0
        %v2151 = vadd.f32 0.0, %v2150
        %v2152 = vpop.f32.mrb[0].mxu0
        %v2153 = vadd.f32 0.0, %v2152
        %2154 = vmatprep.mubr.f32.mxu0 0.0
        %2155 = vmatmul.mubr.f32.gmra.mrb[0].mxu0 %v1947
        %v2156 = vpop.f32.mrb[0].mxu0
        %v2157 = vadd.f32 0.0, %v2156
        %v2158 = vpop.f32.mrb[0].mxu0
        %v2159 = vadd.f32 0.0, %v2158
        %2160 = vmatprep.mubr.f32.mxu0 0.0
        %2161 = vmatmul.mubr.f32.gmra.mrb[0].mxu0 %v1950
        %v2162 = vpop.f32.mrb[0].mxu0
        %v2163 = vadd.f32 0.0, %v2162
        %v2164 = vpop.f32.mrb[0].mxu0
        %v2165 = vadd.f32 0.0, %v2164
        %2166 = vmatprep.mubr.f32.mxu0 0.0
        %2167 = vmatmul.mubr.f32.gmra.mrb[0].mxu0 %v1953
        %v2168 = vpop.f32.mrb[0].mxu0
        %v2169 = vadd.f32 0.0, %v2168
        %v2170 = vpop.f32.mrb[0].mxu0
        %v2171 = vadd.f32 0.0, %v2170
        %2172 = vmatprep.mubr.f32.mxu0 0.0
        %2173 = vmatmul.mubr.f32.gmra.mrb[0].mxu0 %v1956
        %v2174 = vpop.f32.mrb[0].mxu0
        %v2175 = vadd.f32 0.0, %v2174
        %v2176 = vpop.f32.mrb[0].mxu0
        %v2177 = vadd.f32 0.0, %v2176
        %2178 = vmatprep.mubr.f32.mxu0 0.0
        %2179 = vmatmul.mubr.f32.gmra.mrb[0].mxu0 %v1959
        %v2180 = vpop.f32.mrb[0].mxu0
        %v2181 = vadd.f32 0.0, %v2180
        %v2182 = vpop.f32.mrb[0].mxu0
        %v2183 = vadd.f32 0.0, %v2182
        %2184 = vmatprep.mubr.f32.mxu0 0.0
        %2185 = vmatmul.mubr.f32.gmra.mrb[0].mxu0 %v1962
        %v2186 = vpop.f32.mrb[0].mxu0
        %v2187 = vadd.f32 0.0, %v2186
        %v2188 = vpop.f32.mrb[0].mxu0
        %v2189 = vadd.f32 0.0, %v2188
        %2190 = vmatprep.mubr.f32.mxu0 0.0
        %2191 = vmatmul.mubr.f32.gmra.mrb[0].mxu0 %v1965
        %v2192 = vpop.f32.mrb[0].mxu0
        %v2193 = vadd.f32 0.0, %v2192
        %v2194 = vpop.f32.mrb[0].mxu0
        %v2195 = vadd.f32 0.0, %v2194
        %2196 = vmatprep.mubr.f32.mxu0 0.0
        %2197 = vmatmul.mubr.f32.gmra.mrb[0].mxu0 %v1968
        %v2198 = vpop.f32.mrb[0].mxu0
        %v2199 = vadd.f32 0.0, %v2198
        %v2200 = vpop.f32.mrb[0].mxu0
        %v2201 = vadd.f32 0.0, %v2200
        %2202 = vmatprep.mubr.f32.mxu0 0.0
        %2203 = vmatmul.mubr.f32.gmra.mrb[0].mxu0 %v1971
        %v2204 = vpop.f32.mrb[0].mxu0
        %v2205 = vadd.f32 0.0, %v2204
        %v2206 = vpop.f32.mrb[0].mxu0
        %v2207 = vadd.f32 0.0, %v2206
        %2208 = vmatprep.mubr.f32.mxu0 0.0
        %2209 = vmatmul.mubr.f32.gmra.mrb[0].mxu0 %v1974
        %v2210 = vpop.f32.mrb[0].mxu0
        %v2211 = vadd.f32 0.0, %v2210
        %v2212 = vpop.f32.mrb[0].mxu0
        %v2213 = vadd.f32 0.0, %v2212
        %2214 = vmatprep.mubr.f32.mxu0 0.0
        %2215 = vmatmul.mubr.f32.gmra.mrb[0].mxu0 %v1977
        %v2216 = vpop.f32.mrb[0].mxu0
        %v2217 = vadd.f32 0.0, %v2216
        %v2218 = vpop.f32.mrb[0].mxu0
        %v2219 = vadd.f32 0.0, %v2218
        %2220 = vmatprep.mubr.f32.mxu0 0.0
        %2221 = vmatmul.mubr.f32.gmra.mrb[0].mxu0 %v1980
        %v2222 = vpop.f32.mrb[0].mxu0
        %v2223 = vadd.f32 0.0, %v2222
        %v2224 = vpop.f32.mrb[0].mxu0
        %v2225 = vadd.f32 0.0, %v2224
        %2226 = vmatprep.mubr.f32.mxu0 0.0
        %2227 = vmatmul.mubr.f32.gmra.mrb[0].mxu0 %v1983
        %v2228 = vpop.f32.mrb[0].mxu0
        %v2229 = vadd.f32 0.0, %v2228
        %v2230 = vpop.f32.mrb[0].mxu0
        %v2231 = vadd.f32 0.0, %v2230
        %2232 = vmatprep.mubr.f32.mxu0 0.0
        %2233 = vmatmul.mubr.f32.gmra.mrb[0].mxu0 %v1986
        %v2234 = vpop.f32.mrb[0].mxu0
        %v2235 = vadd.f32 0.0, %v2234
        %v2236 = vpop.f32.mrb[0].mxu0
        %v2237 = vadd.f32 0.0, %v2236
        %2238 = vmatprep.mubr.f32.mxu0 0.0
        %2239 = vmatmul.mubr.f32.gmra.mrb[0].mxu0 %v1989
        %v2240 = vpop.f32.mrb[0].mxu0
        %v2241 = vadd.f32 0.0, %v2240
        %v2242 = vpop.f32.mrb[0].mxu0
        %v2243 = vadd.f32 0.0, %v2242
        %2244 = vmatprep.mubr.f32.mxu0 0.0
        %2245 = vmatmul.mubr.f32.gmra.mrb[0].mxu0 %v1992
        %v2246 = vpop.f32.mrb[0].mxu0
        %v2247 = vadd.f32 0.0, %v2246
        %v2248 = vpop.f32.mrb[0].mxu0
        %v2249 = vadd.f32 0.0, %v2248
        %2250 = vdwg.mxu0
        %2251 = vxpose.xlu0.b32.start [1/16] %v958, 128
        %2252 = vxpose.xlu0.b32.cont [2/16] %v960, 128
        %2253 = vxpose.xlu0.b32.cont [3/16] %v962, 128
        %2254 = vxpose.xlu0.b32.cont [4/16] %v964, 128
        %2255 = vxpose.xlu0.b32.cont [5/16] 0.0, 128
        %2256 = vxpose.xlu0.b32.cont [6/16] 0.0, 128
        %2257 = vxpose.xlu0.b32.cont [7/16] 0.0, 128
        %2258 = vxpose.xlu0.b32.cont [8/16] 0.0, 128
        %2259 = vxpose.xlu0.b32.cont [9/16] 0.0, 128
        %2260 = vxpose.xlu0.b32.cont [10/16] 0.0, 128
        %2261 = vxpose.xlu0.b32.cont [11/16] 0.0, 128
        %2262 = vxpose.xlu0.b32.cont [12/16] 0.0, 128
        %2263 = vxpose.xlu0.b32.cont [13/16] 0.0, 128
        %2264 = vxpose.xlu0.b32.cont [14/16] 0.0, 128
        %2265 = vxpose.xlu0.b32.cont [15/16] 0.0, 128
        %2266 = vxpose.xlu0.b32.end [16/16] 0.0, 128
        %v2267 = vpop.trf.xlu0
        %v2268 = vpop.trf.xlu0
        %v2269 = vpop.trf.xlu0
        %v2270 = vpop.trf.xlu0
        %v2271 = vpop.trf.xlu0
        %v2272 = vpop.trf.xlu0
        %v2273 = vpop.trf.xlu0
        %v2274 = vpop.trf.xlu0
        %v2275 = vpop.trf.xlu0
        %v2276 = vpop.trf.xlu0
        %v2277 = vpop.trf.xlu0
        %v2278 = vpop.trf.xlu0
        %v2279 = vpop.trf.xlu0
        %v2280 = vpop.trf.xlu0
        %v2281 = vpop.trf.xlu0
        %v2282 = vpop.trf.xlu0
        %2283 = vxpose.xlu0.b32.start [1/16] %v959, 128
        %2284 = vxpose.xlu0.b32.cont [2/16] %v961, 128
        %2285 = vxpose.xlu0.b32.cont [3/16] %v963, 128
        %2286 = vxpose.xlu0.b32.cont [4/16] %v965, 128
        %2287 = vxpose.xlu0.b32.cont [5/16] 0.0, 128
        %2288 = vxpose.xlu0.b32.cont [6/16] 0.0, 128
        %2289 = vxpose.xlu0.b32.cont [7/16] 0.0, 128
        %2290 = vxpose.xlu0.b32.cont [8/16] 0.0, 128
        %2291 = vxpose.xlu0.b32.cont [9/16] 0.0, 128
        %2292 = vxpose.xlu0.b32.cont [10/16] 0.0, 128
        %2293 = vxpose.xlu0.b32.cont [11/16] 0.0, 128
        %2294 = vxpose.xlu0.b32.cont [12/16] 0.0, 128
        %2295 = vxpose.xlu0.b32.cont [13/16] 0.0, 128
        %2296 = vxpose.xlu0.b32.cont [14/16] 0.0, 128
        %2297 = vxpose.xlu0.b32.cont [15/16] 0.0, 128
        %2298 = vxpose.xlu0.b32.end [16/16] 0.0, 128
        %v2299 = vpop.trf.xlu0
        %v2300 = vpop.trf.xlu0
        %v2301 = vpop.trf.xlu0
        %v2302 = vpop.trf.xlu0
        %v2303 = vpop.trf.xlu0
        %v2304 = vpop.trf.xlu0
        %v2305 = vpop.trf.xlu0
        %v2306 = vpop.trf.xlu0
        %v2307 = vpop.trf.xlu0
        %v2308 = vpop.trf.xlu0
        %v2309 = vpop.trf.xlu0
        %v2310 = vpop.trf.xlu0
        %v2311 = vpop.trf.xlu0
        %v2312 = vpop.trf.xlu0
        %v2313 = vpop.trf.xlu0
        %v2314 = vpop.trf.xlu0
        %v2316 = vsel %vm1063, %v2267, 0
        %v2319 = vsel %vm1063, %v2268, 0
        %v2322 = vsel %vm1063, %v2269, 0
        %v2325 = vsel %vm1063, %v2270, 0
        %v2328 = vsel %vm1063, %v2271, 0
        %v2331 = vsel %vm1063, %v2272, 0
        %v2334 = vsel %vm1063, %v2273, 0
        %v2337 = vsel %vm1063, %v2274, 0
        %v2340 = vsel %vm1063, %v2275, 0
        %v2343 = vsel %vm1063, %v2276, 0
        %v2346 = vsel %vm1063, %v2277, 0
        %v2349 = vsel %vm1063, %v2278, 0
        %v2352 = vsel %vm1063, %v2279, 0
        %v2355 = vsel %vm1063, %v2280, 0
        %v2358 = vsel %vm1063, %v2281, 0
        %v2361 = vsel %vm1063, %v2282, 0
        %v2364 = vsel %vm1063, %v2299, 0
        %v2367 = vsel %vm1063, %v2300, 0
        %v2370 = vsel %vm1063, %v2301, 0
        %v2373 = vsel %vm1063, %v2302, 0
        %v2376 = vsel %vm1063, %v2303, 0
        %v2379 = vsel %vm1063, %v2304, 0
        %v2382 = vsel %vm1063, %v2305, 0
        %v2385 = vsel %vm1063, %v2306, 0
        %v2388 = vsel %vm1063, %v2307, 0
        %v2391 = vsel %vm1063, %v2308, 0
        %v2394 = vsel %vm1063, %v2309, 0
        %v2397 = vsel %vm1063, %v2310, 0
        %v2400 = vsel %vm1063, %v2311, 0
        %v2403 = vsel %vm1063, %v2312, 0
        %v2406 = vsel %vm1063, %v2313, 0
        %v2409 = vsel %vm1063, %v2314, 0
        %2411 = vmatprep.subr.mxu0 %v914
        %2412 = vmatpush1.msra.mxu0 %v912
        %2413 = vmatprep.subr.mxu0 %v920
        %2414 = vmatpush1.msra.mxu0 %v918
        %2415 = vmatprep.subr.mxu0 %v926
        %2416 = vmatpush1.msra.mxu0 %v924
        %2417 = vmatprep.subr.mxu0 %v932
        %2418 = vmatpush1.msra.mxu0 %v930
        %2419 = vmatprep.subr.mxu0 0.0
        %2420 = vmatpush1.msra.mxu0 0.0
        %2421 = vmatprep.subr.mxu0 0.0
        %2422 = vmatpush1.msra.mxu0 0.0
        %2423 = vmatprep.subr.mxu0 0.0
        %2424 = vmatpush1.msra.mxu0 0.0
        %2425 = vmatprep.subr.mxu0 0.0
        %2426 = vmatpush1.msra.mxu0 0.0
        %2427 = vmatprep.subr.mxu0 0.0
        %2428 = vmatpush1.msra.mxu0 0.0
        %2429 = vmatprep.subr.mxu0 0.0
        %2430 = vmatpush1.msra.mxu0 0.0
        %2431 = vmatprep.subr.mxu0 0.0
        %2432 = vmatpush1.msra.mxu0 0.0
        %2433 = vmatprep.subr.mxu0 0.0
        %2434 = vmatpush1.msra.mxu0 0.0
        %2435 = vmatprep.subr.mxu0 0.0
        %2436 = vmatpush1.msra.mxu0 0.0
        %2437 = vmatprep.subr.mxu0 0.0
        %2438 = vmatpush1.msra.mxu0 0.0
        %2439 = vmatprep.subr.mxu0 0.0
        %2440 = vmatpush1.msra.mxu0 0.0
        %2441 = vmatprep.subr.mxu0 0.0
        %2442 = vmatpush1.msra.mxu0 0.0
        %2443 = vmatprep.subr.mxu0 0.0
        %2444 = vmatpush1.msra.mxu0 0.0
        %2445 = vmatprep.subr.mxu0 0.0
        %2446 = vmatpush1.msra.mxu0 0.0
        %2447 = vmatprep.subr.mxu0 0.0
        %2448 = vmatpush1.msra.mxu0 0.0
        %2449 = vmatprep.subr.mxu0 0.0
        %2450 = vmatpush1.msra.mxu0 0.0
        %2451 = vmatprep.subr.mxu0 0.0
        %2452 = vmatpush1.msra.mxu0 0.0
        %2453 = vmatprep.subr.mxu0 0.0
        %2454 = vmatpush1.msra.mxu0 0.0
        %2455 = vmatprep.subr.mxu0 0.0
        %2456 = vmatpush1.msra.mxu0 0.0
        %2457 = vmatprep.subr.mxu0 0.0
        %2458 = vmatpush1.msra.mxu0 0.0
        %2459 = vmatprep.subr.mxu0 0.0
        %2460 = vmatpush1.msra.mxu0 0.0
        %2461 = vmatprep.subr.mxu0 0.0
        %2462 = vmatpush1.msra.mxu0 0.0
        %2463 = vmatprep.subr.mxu0 0.0
        %2464 = vmatpush1.msra.mxu0 0.0
        %2465 = vmatprep.subr.mxu0 0.0
        %2466 = vmatpush1.msra.mxu0 0.0
        %2467 = vmatprep.subr.mxu0 0.0
        %2468 = vmatpush1.msra.mxu0 0.0
        %2469 = vmatprep.subr.mxu0 0.0
        %2470 = vmatpush1.msra.mxu0 0.0
        %2471 = vmatprep.subr.mxu0 0.0
        %2472 = vmatpush1.msra.mxu0 0.0
        %2473 = vmatprep.subr.mxu0 0.0
        %2474 = vmatpush1.msra.mxu0 0.0
        %2475 = vmatprep.mubr.f32.mxu0 0.0
        %2476 = vmatmul.mubr.f32.gmra.mrb[0].mxu0 %v2316
        %v2477 = vpop.f32.mrb[0].mxu0
        %v2478 = vadd.f32 0.0, %v2477
        %v2479 = vpop.f32.mrb[0].mxu0
        %v2480 = vadd.f32 0.0, %v2479
        %2481 = vmatprep.mubr.f32.mxu0 0.0
        %2482 = vmatmul.mubr.f32.gmra.mrb[0].mxu0 %v2319
        %v2483 = vpop.f32.mrb[0].mxu0
        %v2484 = vadd.f32 0.0, %v2483
        %v2485 = vpop.f32.mrb[0].mxu0
        %v2486 = vadd.f32 0.0, %v2485
        %2487 = vmatprep.mubr.f32.mxu0 0.0
        %2488 = vmatmul.mubr.f32.gmra.mrb[0].mxu0 %v2322
        %v2489 = vpop.f32.mrb[0].mxu0
        %v2490 = vadd.f32 0.0, %v2489
        %v2491 = vpop.f32.mrb[0].mxu0
        %v2492 = vadd.f32 0.0, %v2491
        %2493 = vmatprep.mubr.f32.mxu0 0.0
        %2494 = vmatmul.mubr.f32.gmra.mrb[0].mxu0 %v2325
        %v2495 = vpop.f32.mrb[0].mxu0
        %v2496 = vadd.f32 0.0, %v2495
        %v2497 = vpop.f32.mrb[0].mxu0
        %v2498 = vadd.f32 0.0, %v2497
        %2499 = vmatprep.mubr.f32.mxu0 0.0
        %2500 = vmatmul.mubr.f32.gmra.mrb[0].mxu0 %v2328
        %v2501 = vpop.f32.mrb[0].mxu0
        %v2502 = vadd.f32 0.0, %v2501
        %v2503 = vpop.f32.mrb[0].mxu0
        %v2504 = vadd.f32 0.0, %v2503
        %2505 = vmatprep.mubr.f32.mxu0 0.0
        %2506 = vmatmul.mubr.f32.gmra.mrb[0].mxu0 %v2331
        %v2507 = vpop.f32.mrb[0].mxu0
        %v2508 = vadd.f32 0.0, %v2507
        %v2509 = vpop.f32.mrb[0].mxu0
        %v2510 = vadd.f32 0.0, %v2509
        %2511 = vmatprep.mubr.f32.mxu0 0.0
        %2512 = vmatmul.mubr.f32.gmra.mrb[0].mxu0 %v2334
        %v2513 = vpop.f32.mrb[0].mxu0
        %v2514 = vadd.f32 0.0, %v2513
        %v2515 = vpop.f32.mrb[0].mxu0
        %v2516 = vadd.f32 0.0, %v2515
        %2517 = vmatprep.mubr.f32.mxu0 0.0
        %2518 = vmatmul.mubr.f32.gmra.mrb[0].mxu0 %v2337
        %v2519 = vpop.f32.mrb[0].mxu0
        %v2520 = vadd.f32 0.0, %v2519
        %v2521 = vpop.f32.mrb[0].mxu0
        %v2522 = vadd.f32 0.0, %v2521
        %2523 = vmatprep.mubr.f32.mxu0 0.0
        %2524 = vmatmul.mubr.f32.gmra.mrb[0].mxu0 %v2340
        %v2525 = vpop.f32.mrb[0].mxu0
        %v2526 = vadd.f32 0.0, %v2525
        %v2527 = vpop.f32.mrb[0].mxu0
        %v2528 = vadd.f32 0.0, %v2527
        %2529 = vmatprep.mubr.f32.mxu0 0.0
        %2530 = vmatmul.mubr.f32.gmra.mrb[0].mxu0 %v2343
        %v2531 = vpop.f32.mrb[0].mxu0
        %v2532 = vadd.f32 0.0, %v2531
        %v2533 = vpop.f32.mrb[0].mxu0
        %v2534 = vadd.f32 0.0, %v2533
        %2535 = vmatprep.mubr.f32.mxu0 0.0
        %2536 = vmatmul.mubr.f32.gmra.mrb[0].mxu0 %v2346
        %v2537 = vpop.f32.mrb[0].mxu0
        %v2538 = vadd.f32 0.0, %v2537
        %v2539 = vpop.f32.mrb[0].mxu0
        %v2540 = vadd.f32 0.0, %v2539
        %2541 = vmatprep.mubr.f32.mxu0 0.0
        %2542 = vmatmul.mubr.f32.gmra.mrb[0].mxu0 %v2349
        %v2543 = vpop.f32.mrb[0].mxu0
        %v2544 = vadd.f32 0.0, %v2543
        %v2545 = vpop.f32.mrb[0].mxu0
        %v2546 = vadd.f32 0.0, %v2545
        %2547 = vmatprep.mubr.f32.mxu0 0.0
        %2548 = vmatmul.mubr.f32.gmra.mrb[0].mxu0 %v2352
        %v2549 = vpop.f32.mrb[0].mxu0
        %v2550 = vadd.f32 0.0, %v2549
        %v2551 = vpop.f32.mrb[0].mxu0
        %v2552 = vadd.f32 0.0, %v2551
        %2553 = vmatprep.mubr.f32.mxu0 0.0
        %2554 = vmatmul.mubr.f32.gmra.mrb[0].mxu0 %v2355
        %v2555 = vpop.f32.mrb[0].mxu0
        %v2556 = vadd.f32 0.0, %v2555
        %v2557 = vpop.f32.mrb[0].mxu0
        %v2558 = vadd.f32 0.0, %v2557
        %2559 = vmatprep.mubr.f32.mxu0 0.0
        %2560 = vmatmul.mubr.f32.gmra.mrb[0].mxu0 %v2358
        %v2561 = vpop.f32.mrb[0].mxu0
        %v2562 = vadd.f32 0.0, %v2561
        %v2563 = vpop.f32.mrb[0].mxu0
        %v2564 = vadd.f32 0.0, %v2563
        %2565 = vmatprep.mubr.f32.mxu0 0.0
        %2566 = vmatmul.mubr.f32.gmra.mrb[0].mxu0 %v2361
        %v2567 = vpop.f32.mrb[0].mxu0
        %v2568 = vadd.f32 0.0, %v2567
        %v2569 = vpop.f32.mrb[0].mxu0
        %v2570 = vadd.f32 0.0, %v2569
        %2571 = vmatprep.mubr.f32.mxu0 0.0
        %2572 = vmatmul.mubr.f32.gmra.mrb[0].mxu0 %v2364
        %v2573 = vpop.f32.mrb[0].mxu0
        %v2574 = vadd.f32 0.0, %v2573
        %v2575 = vpop.f32.mrb[0].mxu0
        %v2576 = vadd.f32 0.0, %v2575
        %2577 = vmatprep.mubr.f32.mxu0 0.0
        %2578 = vmatmul.mubr.f32.gmra.mrb[0].mxu0 %v2367
        %v2579 = vpop.f32.mrb[0].mxu0
        %v2580 = vadd.f32 0.0, %v2579
        %v2581 = vpop.f32.mrb[0].mxu0
        %v2582 = vadd.f32 0.0, %v2581
        %2583 = vmatprep.mubr.f32.mxu0 0.0
        %2584 = vmatmul.mubr.f32.gmra.mrb[0].mxu0 %v2370
        %v2585 = vpop.f32.mrb[0].mxu0
        %v2586 = vadd.f32 0.0, %v2585
        %v2587 = vpop.f32.mrb[0].mxu0
        %v2588 = vadd.f32 0.0, %v2587
        %2589 = vmatprep.mubr.f32.mxu0 0.0
        %2590 = vmatmul.mubr.f32.gmra.mrb[0].mxu0 %v2373
        %v2591 = vpop.f32.mrb[0].mxu0
        %v2592 = vadd.f32 0.0, %v2591
        %v2593 = vpop.f32.mrb[0].mxu0
        %v2594 = vadd.f32 0.0, %v2593
        %2595 = vmatprep.mubr.f32.mxu0 0.0
        %2596 = vmatmul.mubr.f32.gmra.mrb[0].mxu0 %v2376
        %v2597 = vpop.f32.mrb[0].mxu0
        %v2598 = vadd.f32 0.0, %v2597
        %v2599 = vpop.f32.mrb[0].mxu0
        %v2600 = vadd.f32 0.0, %v2599
        %2601 = vmatprep.mubr.f32.mxu0 0.0
        %2602 = vmatmul.mubr.f32.gmra.mrb[0].mxu0 %v2379
        %v2603 = vpop.f32.mrb[0].mxu0
        %v2604 = vadd.f32 0.0, %v2603
        %v2605 = vpop.f32.mrb[0].mxu0
        %v2606 = vadd.f32 0.0, %v2605
        %2607 = vmatprep.mubr.f32.mxu0 0.0
        %2608 = vmatmul.mubr.f32.gmra.mrb[0].mxu0 %v2382
        %v2609 = vpop.f32.mrb[0].mxu0
        %v2610 = vadd.f32 0.0, %v2609
        %v2611 = vpop.f32.mrb[0].mxu0
        %v2612 = vadd.f32 0.0, %v2611
        %2613 = vmatprep.mubr.f32.mxu0 0.0
        %2614 = vmatmul.mubr.f32.gmra.mrb[0].mxu0 %v2385
        %v2615 = vpop.f32.mrb[0].mxu0
        %v2616 = vadd.f32 0.0, %v2615
        %v2617 = vpop.f32.mrb[0].mxu0
        %v2618 = vadd.f32 0.0, %v2617
        %2619 = vmatprep.mubr.f32.mxu0 0.0
        %2620 = vmatmul.mubr.f32.gmra.mrb[0].mxu0 %v2388
        %v2621 = vpop.f32.mrb[0].mxu0
        %v2622 = vadd.f32 0.0, %v2621
        %v2623 = vpop.f32.mrb[0].mxu0
        %v2624 = vadd.f32 0.0, %v2623
        %2625 = vmatprep.mubr.f32.mxu0 0.0
        %2626 = vmatmul.mubr.f32.gmra.mrb[0].mxu0 %v2391
        %v2627 = vpop.f32.mrb[0].mxu0
        %v2628 = vadd.f32 0.0, %v2627
        %v2629 = vpop.f32.mrb[0].mxu0
        %v2630 = vadd.f32 0.0, %v2629
        %2631 = vmatprep.mubr.f32.mxu0 0.0
        %2632 = vmatmul.mubr.f32.gmra.mrb[0].mxu0 %v2394
        %v2633 = vpop.f32.mrb[0].mxu0
        %v2634 = vadd.f32 0.0, %v2633
        %v2635 = vpop.f32.mrb[0].mxu0
        %v2636 = vadd.f32 0.0, %v2635
        %2637 = vmatprep.mubr.f32.mxu0 0.0
        %2638 = vmatmul.mubr.f32.gmra.mrb[0].mxu0 %v2397
        %v2639 = vpop.f32.mrb[0].mxu0
        %v2640 = vadd.f32 0.0, %v2639
        %v2641 = vpop.f32.mrb[0].mxu0
        %v2642 = vadd.f32 0.0, %v2641
        %2643 = vmatprep.mubr.f32.mxu0 0.0
        %2644 = vmatmul.mubr.f32.gmra.mrb[0].mxu0 %v2400
        %v2645 = vpop.f32.mrb[0].mxu0
        %v2646 = vadd.f32 0.0, %v2645
        %v2647 = vpop.f32.mrb[0].mxu0
        %v2648 = vadd.f32 0.0, %v2647
        %2649 = vmatprep.mubr.f32.mxu0 0.0
        %2650 = vmatmul.mubr.f32.gmra.mrb[0].mxu0 %v2403
        %v2651 = vpop.f32.mrb[0].mxu0
        %v2652 = vadd.f32 0.0, %v2651
        %v2653 = vpop.f32.mrb[0].mxu0
        %v2654 = vadd.f32 0.0, %v2653
        %2655 = vmatprep.mubr.f32.mxu0 0.0
        %2656 = vmatmul.mubr.f32.gmra.mrb[0].mxu0 %v2406
        %v2657 = vpop.f32.mrb[0].mxu0
        %v2658 = vadd.f32 0.0, %v2657
        %v2659 = vpop.f32.mrb[0].mxu0
        %v2660 = vadd.f32 0.0, %v2659
        %2661 = vmatprep.mubr.f32.mxu0 0.0
        %2662 = vmatmul.mubr.f32.gmra.mrb[0].mxu0 %v2409
        %v2663 = vpop.f32.mrb[0].mxu0
        %v2664 = vadd.f32 0.0, %v2663
        %v2665 = vpop.f32.mrb[0].mxu0
        %v2666 = vadd.f32 0.0, %v2665
        %2667 = vdwg.mxu0
        %v2668 = vmax.f32 %v1227, %v1233
        %v2669 = vmax.f32 %v2668, %v1239
        %v2670 = vmax.f32 %v2669, %v1245
        %v2671 = vmax.f32 %v2670, %v1251
        %v2672 = vmax.f32 %v2671, %v1257
        %v2673 = vmax.f32 %v2672, %v1263
        %v2674 = vmax.f32 %v2673, %v1269
        %v2675 = vmax.f32 %v2674, %v1275
        %v2676 = vmax.f32 %v2675, %v1281
        %v2677 = vmax.f32 %v2676, %v1287
        %v2678 = vmax.f32 %v2677, %v1293
        %v2679 = vmax.f32 %v2678, %v1299
        %v2680 = vmax.f32 %v2679, %v1305
        %v2681 = vmax.f32 %v2680, %v1311
        %v2682 = vmax.f32 %v2681, %v1317
        %v2683 = vmax.f32 %v2682, %v1323
        %v2684 = vmax.f32 %v2683, %v1329
        %v2685 = vmax.f32 %v2684, %v1335
        %v2686 = vmax.f32 %v2685, %v1341
        %v2687 = vmax.f32 %v2686, %v1347
        %v2688 = vmax.f32 %v2687, %v1353
        %v2689 = vmax.f32 %v2688, %v1359
        %v2690 = vmax.f32 %v2689, %v1365
        %v2691 = vmax.f32 %v2690, %v1371
        %v2692 = vmax.f32 %v2691, %v1377
        %v2693 = vmax.f32 %v2692, %v1383
        %v2694 = vmax.f32 %v2693, %v1389
        %v2695 = vmax.f32 %v2694, %v1395
        %v2696 = vmax.f32 %v2695, %v1401
        %v2697 = vmax.f32 %v2696, %v1407
        %v2698 = vmax.f32 %v2697, %v1413
        %v2699 = vrot.slane %v2698, 4
        %v2700 = vmax.f32 %v2698, %v2699
        %v2701 = vrot.slane %v2700, 2
        %v2702 = vmax.f32 %v2700, %v2701
        %v2703 = vrot.slane %v2702, 1
        %v2704 = vmax.f32 %v2702, %v2703
        %v2705 = vmax.f32 %v1229, %v1235
        %v2706 = vmax.f32 %v2705, %v1241
        %v2707 = vmax.f32 %v2706, %v1247
        %v2708 = vmax.f32 %v2707, %v1253
        %v2709 = vmax.f32 %v2708, %v1259
        %v2710 = vmax.f32 %v2709, %v1265
        %v2711 = vmax.f32 %v2710, %v1271
        %v2712 = vmax.f32 %v2711, %v1277
        %v2713 = vmax.f32 %v2712, %v1283
        %v2714 = vmax.f32 %v2713, %v1289
        %v2715 = vmax.f32 %v2714, %v1295
        %v2716 = vmax.f32 %v2715, %v1301
        %v2717 = vmax.f32 %v2716, %v1307
        %v2718 = vmax.f32 %v2717, %v1313
        %v2719 = vmax.f32 %v2718, %v1319
        %v2720 = vmax.f32 %v2719, %v1325
        %v2721 = vmax.f32 %v2720, %v1331
        %v2722 = vmax.f32 %v2721, %v1337
        %v2723 = vmax.f32 %v2722, %v1343
        %v2724 = vmax.f32 %v2723, %v1349
        %v2725 = vmax.f32 %v2724, %v1355
        %v2726 = vmax.f32 %v2725, %v1361
        %v2727 = vmax.f32 %v2726, %v1367
        %v2728 = vmax.f32 %v2727, %v1373
        %v2729 = vmax.f32 %v2728, %v1379
        %v2730 = vmax.f32 %v2729, %v1385
        %v2731 = vmax.f32 %v2730, %v1391
        %v2732 = vmax.f32 %v2731, %v1397
        %v2733 = vmax.f32 %v2732, %v1403
        %v2734 = vmax.f32 %v2733, %v1409
        %v2735 = vmax.f32 %v2734, %v1415
        %v2736 = vrot.slane %v2735, 4
        %v2737 = vmax.f32 %v2735, %v2736
        %v2738 = vrot.slane %v2737, 2
        %v2739 = vmax.f32 %v2737, %v2738
        %v2740 = vrot.slane %v2739, 1
        %v2741 = vmax.f32 %v2739, %v2740
        %v2742 = vmax.f32 %v1644, %v1650
        %v2743 = vmax.f32 %v2742, %v1656
        %v2744 = vmax.f32 %v2743, %v1662
        %v2745 = vmax.f32 %v2744, %v1668
        %v2746 = vmax.f32 %v2745, %v1674
        %v2747 = vmax.f32 %v2746, %v1680
        %v2748 = vmax.f32 %v2747, %v1686
        %v2749 = vmax.f32 %v2748, %v1692
        %v2750 = vmax.f32 %v2749, %v1698
        %v2751 = vmax.f32 %v2750, %v1704
        %v2752 = vmax.f32 %v2751, %v1710
        %v2753 = vmax.f32 %v2752, %v1716
        %v2754 = vmax.f32 %v2753, %v1722
        %v2755 = vmax.f32 %v2754, %v1728
        %v2756 = vmax.f32 %v2755, %v1734
        %v2757 = vmax.f32 %v2756, %v1740
        %v2758 = vmax.f32 %v2757, %v1746
        %v2759 = vmax.f32 %v2758, %v1752
        %v2760 = vmax.f32 %v2759, %v1758
        %v2761 = vmax.f32 %v2760, %v1764
        %v2762 = vmax.f32 %v2761, %v1770
        %v2763 = vmax.f32 %v2762, %v1776
        %v2764 = vmax.f32 %v2763, %v1782
        %v2765 = vmax.f32 %v2764, %v1788
        %v2766 = vmax.f32 %v2765, %v1794
        %v2767 = vmax.f32 %v2766, %v1800
        %v2768 = vmax.f32 %v2767, %v1806
        %v2769 = vmax.f32 %v2768, %v1812
        %v2770 = vmax.f32 %v2769, %v1818
        %v2771 = vmax.f32 %v2770, %v1824
        %v2772 = vmax.f32 %v2771, %v1830
        %v2773 = vrot.slane %v2772, 4
        %v2774 = vmax.f32 %v2772, %v2773
        %v2775 = vrot.slane %v2774, 2
        %v2776 = vmax.f32 %v2774, %v2775
        %v2777 = vrot.slane %v2776, 1
        %v2778 = vmax.f32 %v2776, %v2777
        %v2779 = vmax.f32 %v1646, %v1652
        %v2780 = vmax.f32 %v2779, %v1658
        %v2781 = vmax.f32 %v2780, %v1664
        %v2782 = vmax.f32 %v2781, %v1670
        %v2783 = vmax.f32 %v2782, %v1676
        %v2784 = vmax.f32 %v2783, %v1682
        %v2785 = vmax.f32 %v2784, %v1688
        %v2786 = vmax.f32 %v2785, %v1694
        %v2787 = vmax.f32 %v2786, %v1700
        %v2788 = vmax.f32 %v2787, %v1706
        %v2789 = vmax.f32 %v2788, %v1712
        %v2790 = vmax.f32 %v2789, %v1718
        %v2791 = vmax.f32 %v2790, %v1724
        %v2792 = vmax.f32 %v2791, %v1730
        %v2793 = vmax.f32 %v2792, %v1736
        %v2794 = vmax.f32 %v2793, %v1742
        %v2795 = vmax.f32 %v2794, %v1748
        %v2796 = vmax.f32 %v2795, %v1754
        %v2797 = vmax.f32 %v2796, %v1760
        %v2798 = vmax.f32 %v2797, %v1766
        %v2799 = vmax.f32 %v2798, %v1772
        %v2800 = vmax.f32 %v2799, %v1778
        %v2801 = vmax.f32 %v2800, %v1784
        %v2802 = vmax.f32 %v2801, %v1790
        %v2803 = vmax.f32 %v2802, %v1796
        %v2804 = vmax.f32 %v2803, %v1802
        %v2805 = vmax.f32 %v2804, %v1808
        %v2806 = vmax.f32 %v2805, %v1814
        %v2807 = vmax.f32 %v2806, %v1820
        %v2808 = vmax.f32 %v2807, %v1826
        %v2809 = vmax.f32 %v2808, %v1832
        %v2810 = vrot.slane %v2809, 4
        %v2811 = vmax.f32 %v2809, %v2810
        %v2812 = vrot.slane %v2811, 2
        %v2813 = vmax.f32 %v2811, %v2812
        %v2814 = vrot.slane %v2813, 1
        %v2815 = vmax.f32 %v2813, %v2814
        %v2816 = vmax.f32 %v2061, %v2067
        %v2817 = vmax.f32 %v2816, %v2073
        %v2818 = vmax.f32 %v2817, %v2079
        %v2819 = vmax.f32 %v2818, %v2085
        %v2820 = vmax.f32 %v2819, %v2091
        %v2821 = vmax.f32 %v2820, %v2097
        %v2822 = vmax.f32 %v2821, %v2103
        %v2823 = vmax.f32 %v2822, %v2109
        %v2824 = vmax.f32 %v2823, %v2115
        %v2825 = vmax.f32 %v2824, %v2121
        %v2826 = vmax.f32 %v2825, %v2127
        %v2827 = vmax.f32 %v2826, %v2133
        %v2828 = vmax.f32 %v2827, %v2139
        %v2829 = vmax.f32 %v2828, %v2145
        %v2830 = vmax.f32 %v2829, %v2151
        %v2831 = vmax.f32 %v2830, %v2157
        %v2832 = vmax.f32 %v2831, %v2163
        %v2833 = vmax.f32 %v2832, %v2169
        %v2834 = vmax.f32 %v2833, %v2175
        %v2835 = vmax.f32 %v2834, %v2181
        %v2836 = vmax.f32 %v2835, %v2187
        %v2837 = vmax.f32 %v2836, %v2193
        %v2838 = vmax.f32 %v2837, %v2199
        %v2839 = vmax.f32 %v2838, %v2205
        %v2840 = vmax.f32 %v2839, %v2211
        %v2841 = vmax.f32 %v2840, %v2217
        %v2842 = vmax.f32 %v2841, %v2223
        %v2843 = vmax.f32 %v2842, %v2229
        %v2844 = vmax.f32 %v2843, %v2235
        %v2845 = vmax.f32 %v2844, %v2241
        %v2846 = vmax.f32 %v2845, %v2247
        %v2847 = vrot.slane %v2846, 4
        %v2848 = vmax.f32 %v2846, %v2847
        %v2849 = vrot.slane %v2848, 2
        %v2850 = vmax.f32 %v2848, %v2849
        %v2851 = vrot.slane %v2850, 1
        %v2852 = vmax.f32 %v2850, %v2851
        %v2853 = vmax.f32 %v2063, %v2069
        %v2854 = vmax.f32 %v2853, %v2075
        %v2855 = vmax.f32 %v2854, %v2081
        %v2856 = vmax.f32 %v2855, %v2087
        %v2857 = vmax.f32 %v2856, %v2093
        %v2858 = vmax.f32 %v2857, %v2099
        %v2859 = vmax.f32 %v2858, %v2105
        %v2860 = vmax.f32 %v2859, %v2111
        %v2861 = vmax.f32 %v2860, %v2117
        %v2862 = vmax.f32 %v2861, %v2123
        %v2863 = vmax.f32 %v2862, %v2129
        %v2864 = vmax.f32 %v2863, %v2135
        %v2865 = vmax.f32 %v2864, %v2141
        %v2866 = vmax.f32 %v2865, %v2147
        %v2867 = vmax.f32 %v2866, %v2153
        %v2868 = vmax.f32 %v2867, %v2159
        %v2869 = vmax.f32 %v2868, %v2165
        %v2870 = vmax.f32 %v2869, %v2171
        %v2871 = vmax.f32 %v2870, %v2177
        %v2872 = vmax.f32 %v2871, %v2183
        %v2873 = vmax.f32 %v2872, %v2189
        %v2874 = vmax.f32 %v2873, %v2195
        %v2875 = vmax.f32 %v2874, %v2201
        %v2876 = vmax.f32 %v2875, %v2207
        %v2877 = vmax.f32 %v2876, %v2213
        %v2878 = vmax.f32 %v2877, %v2219
        %v2879 = vmax.f32 %v2878, %v2225
        %v2880 = vmax.f32 %v2879, %v2231
        %v2881 = vmax.f32 %v2880, %v2237
        %v2882 = vmax.f32 %v2881, %v2243
        %v2883 = vmax.f32 %v2882, %v2249
        %v2884 = vrot.slane %v2883, 4
        %v2885 = vmax.f32 %v2883, %v2884
        %v2886 = vrot.slane %v2885, 2
        %v2887 = vmax.f32 %v2885, %v2886
        %v2888 = vrot.slane %v2887, 1
        %v2889 = vmax.f32 %v2887, %v2888
        %v2890 = vmax.f32 %v2478, %v2484
        %v2891 = vmax.f32 %v2890, %v2490
        %v2892 = vmax.f32 %v2891, %v2496
        %v2893 = vmax.f32 %v2892, %v2502
        %v2894 = vmax.f32 %v2893, %v2508
        %v2895 = vmax.f32 %v2894, %v2514
        %v2896 = vmax.f32 %v2895, %v2520
        %v2897 = vmax.f32 %v2896, %v2526
        %v2898 = vmax.f32 %v2897, %v2532
        %v2899 = vmax.f32 %v2898, %v2538
        %v2900 = vmax.f32 %v2899, %v2544
        %v2901 = vmax.f32 %v2900, %v2550
        %v2902 = vmax.f32 %v2901, %v2556
        %v2903 = vmax.f32 %v2902, %v2562
        %v2904 = vmax.f32 %v2903, %v2568
        %v2905 = vmax.f32 %v2904, %v2574
        %v2906 = vmax.f32 %v2905, %v2580
        %v2907 = vmax.f32 %v2906, %v2586
        %v2908 = vmax.f32 %v2907, %v2592
        %v2909 = vmax.f32 %v2908, %v2598
        %v2910 = vmax.f32 %v2909, %v2604
        %v2911 = vmax.f32 %v2910, %v2610
        %v2912 = vmax.f32 %v2911, %v2616
        %v2913 = vmax.f32 %v2912, %v2622
        %v2914 = vmax.f32 %v2913, %v2628
        %v2915 = vmax.f32 %v2914, %v2634
        %v2916 = vmax.f32 %v2915, %v2640
        %v2917 = vmax.f32 %v2916, %v2646
        %v2918 = vmax.f32 %v2917, %v2652
        %v2919 = vmax.f32 %v2918, %v2658
        %v2920 = vmax.f32 %v2919, %v2664
        %v2921 = vrot.slane %v2920, 4
        %v2922 = vmax.f32 %v2920, %v2921
        %v2923 = vrot.slane %v2922, 2
        %v2924 = vmax.f32 %v2922, %v2923
        %v2925 = vrot.slane %v2924, 1
        %v2926 = vmax.f32 %v2924, %v2925
        %v2927 = vmax.f32 %v2480, %v2486
        %v2928 = vmax.f32 %v2927, %v2492
        %v2929 = vmax.f32 %v2928, %v2498
        %v2930 = vmax.f32 %v2929, %v2504
        %v2931 = vmax.f32 %v2930, %v2510
        %v2932 = vmax.f32 %v2931, %v2516
        %v2933 = vmax.f32 %v2932, %v2522
        %v2934 = vmax.f32 %v2933, %v2528
        %v2935 = vmax.f32 %v2934, %v2534
        %v2936 = vmax.f32 %v2935, %v2540
        %v2937 = vmax.f32 %v2936, %v2546
        %v2938 = vmax.f32 %v2937, %v2552
        %v2939 = vmax.f32 %v2938, %v2558
        %v2940 = vmax.f32 %v2939, %v2564
        %v2941 = vmax.f32 %v2940, %v2570
        %v2942 = vmax.f32 %v2941, %v2576
        %v2943 = vmax.f32 %v2942, %v2582
        %v2944 = vmax.f32 %v2943, %v2588
        %v2945 = vmax.f32 %v2944, %v2594
        %v2946 = vmax.f32 %v2945, %v2600
        %v2947 = vmax.f32 %v2946, %v2606
        %v2948 = vmax.f32 %v2947, %v2612
        %v2949 = vmax.f32 %v2948, %v2618
        %v2950 = vmax.f32 %v2949, %v2624
        %v2951 = vmax.f32 %v2950, %v2630
        %v2952 = vmax.f32 %v2951, %v2636
        %v2953 = vmax.f32 %v2952, %v2642
        %v2954 = vmax.f32 %v2953, %v2648
        %v2955 = vmax.f32 %v2954, %v2654
        %v2956 = vmax.f32 %v2955, %v2660
        %v2957 = vmax.f32 %v2956, %v2666
        %v2958 = vrot.slane %v2957, 4
        %v2959 = vmax.f32 %v2957, %v2958
        %v2960 = vrot.slane %v2959, 2
        %v2961 = vmax.f32 %v2959, %v2960
        %v2962 = vrot.slane %v2961, 1
        %v2963 = vmax.f32 %v2961, %v2962
        %v2964 = vsub.f32 %v1227, %v2704
        %v2965 = vsub.f32 %v1229, %v2741
        %v2966 = vsub.f32 %v1233, %v2704
        %v2967 = vsub.f32 %v1235, %v2741
        %v2968 = vsub.f32 %v1239, %v2704
        %v2969 = vsub.f32 %v1241, %v2741
        %v2970 = vsub.f32 %v1245, %v2704
        %v2971 = vsub.f32 %v1247, %v2741
        %v2972 = vsub.f32 %v1251, %v2704
        %v2973 = vsub.f32 %v1253, %v2741
        %v2974 = vsub.f32 %v1257, %v2704
        %v2975 = vsub.f32 %v1259, %v2741
        %v2976 = vsub.f32 %v1263, %v2704
        %v2977 = vsub.f32 %v1265, %v2741
        %v2978 = vsub.f32 %v1269, %v2704
        %v2979 = vsub.f32 %v1271, %v2741
        %v2980 = vsub.f32 %v1275, %v2704
        %v2981 = vsub.f32 %v1277, %v2741
        %v2982 = vsub.f32 %v1281, %v2704
        %v2983 = vsub.f32 %v1283, %v2741
        %v2984 = vsub.f32 %v1287, %v2704
        %v2985 = vsub.f32 %v1289, %v2741
        %v2986 = vsub.f32 %v1293, %v2704
        %v2987 = vsub.f32 %v1295, %v2741
        %v2988 = vsub.f32 %v1299, %v2704
        %v2989 = vsub.f32 %v1301, %v2741
        %v2990 = vsub.f32 %v1305, %v2704
        %v2991 = vsub.f32 %v1307, %v2741
        %v2992 = vsub.f32 %v1311, %v2704
        %v2993 = vsub.f32 %v1313, %v2741
        %v2994 = vsub.f32 %v1317, %v2704
        %v2995 = vsub.f32 %v1319, %v2741
        %v2996 = vsub.f32 %v1323, %v2704
        %v2997 = vsub.f32 %v1325, %v2741
        %v2998 = vsub.f32 %v1329, %v2704
        %v2999 = vsub.f32 %v1331, %v2741
        %v3000 = vsub.f32 %v1335, %v2704
        %v3001 = vsub.f32 %v1337, %v2741
        %v3002 = vsub.f32 %v1341, %v2704
        %v3003 = vsub.f32 %v1343, %v2741
        %v3004 = vsub.f32 %v1347, %v2704
        %v3005 = vsub.f32 %v1349, %v2741
        %v3006 = vsub.f32 %v1353, %v2704
        %v3007 = vsub.f32 %v1355, %v2741
        %v3008 = vsub.f32 %v1359, %v2704
        %v3009 = vsub.f32 %v1361, %v2741
        %v3010 = vsub.f32 %v1365, %v2704
        %v3011 = vsub.f32 %v1367, %v2741
        %v3012 = vsub.f32 %v1371, %v2704
        %v3013 = vsub.f32 %v1373, %v2741
        %v3014 = vsub.f32 %v1377, %v2704
        %v3015 = vsub.f32 %v1379, %v2741
        %v3016 = vsub.f32 %v1383, %v2704
        %v3017 = vsub.f32 %v1385, %v2741
        %v3018 = vsub.f32 %v1389, %v2704
        %v3019 = vsub.f32 %v1391, %v2741
        %v3020 = vsub.f32 %v1395, %v2704
        %v3021 = vsub.f32 %v1397, %v2741
        %v3022 = vsub.f32 %v1401, %v2704
        %v3023 = vsub.f32 %v1403, %v2741
        %v3024 = vsub.f32 %v1407, %v2704
        %v3025 = vsub.f32 %v1409, %v2741
        %v3026 = vsub.f32 %v1413, %v2704
        %v3027 = vsub.f32 %v1415, %v2741
        %v3028 = vsub.f32 %v1644, %v2778
        %v3029 = vsub.f32 %v1646, %v2815
        %v3030 = vsub.f32 %v1650, %v2778
        %v3031 = vsub.f32 %v1652, %v2815
        %v3032 = vsub.f32 %v1656, %v2778
        %v3033 = vsub.f32 %v1658, %v2815
        %v3034 = vsub.f32 %v1662, %v2778
        %v3035 = vsub.f32 %v1664, %v2815
        %v3036 = vsub.f32 %v1668, %v2778
        %v3037 = vsub.f32 %v1670, %v2815
        %v3038 = vsub.f32 %v1674, %v2778
        %v3039 = vsub.f32 %v1676, %v2815
        %v3040 = vsub.f32 %v1680, %v2778
        %v3041 = vsub.f32 %v1682, %v2815
        %v3042 = vsub.f32 %v1686, %v2778
        %v3043 = vsub.f32 %v1688, %v2815
        %v3044 = vsub.f32 %v1692, %v2778
        %v3045 = vsub.f32 %v1694, %v2815
        %v3046 = vsub.f32 %v1698, %v2778
        %v3047 = vsub.f32 %v1700, %v2815
        %v3048 = vsub.f32 %v1704, %v2778
        %v3049 = vsub.f32 %v1706, %v2815
        %v3050 = vsub.f32 %v1710, %v2778
        %v3051 = vsub.f32 %v1712, %v2815
        %v3052 = vsub.f32 %v1716, %v2778
        %v3053 = vsub.f32 %v1718, %v2815
        %v3054 = vsub.f32 %v1722, %v2778
        %v3055 = vsub.f32 %v1724, %v2815
        %v3056 = vsub.f32 %v1728, %v2778
        %v3057 = vsub.f32 %v1730, %v2815
        %v3058 = vsub.f32 %v1734, %v2778
        %v3059 = vsub.f32 %v1736, %v2815
        %v3060 = vsub.f32 %v1740, %v2778
        %v3061 = vsub.f32 %v1742, %v2815
        %v3062 = vsub.f32 %v1746, %v2778
        %v3063 = vsub.f32 %v1748, %v2815
        %v3064 = vsub.f32 %v1752, %v2778
        %v3065 = vsub.f32 %v1754, %v2815
        %v3066 = vsub.f32 %v1758, %v2778
        %v3067 = vsub.f32 %v1760, %v2815
        %v3068 = vsub.f32 %v1764, %v2778
        %v3069 = vsub.f32 %v1766, %v2815
        %v3070 = vsub.f32 %v1770, %v2778
        %v3071 = vsub.f32 %v1772, %v2815
        %v3072 = vsub.f32 %v1776, %v2778
        %v3073 = vsub.f32 %v1778, %v2815
        %v3074 = vsub.f32 %v1782, %v2778
        %v3075 = vsub.f32 %v1784, %v2815
        %v3076 = vsub.f32 %v1788, %v2778
        %v3077 = vsub.f32 %v1790, %v2815
        %v3078 = vsub.f32 %v1794, %v2778
        %v3079 = vsub.f32 %v1796, %v2815
        %v3080 = vsub.f32 %v1800, %v2778
        %v3081 = vsub.f32 %v1802, %v2815
        %v3082 = vsub.f32 %v1806, %v2778
        %v3083 = vsub.f32 %v1808, %v2815
        %v3084 = vsub.f32 %v1812, %v2778
        %v3085 = vsub.f32 %v1814, %v2815
        %v3086 = vsub.f32 %v1818, %v2778
        %v3087 = vsub.f32 %v1820, %v2815
        %v3088 = vsub.f32 %v1824, %v2778
        %v3089 = vsub.f32 %v1826, %v2815
        %v3090 = vsub.f32 %v1830, %v2778
        %v3091 = vsub.f32 %v1832, %v2815
        %v3092 = vsub.f32 %v2061, %v2852
        %v3093 = vsub.f32 %v2063, %v2889
        %v3094 = vsub.f32 %v2067, %v2852
        %v3095 = vsub.f32 %v2069, %v2889
        %v3096 = vsub.f32 %v2073, %v2852
        %v3097 = vsub.f32 %v2075, %v2889
        %v3098 = vsub.f32 %v2079, %v2852
        %v3099 = vsub.f32 %v2081, %v2889
        %v3100 = vsub.f32 %v2085, %v2852
        %v3101 = vsub.f32 %v2087, %v2889
        %v3102 = vsub.f32 %v2091, %v2852
        %v3103 = vsub.f32 %v2093, %v2889
        %v3104 = vsub.f32 %v2097, %v2852
        %v3105 = vsub.f32 %v2099, %v2889
        %v3106 = vsub.f32 %v2103, %v2852
        %v3107 = vsub.f32 %v2105, %v2889
        %v3108 = vsub.f32 %v2109, %v2852
        %v3109 = vsub.f32 %v2111, %v2889
        %v3110 = vsub.f32 %v2115, %v2852
        %v3111 = vsub.f32 %v2117, %v2889
        %v3112 = vsub.f32 %v2121, %v2852
        %v3113 = vsub.f32 %v2123, %v2889
        %v3114 = vsub.f32 %v2127, %v2852
        %v3115 = vsub.f32 %v2129, %v2889
        %v3116 = vsub.f32 %v2133, %v2852
        %v3117 = vsub.f32 %v2135, %v2889
        %v3118 = vsub.f32 %v2139, %v2852
        %v3119 = vsub.f32 %v2141, %v2889
        %v3120 = vsub.f32 %v2145, %v2852
        %v3121 = vsub.f32 %v2147, %v2889
        %v3122 = vsub.f32 %v2151, %v2852
        %v3123 = vsub.f32 %v2153, %v2889
        %v3124 = vsub.f32 %v2157, %v2852
        %v3125 = vsub.f32 %v2159, %v2889
        %v3126 = vsub.f32 %v2163, %v2852
        %v3127 = vsub.f32 %v2165, %v2889
        %v3128 = vsub.f32 %v2169, %v2852
        %v3129 = vsub.f32 %v2171, %v2889
        %v3130 = vsub.f32 %v2175, %v2852
        %v3131 = vsub.f32 %v2177, %v2889
        %v3132 = vsub.f32 %v2181, %v2852
        %v3133 = vsub.f32 %v2183, %v2889
        %v3134 = vsub.f32 %v2187, %v2852
        %v3135 = vsub.f32 %v2189, %v2889
        %v3136 = vsub.f32 %v2193, %v2852
        %v3137 = vsub.f32 %v2195, %v2889
        %v3138 = vsub.f32 %v2199, %v2852
        %v3139 = vsub.f32 %v2201, %v2889
        %v3140 = vsub.f32 %v2205, %v2852
        %v3141 = vsub.f32 %v2207, %v2889
        %v3142 = vsub.f32 %v2211, %v2852
        %v3143 = vsub.f32 %v2213, %v2889
        %v3144 = vsub.f32 %v2217, %v2852
        %v3145 = vsub.f32 %v2219, %v2889
        %v3146 = vsub.f32 %v2223, %v2852
        %v3147 = vsub.f32 %v2225, %v2889
        %v3148 = vsub.f32 %v2229, %v2852
        %v3149 = vsub.f32 %v2231, %v2889
        %v3150 = vsub.f32 %v2235, %v2852
        %v3151 = vsub.f32 %v2237, %v2889
        %v3152 = vsub.f32 %v2241, %v2852
        %v3153 = vsub.f32 %v2243, %v2889
        %v3154 = vsub.f32 %v2247, %v2852
        %v3155 = vsub.f32 %v2249, %v2889
        %v3156 = vsub.f32 %v2478, %v2926
        %v3157 = vsub.f32 %v2480, %v2963
        %v3158 = vsub.f32 %v2484, %v2926
        %v3159 = vsub.f32 %v2486, %v2963
        %v3160 = vsub.f32 %v2490, %v2926
        %v3161 = vsub.f32 %v2492, %v2963
        %v3162 = vsub.f32 %v2496, %v2926
        %v3163 = vsub.f32 %v2498, %v2963
        %v3164 = vsub.f32 %v2502, %v2926
        %v3165 = vsub.f32 %v2504, %v2963
        %v3166 = vsub.f32 %v2508, %v2926
        %v3167 = vsub.f32 %v2510, %v2963
        %v3168 = vsub.f32 %v2514, %v2926
        %v3169 = vsub.f32 %v2516, %v2963
        %v3170 = vsub.f32 %v2520, %v2926
        %v3171 = vsub.f32 %v2522, %v2963
        %v3172 = vsub.f32 %v2526, %v2926
        %v3173 = vsub.f32 %v2528, %v2963
        %v3174 = vsub.f32 %v2532, %v2926
        %v3175 = vsub.f32 %v2534, %v2963
        %v3176 = vsub.f32 %v2538, %v2926
        %v3177 = vsub.f32 %v2540, %v2963
        %v3178 = vsub.f32 %v2544, %v2926
        %v3179 = vsub.f32 %v2546, %v2963
        %v3180 = vsub.f32 %v2550, %v2926
        %v3181 = vsub.f32 %v2552, %v2963
        %v3182 = vsub.f32 %v2556, %v2926
        %v3183 = vsub.f32 %v2558, %v2963
        %v3184 = vsub.f32 %v2562, %v2926
        %v3185 = vsub.f32 %v2564, %v2963
        %v3186 = vsub.f32 %v2568, %v2926
        %v3187 = vsub.f32 %v2570, %v2963
        %v3188 = vsub.f32 %v2574, %v2926
        %v3189 = vsub.f32 %v2576, %v2963
        %v3190 = vsub.f32 %v2580, %v2926
        %v3191 = vsub.f32 %v2582, %v2963
        %v3192 = vsub.f32 %v2586, %v2926
        %v3193 = vsub.f32 %v2588, %v2963
        %v3194 = vsub.f32 %v2592, %v2926
        %v3195 = vsub.f32 %v2594, %v2963
        %v3196 = vsub.f32 %v2598, %v2926
        %v3197 = vsub.f32 %v2600, %v2963
        %v3198 = vsub.f32 %v2604, %v2926
        %v3199 = vsub.f32 %v2606, %v2963
        %v3200 = vsub.f32 %v2610, %v2926
        %v3201 = vsub.f32 %v2612, %v2963
        %v3202 = vsub.f32 %v2616, %v2926
        %v3203 = vsub.f32 %v2618, %v2963
        %v3204 = vsub.f32 %v2622, %v2926
        %v3205 = vsub.f32 %v2624, %v2963
        %v3206 = vsub.f32 %v2628, %v2926
        %v3207 = vsub.f32 %v2630, %v2963
        %v3208 = vsub.f32 %v2634, %v2926
        %v3209 = vsub.f32 %v2636, %v2963
        %v3210 = vsub.f32 %v2640, %v2926
        %v3211 = vsub.f32 %v2642, %v2963
        %v3212 = vsub.f32 %v2646, %v2926
        %v3213 = vsub.f32 %v2648, %v2963
        %v3214 = vsub.f32 %v2652, %v2926
        %v3215 = vsub.f32 %v2654, %v2963
        %v3216 = vsub.f32 %v2658, %v2926
        %v3217 = vsub.f32 %v2660, %v2963
        %v3218 = vsub.f32 %v2664, %v2926
        %v3219 = vsub.f32 %v2666, %v2963
        %v3220 = vmul.f32 %v2964, 1.442695
        %v3221 = vpow.pop %v3220
        %v3222 = vmul.f32 %v2965, 1.442695
        %v3223 = vpow.pop %v3222
        %v3224 = vmul.f32 %v2966, 1.442695
        %v3225 = vpow.pop %v3224
        %v3226 = vmul.f32 %v2967, 1.442695
        %v3227 = vpow.pop %v3226
        %v3228 = vmul.f32 %v2968, 1.442695
        %v3229 = vpow.pop %v3228
        %v3230 = vmul.f32 %v2969, 1.442695
        %v3231 = vpow.pop %v3230
        %v3232 = vmul.f32 %v2970, 1.442695
        %v3233 = vpow.pop %v3232
        %v3234 = vmul.f32 %v2971, 1.442695
        %v3235 = vpow.pop %v3234
        %v3236 = vmul.f32 %v2972, 1.442695
        %v3237 = vpow.pop %v3236
        %v3238 = vmul.f32 %v2973, 1.442695
        %v3239 = vpow.pop %v3238
        %v3240 = vmul.f32 %v2974, 1.442695
        %v3241 = vpow.pop %v3240
        %v3242 = vmul.f32 %v2975, 1.442695
        %v3243 = vpow.pop %v3242
        %v3244 = vmul.f32 %v2976, 1.442695
        %v3245 = vpow.pop %v3244
        %v3246 = vmul.f32 %v2977, 1.442695
        %v3247 = vpow.pop %v3246
        %v3248 = vmul.f32 %v2978, 1.442695
        %v3249 = vpow.pop %v3248
        %v3250 = vmul.f32 %v2979, 1.442695
        %v3251 = vpow.pop %v3250
        %v3252 = vmul.f32 %v2980, 1.442695
        %v3253 = vpow.pop %v3252
        %v3254 = vmul.f32 %v2981, 1.442695
        %v3255 = vpow.pop %v3254
        %v3256 = vmul.f32 %v2982, 1.442695
        %v3257 = vpow.pop %v3256
        %v3258 = vmul.f32 %v2983, 1.442695
        %v3259 = vpow.pop %v3258
        %v3260 = vmul.f32 %v2984, 1.442695
        %v3261 = vpow.pop %v3260
        %v3262 = vmul.f32 %v2985, 1.442695
        %v3263 = vpow.pop %v3262
        %v3264 = vmul.f32 %v2986, 1.442695
        %v3265 = vpow.pop %v3264
        %v3266 = vmul.f32 %v2987, 1.442695
        %v3267 = vpow.pop %v3266
        %v3268 = vmul.f32 %v2988, 1.442695
        %v3269 = vpow.pop %v3268
        %v3270 = vmul.f32 %v2989, 1.442695
        %v3271 = vpow.pop %v3270
        %v3272 = vmul.f32 %v2990, 1.442695
        %v3273 = vpow.pop %v3272
        %v3274 = vmul.f32 %v2991, 1.442695
        %v3275 = vpow.pop %v3274
        %v3276 = vmul.f32 %v2992, 1.442695
        %v3277 = vpow.pop %v3276
        %v3278 = vmul.f32 %v2993, 1.442695
        %v3279 = vpow.pop %v3278
        %v3280 = vmul.f32 %v2994, 1.442695
        %v3281 = vpow.pop %v3280
        %v3282 = vmul.f32 %v2995, 1.442695
        %v3283 = vpow.pop %v3282
        %v3284 = vmul.f32 %v2996, 1.442695
        %v3285 = vpow.pop %v3284
        %v3286 = vmul.f32 %v2997, 1.442695
        %v3287 = vpow.pop %v3286
        %v3288 = vmul.f32 %v2998, 1.442695
        %v3289 = vpow.pop %v3288
        %v3290 = vmul.f32 %v2999, 1.442695
        %v3291 = vpow.pop %v3290
        %v3292 = vmul.f32 %v3000, 1.442695
        %v3293 = vpow.pop %v3292
        %v3294 = vmul.f32 %v3001, 1.442695
        %v3295 = vpow.pop %v3294
        %v3296 = vmul.f32 %v3002, 1.442695
        %v3297 = vpow.pop %v3296
        %v3298 = vmul.f32 %v3003, 1.442695
        %v3299 = vpow.pop %v3298
        %v3300 = vmul.f32 %v3004, 1.442695
        %v3301 = vpow.pop %v3300
        %v3302 = vmul.f32 %v3005, 1.442695
        %v3303 = vpow.pop %v3302
        %v3304 = vmul.f32 %v3006, 1.442695
        %v3305 = vpow.pop %v3304
        %v3306 = vmul.f32 %v3007, 1.442695
        %v3307 = vpow.pop %v3306
        %v3308 = vmul.f32 %v3008, 1.442695
        %v3309 = vpow.pop %v3308
        %v3310 = vmul.f32 %v3009, 1.442695
        %v3311 = vpow.pop %v3310
        %v3312 = vmul.f32 %v3010, 1.442695
        %v3313 = vpow.pop %v3312
        %v3314 = vmul.f32 %v3011, 1.442695
        %v3315 = vpow.pop %v3314
        %v3316 = vmul.f32 %v3012, 1.442695
        %v3317 = vpow.pop %v3316
        %v3318 = vmul.f32 %v3013, 1.442695
        %v3319 = vpow.pop %v3318
        %v3320 = vmul.f32 %v3014, 1.442695
        %v3321 = vpow.pop %v3320
        %v3322 = vmul.f32 %v3015, 1.442695
        %v3323 = vpow.pop %v3322
        %v3324 = vmul.f32 %v3016, 1.442695
        %v3325 = vpow.pop %v3324
        %v3326 = vmul.f32 %v3017, 1.442695
        %v3327 = vpow.pop %v3326
        %v3328 = vmul.f32 %v3018, 1.442695
        %v3329 = vpow.pop %v3328
        %v3330 = vmul.f32 %v3019, 1.442695
        %v3331 = vpow.pop %v3330
        %v3332 = vmul.f32 %v3020, 1.442695
        %v3333 = vpow.pop %v3332
        %v3334 = vmul.f32 %v3021, 1.442695
        %v3335 = vpow.pop %v3334
        %v3336 = vmul.f32 %v3022, 1.442695
        %v3337 = vpow.pop %v3336
        %v3338 = vmul.f32 %v3023, 1.442695
        %v3339 = vpow.pop %v3338
        %v3340 = vmul.f32 %v3024, 1.442695
        %v3341 = vpow.pop %v3340
        %v3342 = vmul.f32 %v3025, 1.442695
        %v3343 = vpow.pop %v3342
        %v3344 = vmul.f32 %v3026, 1.442695
        %v3345 = vpow.pop %v3344
        %v3346 = vmul.f32 %v3027, 1.442695
        %v3347 = vpow.pop %v3346
        %v3348 = vmul.f32 %v3028, 1.442695
        %v3349 = vpow.pop %v3348
        %v3350 = vmul.f32 %v3029, 1.442695
        %v3351 = vpow.pop %v3350
        %v3352 = vmul.f32 %v3030, 1.442695
        %v3353 = vpow.pop %v3352
        %v3354 = vmul.f32 %v3031, 1.442695
        %v3355 = vpow.pop %v3354
        %v3356 = vmul.f32 %v3032, 1.442695
        %v3357 = vpow.pop %v3356
        %v3358 = vmul.f32 %v3033, 1.442695
        %v3359 = vpow.pop %v3358
        %v3360 = vmul.f32 %v3034, 1.442695
        %v3361 = vpow.pop %v3360
        %v3362 = vmul.f32 %v3035, 1.442695
        %v3363 = vpow.pop %v3362
        %v3364 = vmul.f32 %v3036, 1.442695
        %v3365 = vpow.pop %v3364
        %v3366 = vmul.f32 %v3037, 1.442695
        %v3367 = vpow.pop %v3366
        %v3368 = vmul.f32 %v3038, 1.442695
        %v3369 = vpow.pop %v3368
        %v3370 = vmul.f32 %v3039, 1.442695
        %v3371 = vpow.pop %v3370
        %v3372 = vmul.f32 %v3040, 1.442695
        %v3373 = vpow.pop %v3372
        %v3374 = vmul.f32 %v3041, 1.442695
        %v3375 = vpow.pop %v3374
        %v3376 = vmul.f32 %v3042, 1.442695
        %v3377 = vpow.pop %v3376
        %v3378 = vmul.f32 %v3043, 1.442695
        %v3379 = vpow.pop %v3378
        %v3380 = vmul.f32 %v3044, 1.442695
        %v3381 = vpow.pop %v3380
        %v3382 = vmul.f32 %v3045, 1.442695
        %v3383 = vpow.pop %v3382
        %v3384 = vmul.f32 %v3046, 1.442695
        %v3385 = vpow.pop %v3384
        %v3386 = vmul.f32 %v3047, 1.442695
        %v3387 = vpow.pop %v3386
        %v3388 = vmul.f32 %v3048, 1.442695
        %v3389 = vpow.pop %v3388
        %v3390 = vmul.f32 %v3049, 1.442695
        %v3391 = vpow.pop %v3390
        %v3392 = vmul.f32 %v3050, 1.442695
        %v3393 = vpow.pop %v3392
        %v3394 = vmul.f32 %v3051, 1.442695
        %v3395 = vpow.pop %v3394
        %v3396 = vmul.f32 %v3052, 1.442695
        %v3397 = vpow.pop %v3396
        %v3398 = vmul.f32 %v3053, 1.442695
        %v3399 = vpow.pop %v3398
        %v3400 = vmul.f32 %v3054, 1.442695
        %v3401 = vpow.pop %v3400
        %v3402 = vmul.f32 %v3055, 1.442695
        %v3403 = vpow.pop %v3402
        %v3404 = vmul.f32 %v3056, 1.442695
        %v3405 = vpow.pop %v3404
        %v3406 = vmul.f32 %v3057, 1.442695
        %v3407 = vpow.pop %v3406
        %v3408 = vmul.f32 %v3058, 1.442695
        %v3409 = vpow.pop %v3408
        %v3410 = vmul.f32 %v3059, 1.442695
        %v3411 = vpow.pop %v3410
        %v3412 = vmul.f32 %v3060, 1.442695
        %v3413 = vpow.pop %v3412
        %v3414 = vmul.f32 %v3061, 1.442695
        %v3415 = vpow.pop %v3414
        %v3416 = vmul.f32 %v3062, 1.442695
        %v3417 = vpow.pop %v3416
        %v3418 = vmul.f32 %v3063, 1.442695
        %v3419 = vpow.pop %v3418
        %v3420 = vmul.f32 %v3064, 1.442695
        %v3421 = vpow.pop %v3420
        %v3422 = vmul.f32 %v3065, 1.442695
        %v3423 = vpow.pop %v3422
        %v3424 = vmul.f32 %v3066, 1.442695
        %v3425 = vpow.pop %v3424
        %v3426 = vmul.f32 %v3067, 1.442695
        %v3427 = vpow.pop %v3426
        %v3428 = vmul.f32 %v3068, 1.442695
        %v3429 = vpow.pop %v3428
        %v3430 = vmul.f32 %v3069, 1.442695
        %v3431 = vpow.pop %v3430
        %v3432 = vmul.f32 %v3070, 1.442695
        %v3433 = vpow.pop %v3432
        %v3434 = vmul.f32 %v3071, 1.442695
        %v3435 = vpow.pop %v3434
        %v3436 = vmul.f32 %v3072, 1.442695
        %v3437 = vpow.pop %v3436
        %v3438 = vmul.f32 %v3073, 1.442695
        %v3439 = vpow.pop %v3438
        %v3440 = vmul.f32 %v3074, 1.442695
        %v3441 = vpow.pop %v3440
        %v3442 = vmul.f32 %v3075, 1.442695
        %v3443 = vpow.pop %v3442
        %v3444 = vmul.f32 %v3076, 1.442695
        %v3445 = vpow.pop %v3444
        %v3446 = vmul.f32 %v3077, 1.442695
        %v3447 = vpow.pop %v3446
        %v3448 = vmul.f32 %v3078, 1.442695
        %v3449 = vpow.pop %v3448
        %v3450 = vmul.f32 %v3079, 1.442695
        %v3451 = vpow.pop %v3450
        %v3452 = vmul.f32 %v3080, 1.442695
        %v3453 = vpow.pop %v3452
        %v3454 = vmul.f32 %v3081, 1.442695
        %v3455 = vpow.pop %v3454
        %v3456 = vmul.f32 %v3082, 1.442695
        %v3457 = vpow.pop %v3456
        %v3458 = vmul.f32 %v3083, 1.442695
        %v3459 = vpow.pop %v3458
        %v3460 = vmul.f32 %v3084, 1.442695
        %v3461 = vpow.pop %v3460
        %v3462 = vmul.f32 %v3085, 1.442695
        %v3463 = vpow.pop %v3462
        %v3464 = vmul.f32 %v3086, 1.442695
        %v3465 = vpow.pop %v3464
        %v3466 = vmul.f32 %v3087, 1.442695
        %v3467 = vpow.pop %v3466
        %v3468 = vmul.f32 %v3088, 1.442695
        %v3469 = vpow.pop %v3468
        %v3470 = vmul.f32 %v3089, 1.442695
        %v3471 = vpow.pop %v3470
        %v3472 = vmul.f32 %v3090, 1.442695
        %v3473 = vpow.pop %v3472
        %v3474 = vmul.f32 %v3091, 1.442695
        %v3475 = vpow.pop %v3474
        %v3476 = vmul.f32 %v3092, 1.442695
        %v3477 = vpow.pop %v3476
        %v3478 = vmul.f32 %v3093, 1.442695
        %v3479 = vpow.pop %v3478
        %v3480 = vmul.f32 %v3094, 1.442695
        %v3481 = vpow.pop %v3480
        %v3482 = vmul.f32 %v3095, 1.442695
        %v3483 = vpow.pop %v3482
        %v3484 = vmul.f32 %v3096, 1.442695
        %v3485 = vpow.pop %v3484
        %v3486 = vmul.f32 %v3097, 1.442695
        %v3487 = vpow.pop %v3486
        %v3488 = vmul.f32 %v3098, 1.442695
        %v3489 = vpow.pop %v3488
        %v3490 = vmul.f32 %v3099, 1.442695
        %v3491 = vpow.pop %v3490
        %v3492 = vmul.f32 %v3100, 1.442695
        %v3493 = vpow.pop %v3492
        %v3494 = vmul.f32 %v3101, 1.442695
        %v3495 = vpow.pop %v3494
        %v3496 = vmul.f32 %v3102, 1.442695
        %v3497 = vpow.pop %v3496
        %v3498 = vmul.f32 %v3103, 1.442695
        %v3499 = vpow.pop %v3498
        %v3500 = vmul.f32 %v3104, 1.442695
        %v3501 = vpow.pop %v3500
        %v3502 = vmul.f32 %v3105, 1.442695
        %v3503 = vpow.pop %v3502
        %v3504 = vmul.f32 %v3106, 1.442695
        %v3505 = vpow.pop %v3504
        %v3506 = vmul.f32 %v3107, 1.442695
        %v3507 = vpow.pop %v3506
        %v3508 = vmul.f32 %v3108, 1.442695
        %v3509 = vpow.pop %v3508
        %v3510 = vmul.f32 %v3109, 1.442695
        %v3511 = vpow.pop %v3510
        %v3512 = vmul.f32 %v3110, 1.442695
        %v3513 = vpow.pop %v3512
        %v3514 = vmul.f32 %v3111, 1.442695
        %v3515 = vpow.pop %v3514
        %v3516 = vmul.f32 %v3112, 1.442695
        %v3517 = vpow.pop %v3516
        %v3518 = vmul.f32 %v3113, 1.442695
        %v3519 = vpow.pop %v3518
        %v3520 = vmul.f32 %v3114, 1.442695
        %v3521 = vpow.pop %v3520
        %v3522 = vmul.f32 %v3115, 1.442695
        %v3523 = vpow.pop %v3522
        %v3524 = vmul.f32 %v3116, 1.442695
        %v3525 = vpow.pop %v3524
        %v3526 = vmul.f32 %v3117, 1.442695
        %v3527 = vpow.pop %v3526
        %v3528 = vmul.f32 %v3118, 1.442695
        %v3529 = vpow.pop %v3528
        %v3530 = vmul.f32 %v3119, 1.442695
        %v3531 = vpow.pop %v3530
        %v3532 = vmul.f32 %v3120, 1.442695
        %v3533 = vpow.pop %v3532
        %v3534 = vmul.f32 %v3121, 1.442695
        %v3535 = vpow.pop %v3534
        %v3536 = vmul.f32 %v3122, 1.442695
        %v3537 = vpow.pop %v3536
        %v3538 = vmul.f32 %v3123, 1.442695
        %v3539 = vpow.pop %v3538
        %v3540 = vmul.f32 %v3124, 1.442695
        %v3541 = vpow.pop %v3540
        %v3542 = vmul.f32 %v3125, 1.442695
        %v3543 = vpow.pop %v3542
        %v3544 = vmul.f32 %v3126, 1.442695
        %v3545 = vpow.pop %v3544
        %v3546 = vmul.f32 %v3127, 1.442695
        %v3547 = vpow.pop %v3546
        %v3548 = vmul.f32 %v3128, 1.442695
        %v3549 = vpow.pop %v3548
        %v3550 = vmul.f32 %v3129, 1.442695
        %v3551 = vpow.pop %v3550
        %v3552 = vmul.f32 %v3130, 1.442695
        %v3553 = vpow.pop %v3552
        %v3554 = vmul.f32 %v3131, 1.442695
        %v3555 = vpow.pop %v3554
        %v3556 = vmul.f32 %v3132, 1.442695
        %v3557 = vpow.pop %v3556
        %v3558 = vmul.f32 %v3133, 1.442695
        %v3559 = vpow.pop %v3558
        %v3560 = vmul.f32 %v3134, 1.442695
        %v3561 = vpow.pop %v3560
        %v3562 = vmul.f32 %v3135, 1.442695
        %v3563 = vpow.pop %v3562
        %v3564 = vmul.f32 %v3136, 1.442695
        %v3565 = vpow.pop %v3564
        %v3566 = vmul.f32 %v3137, 1.442695
        %v3567 = vpow.pop %v3566
        %v3568 = vmul.f32 %v3138, 1.442695
        %v3569 = vpow.pop %v3568
        %v3570 = vmul.f32 %v3139, 1.442695
        %v3571 = vpow.pop %v3570
        %v3572 = vmul.f32 %v3140, 1.442695
        %v3573 = vpow.pop %v3572
        %v3574 = vmul.f32 %v3141, 1.442695
        %v3575 = vpow.pop %v3574
        %v3576 = vmul.f32 %v3142, 1.442695
        %v3577 = vpow.pop %v3576
        %v3578 = vmul.f32 %v3143, 1.442695
        %v3579 = vpow.pop %v3578
        %v3580 = vmul.f32 %v3144, 1.442695
        %v3581 = vpow.pop %v3580
        %v3582 = vmul.f32 %v3145, 1.442695
        %v3583 = vpow.pop %v3582
        %v3584 = vmul.f32 %v3146, 1.442695
        %v3585 = vpow.pop %v3584
        %v3586 = vmul.f32 %v3147, 1.442695
        %v3587 = vpow.pop %v3586
        %v3588 = vmul.f32 %v3148, 1.442695
        %v3589 = vpow.pop %v3588
        %v3590 = vmul.f32 %v3149, 1.442695
        %v3591 = vpow.pop %v3590
        %v3592 = vmul.f32 %v3150, 1.442695
        %v3593 = vpow.pop %v3592
        %v3594 = vmul.f32 %v3151, 1.442695
        %v3595 = vpow.pop %v3594
        %v3596 = vmul.f32 %v3152, 1.442695
        %v3597 = vpow.pop %v3596
        %v3598 = vmul.f32 %v3153, 1.442695
        %v3599 = vpow.pop %v3598
        %v3600 = vmul.f32 %v3154, 1.442695
        %v3601 = vpow.pop %v3600
        %v3602 = vmul.f32 %v3155, 1.442695
        %v3603 = vpow.pop %v3602
        %v3604 = vmul.f32 %v3156, 1.442695
        %v3605 = vpow.pop %v3604
        %v3606 = vmul.f32 %v3157, 1.442695
        %v3607 = vpow.pop %v3606
        %v3608 = vmul.f32 %v3158, 1.442695
        %v3609 = vpow.pop %v3608
        %v3610 = vmul.f32 %v3159, 1.442695
        %v3611 = vpow.pop %v3610
        %v3612 = vmul.f32 %v3160, 1.442695
        %v3613 = vpow.pop %v3612
        %v3614 = vmul.f32 %v3161, 1.442695
        %v3615 = vpow.pop %v3614
        %v3616 = vmul.f32 %v3162, 1.442695
        %v3617 = vpow.pop %v3616
        %v3618 = vmul.f32 %v3163, 1.442695
        %v3619 = vpow.pop %v3618
        %v3620 = vmul.f32 %v3164, 1.442695
        %v3621 = vpow.pop %v3620
        %v3622 = vmul.f32 %v3165, 1.442695
        %v3623 = vpow.pop %v3622
        %v3624 = vmul.f32 %v3166, 1.442695
        %v3625 = vpow.pop %v3624
        %v3626 = vmul.f32 %v3167, 1.442695
        %v3627 = vpow.pop %v3626
        %v3628 = vmul.f32 %v3168, 1.442695
        %v3629 = vpow.pop %v3628
        %v3630 = vmul.f32 %v3169, 1.442695
        %v3631 = vpow.pop %v3630
        %v3632 = vmul.f32 %v3170, 1.442695
        %v3633 = vpow.pop %v3632
        %v3634 = vmul.f32 %v3171, 1.442695
        %v3635 = vpow.pop %v3634
        %v3636 = vmul.f32 %v3172, 1.442695
        %v3637 = vpow.pop %v3636
        %v3638 = vmul.f32 %v3173, 1.442695
        %v3639 = vpow.pop %v3638
        %v3640 = vmul.f32 %v3174, 1.442695
        %v3641 = vpow.pop %v3640
        %v3642 = vmul.f32 %v3175, 1.442695
        %v3643 = vpow.pop %v3642
        %v3644 = vmul.f32 %v3176, 1.442695
        %v3645 = vpow.pop %v3644
        %v3646 = vmul.f32 %v3177, 1.442695
        %v3647 = vpow.pop %v3646
        %v3648 = vmul.f32 %v3178, 1.442695
        %v3649 = vpow.pop %v3648
        %v3650 = vmul.f32 %v3179, 1.442695
        %v3651 = vpow.pop %v3650
        %v3652 = vmul.f32 %v3180, 1.442695
        %v3653 = vpow.pop %v3652
        %v3654 = vmul.f32 %v3181, 1.442695
        %v3655 = vpow.pop %v3654
        %v3656 = vmul.f32 %v3182, 1.442695
        %v3657 = vpow.pop %v3656
        %v3658 = vmul.f32 %v3183, 1.442695
        %v3659 = vpow.pop %v3658
        %v3660 = vmul.f32 %v3184, 1.442695
        %v3661 = vpow.pop %v3660
        %v3662 = vmul.f32 %v3185, 1.442695
        %v3663 = vpow.pop %v3662
        %v3664 = vmul.f32 %v3186, 1.442695
        %v3665 = vpow.pop %v3664
        %v3666 = vmul.f32 %v3187, 1.442695
        %v3667 = vpow.pop %v3666
        %v3668 = vmul.f32 %v3188, 1.442695
        %v3669 = vpow.pop %v3668
        %v3670 = vmul.f32 %v3189, 1.442695
        %v3671 = vpow.pop %v3670
        %v3672 = vmul.f32 %v3190, 1.442695
        %v3673 = vpow.pop %v3672
        %v3674 = vmul.f32 %v3191, 1.442695
        %v3675 = vpow.pop %v3674
        %v3676 = vmul.f32 %v3192, 1.442695
        %v3677 = vpow.pop %v3676
        %v3678 = vmul.f32 %v3193, 1.442695
        %v3679 = vpow.pop %v3678
        %v3680 = vmul.f32 %v3194, 1.442695
        %v3681 = vpow.pop %v3680
        %v3682 = vmul.f32 %v3195, 1.442695
        %v3683 = vpow.pop %v3682
        %v3684 = vmul.f32 %v3196, 1.442695
        %v3685 = vpow.pop %v3684
        %v3686 = vmul.f32 %v3197, 1.442695
        %v3687 = vpow.pop %v3686
        %v3688 = vmul.f32 %v3198, 1.442695
        %v3689 = vpow.pop %v3688
        %v3690 = vmul.f32 %v3199, 1.442695
        %v3691 = vpow.pop %v3690
        %v3692 = vmul.f32 %v3200, 1.442695
        %v3693 = vpow.pop %v3692
        %v3694 = vmul.f32 %v3201, 1.442695
        %v3695 = vpow.pop %v3694
        %v3696 = vmul.f32 %v3202, 1.442695
        %v3697 = vpow.pop %v3696
        %v3698 = vmul.f32 %v3203, 1.442695
        %v3699 = vpow.pop %v3698
        %v3700 = vmul.f32 %v3204, 1.442695
        %v3701 = vpow.pop %v3700
        %v3702 = vmul.f32 %v3205, 1.442695
        %v3703 = vpow.pop %v3702
        %v3704 = vmul.f32 %v3206, 1.442695
        %v3705 = vpow.pop %v3704
        %v3706 = vmul.f32 %v3207, 1.442695
        %v3707 = vpow.pop %v3706
        %v3708 = vmul.f32 %v3208, 1.442695
        %v3709 = vpow.pop %v3708
        %v3710 = vmul.f32 %v3209, 1.442695
        %v3711 = vpow.pop %v3710
        %v3712 = vmul.f32 %v3210, 1.442695
        %v3713 = vpow.pop %v3712
        %v3714 = vmul.f32 %v3211, 1.442695
        %v3715 = vpow.pop %v3714
        %v3716 = vmul.f32 %v3212, 1.442695
        %v3717 = vpow.pop %v3716
        %v3718 = vmul.f32 %v3213, 1.442695
        %v3719 = vpow.pop %v3718
        %v3720 = vmul.f32 %v3214, 1.442695
        %v3721 = vpow.pop %v3720
        %v3722 = vmul.f32 %v3215, 1.442695
        %v3723 = vpow.pop %v3722
        %v3724 = vmul.f32 %v3216, 1.442695
        %v3725 = vpow.pop %v3724
        %v3726 = vmul.f32 %v3217, 1.442695
        %v3727 = vpow.pop %v3726
        %v3728 = vmul.f32 %v3218, 1.442695
        %v3729 = vpow.pop %v3728
        %v3730 = vmul.f32 %v3219, 1.442695
        %v3731 = vpow.pop %v3730
        %v3732 = vadd.f32 %v3221, %v3225
        %v3733 = vadd.f32 %v3732, %v3229
        %v3734 = vadd.f32 %v3733, %v3233
        %v3735 = vadd.f32 %v3734, %v3237
        %v3736 = vadd.f32 %v3735, %v3241
        %v3737 = vadd.f32 %v3736, %v3245
        %v3738 = vadd.f32 %v3737, %v3249
        %v3739 = vadd.f32 %v3738, %v3253
        %v3740 = vadd.f32 %v3739, %v3257
        %v3741 = vadd.f32 %v3740, %v3261
        %v3742 = vadd.f32 %v3741, %v3265
        %v3743 = vadd.f32 %v3742, %v3269
        %v3744 = vadd.f32 %v3743, %v3273
        %v3745 = vadd.f32 %v3744, %v3277
        %v3746 = vadd.f32 %v3745, %v3281
        %v3747 = vadd.f32 %v3746, %v3285
        %v3748 = vadd.f32 %v3747, %v3289
        %v3749 = vadd.f32 %v3748, %v3293
        %v3750 = vadd.f32 %v3749, %v3297
        %v3751 = vadd.f32 %v3750, %v3301
        %v3752 = vadd.f32 %v3751, %v3305
        %v3753 = vadd.f32 %v3752, %v3309
        %v3754 = vadd.f32 %v3753, %v3313
        %v3755 = vadd.f32 %v3754, %v3317
        %v3756 = vadd.f32 %v3755, %v3321
        %v3757 = vadd.f32 %v3756, %v3325
        %v3758 = vadd.f32 %v3757, %v3329
        %v3759 = vadd.f32 %v3758, %v3333
        %v3760 = vadd.f32 %v3759, %v3337
        %v3761 = vadd.f32 %v3760, %v3341
        %v3762 = vadd.f32 %v3761, %v3345
        %v3763 = vrot.slane %v3762, 4
        %v3764 = vadd.f32 %v3762, %v3763
        %v3765 = vrot.slane %v3764, 2
        %v3766 = vadd.f32 %v3764, %v3765
        %v3767 = vrot.slane %v3766, 1
        %v3768 = vadd.f32 %v3766, %v3767
        %v3769 = vadd.f32 %v3223, %v3227
        %v3770 = vadd.f32 %v3769, %v3231
        %v3771 = vadd.f32 %v3770, %v3235
        %v3772 = vadd.f32 %v3771, %v3239
        %v3773 = vadd.f32 %v3772, %v3243
        %v3774 = vadd.f32 %v3773, %v3247
        %v3775 = vadd.f32 %v3774, %v3251
        %v3776 = vadd.f32 %v3775, %v3255
        %v3777 = vadd.f32 %v3776, %v3259
        %v3778 = vadd.f32 %v3777, %v3263
        %v3779 = vadd.f32 %v3778, %v3267
        %v3780 = vadd.f32 %v3779, %v3271
        %v3781 = vadd.f32 %v3780, %v3275
        %v3782 = vadd.f32 %v3781, %v3279
        %v3783 = vadd.f32 %v3782, %v3283
        %v3784 = vadd.f32 %v3783, %v3287
        %v3785 = vadd.f32 %v3784, %v3291
        %v3786 = vadd.f32 %v3785, %v3295
        %v3787 = vadd.f32 %v3786, %v3299
        %v3788 = vadd.f32 %v3787, %v3303
        %v3789 = vadd.f32 %v3788, %v3307
        %v3790 = vadd.f32 %v3789, %v3311
        %v3791 = vadd.f32 %v3790, %v3315
        %v3792 = vadd.f32 %v3791, %v3319
        %v3793 = vadd.f32 %v3792, %v3323
        %v3794 = vadd.f32 %v3793, %v3327
        %v3795 = vadd.f32 %v3794, %v3331
        %v3796 = vadd.f32 %v3795, %v3335
        %v3797 = vadd.f32 %v3796, %v3339
        %v3798 = vadd.f32 %v3797, %v3343
        %v3799 = vadd.f32 %v3798, %v3347
        %v3800 = vrot.slane %v3799, 4
        %v3801 = vadd.f32 %v3799, %v3800
        %v3802 = vrot.slane %v3801, 2
        %v3803 = vadd.f32 %v3801, %v3802
        %v3804 = vrot.slane %v3803, 1
        %v3805 = vadd.f32 %v3803, %v3804
        %v3806 = vadd.f32 %v3349, %v3353
        %v3807 = vadd.f32 %v3806, %v3357
        %v3808 = vadd.f32 %v3807, %v3361
        %v3809 = vadd.f32 %v3808, %v3365
        %v3810 = vadd.f32 %v3809, %v3369
        %v3811 = vadd.f32 %v3810, %v3373
        %v3812 = vadd.f32 %v3811, %v3377
        %v3813 = vadd.f32 %v3812, %v3381
        %v3814 = vadd.f32 %v3813, %v3385
        %v3815 = vadd.f32 %v3814, %v3389
        %v3816 = vadd.f32 %v3815, %v3393
        %v3817 = vadd.f32 %v3816, %v3397
        %v3818 = vadd.f32 %v3817, %v3401
        %v3819 = vadd.f32 %v3818, %v3405
        %v3820 = vadd.f32 %v3819, %v3409
        %v3821 = vadd.f32 %v3820, %v3413
        %v3822 = vadd.f32 %v3821, %v3417
        %v3823 = vadd.f32 %v3822, %v3421
        %v3824 = vadd.f32 %v3823, %v3425
        %v3825 = vadd.f32 %v3824, %v3429
        %v3826 = vadd.f32 %v3825, %v3433
        %v3827 = vadd.f32 %v3826, %v3437
        %v3828 = vadd.f32 %v3827, %v3441
        %v3829 = vadd.f32 %v3828, %v3445
        %v3830 = vadd.f32 %v3829, %v3449
        %v3831 = vadd.f32 %v3830, %v3453
        %v3832 = vadd.f32 %v3831, %v3457
        %v3833 = vadd.f32 %v3832, %v3461
        %v3834 = vadd.f32 %v3833, %v3465
        %v3835 = vadd.f32 %v3834, %v3469
        %v3836 = vadd.f32 %v3835, %v3473
        %v3837 = vrot.slane %v3836, 4
        %v3838 = vadd.f32 %v3836, %v3837
        %v3839 = vrot.slane %v3838, 2
        %v3840 = vadd.f32 %v3838, %v3839
        %v3841 = vrot.slane %v3840, 1
        %v3842 = vadd.f32 %v3840, %v3841
        %v3843 = vadd.f32 %v3351, %v3355
        %v3844 = vadd.f32 %v3843, %v3359
        %v3845 = vadd.f32 %v3844, %v3363
        %v3846 = vadd.f32 %v3845, %v3367
        %v3847 = vadd.f32 %v3846, %v3371
        %v3848 = vadd.f32 %v3847, %v3375
        %v3849 = vadd.f32 %v3848, %v3379
        %v3850 = vadd.f32 %v3849, %v3383
        %v3851 = vadd.f32 %v3850, %v3387
        %v3852 = vadd.f32 %v3851, %v3391
        %v3853 = vadd.f32 %v3852, %v3395
        %v3854 = vadd.f32 %v3853, %v3399
        %v3855 = vadd.f32 %v3854, %v3403
        %v3856 = vadd.f32 %v3855, %v3407
        %v3857 = vadd.f32 %v3856, %v3411
        %v3858 = vadd.f32 %v3857, %v3415
        %v3859 = vadd.f32 %v3858, %v3419
        %v3860 = vadd.f32 %v3859, %v3423
        %v3861 = vadd.f32 %v3860, %v3427
        %v3862 = vadd.f32 %v3861, %v3431
        %v3863 = vadd.f32 %v3862, %v3435
        %v3864 = vadd.f32 %v3863, %v3439
        %v3865 = vadd.f32 %v3864, %v3443
        %v3866 = vadd.f32 %v3865, %v3447
        %v3867 = vadd.f32 %v3866, %v3451
        %v3868 = vadd.f32 %v3867, %v3455
        %v3869 = vadd.f32 %v3868, %v3459
        %v3870 = vadd.f32 %v3869, %v3463
        %v3871 = vadd.f32 %v3870, %v3467
        %v3872 = vadd.f32 %v3871, %v3471
        %v3873 = vadd.f32 %v3872, %v3475
        %v3874 = vrot.slane %v3873, 4
        %v3875 = vadd.f32 %v3873, %v3874
        %v3876 = vrot.slane %v3875, 2
        %v3877 = vadd.f32 %v3875, %v3876
        %v3878 = vrot.slane %v3877, 1
        %v3879 = vadd.f32 %v3877, %v3878
        %v3880 = vadd.f32 %v3477, %v3481
        %v3881 = vadd.f32 %v3880, %v3485
        %v3882 = vadd.f32 %v3881, %v3489
        %v3883 = vadd.f32 %v3882, %v3493
        %v3884 = vadd.f32 %v3883, %v3497
        %v3885 = vadd.f32 %v3884, %v3501
        %v3886 = vadd.f32 %v3885, %v3505
        %v3887 = vadd.f32 %v3886, %v3509
        %v3888 = vadd.f32 %v3887, %v3513
        %v3889 = vadd.f32 %v3888, %v3517
        %v3890 = vadd.f32 %v3889, %v3521
        %v3891 = vadd.f32 %v3890, %v3525
        %v3892 = vadd.f32 %v3891, %v3529
        %v3893 = vadd.f32 %v3892, %v3533
        %v3894 = vadd.f32 %v3893, %v3537
        %v3895 = vadd.f32 %v3894, %v3541
        %v3896 = vadd.f32 %v3895, %v3545
        %v3897 = vadd.f32 %v3896, %v3549
        %v3898 = vadd.f32 %v3897, %v3553
        %v3899 = vadd.f32 %v3898, %v3557
        %v3900 = vadd.f32 %v3899, %v3561
        %v3901 = vadd.f32 %v3900, %v3565
        %v3902 = vadd.f32 %v3901, %v3569
        %v3903 = vadd.f32 %v3902, %v3573
        %v3904 = vadd.f32 %v3903, %v3577
        %v3905 = vadd.f32 %v3904, %v3581
        %v3906 = vadd.f32 %v3905, %v3585
        %v3907 = vadd.f32 %v3906, %v3589
        %v3908 = vadd.f32 %v3907, %v3593
        %v3909 = vadd.f32 %v3908, %v3597
        %v3910 = vadd.f32 %v3909, %v3601
        %v3911 = vrot.slane %v3910, 4
        %v3912 = vadd.f32 %v3910, %v3911
        %v3913 = vrot.slane %v3912, 2
        %v3914 = vadd.f32 %v3912, %v3913
        %v3915 = vrot.slane %v3914, 1
        %v3916 = vadd.f32 %v3914, %v3915
        %v3917 = vadd.f32 %v3479, %v3483
        %v3918 = vadd.f32 %v3917, %v3487
        %v3919 = vadd.f32 %v3918, %v3491
        %v3920 = vadd.f32 %v3919, %v3495
        %v3921 = vadd.f32 %v3920, %v3499
        %v3922 = vadd.f32 %v3921, %v3503
        %v3923 = vadd.f32 %v3922, %v3507
        %v3924 = vadd.f32 %v3923, %v3511
        %v3925 = vadd.f32 %v3924, %v3515
        %v3926 = vadd.f32 %v3925, %v3519
        %v3927 = vadd.f32 %v3926, %v3523
        %v3928 = vadd.f32 %v3927, %v3527
        %v3929 = vadd.f32 %v3928, %v3531
        %v3930 = vadd.f32 %v3929, %v3535
        %v3931 = vadd.f32 %v3930, %v3539
        %v3932 = vadd.f32 %v3931, %v3543
        %v3933 = vadd.f32 %v3932, %v3547
        %v3934 = vadd.f32 %v3933, %v3551
        %v3935 = vadd.f32 %v3934, %v3555
        %v3936 = vadd.f32 %v3935, %v3559
        %v3937 = vadd.f32 %v3936, %v3563
        %v3938 = vadd.f32 %v3937, %v3567
        %v3939 = vadd.f32 %v3938, %v3571
        %v3940 = vadd.f32 %v3939, %v3575
        %v3941 = vadd.f32 %v3940, %v3579
        %v3942 = vadd.f32 %v3941, %v3583
        %v3943 = vadd.f32 %v3942, %v3587
        %v3944 = vadd.f32 %v3943, %v3591
        %v3945 = vadd.f32 %v3944, %v3595
        %v3946 = vadd.f32 %v3945, %v3599
        %v3947 = vadd.f32 %v3946, %v3603
        %v3948 = vrot.slane %v3947, 4
        %v3949 = vadd.f32 %v3947, %v3948
        %v3950 = vrot.slane %v3949, 2
        %v3951 = vadd.f32 %v3949, %v3950
        %v3952 = vrot.slane %v3951, 1
        %v3953 = vadd.f32 %v3951, %v3952
        %v3954 = vadd.f32 %v3605, %v3609
        %v3955 = vadd.f32 %v3954, %v3613
        %v3956 = vadd.f32 %v3955, %v3617
        %v3957 = vadd.f32 %v3956, %v3621
        %v3958 = vadd.f32 %v3957, %v3625
        %v3959 = vadd.f32 %v3958, %v3629
        %v3960 = vadd.f32 %v3959, %v3633
        %v3961 = vadd.f32 %v3960, %v3637
        %v3962 = vadd.f32 %v3961, %v3641
        %v3963 = vadd.f32 %v3962, %v3645
        %v3964 = vadd.f32 %v3963, %v3649
        %v3965 = vadd.f32 %v3964, %v3653
        %v3966 = vadd.f32 %v3965, %v3657
        %v3967 = vadd.f32 %v3966, %v3661
        %v3968 = vadd.f32 %v3967, %v3665
        %v3969 = vadd.f32 %v3968, %v3669
        %v3970 = vadd.f32 %v3969, %v3673
        %v3971 = vadd.f32 %v3970, %v3677
        %v3972 = vadd.f32 %v3971, %v3681
        %v3973 = vadd.f32 %v3972, %v3685
        %v3974 = vadd.f32 %v3973, %v3689
        %v3975 = vadd.f32 %v3974, %v3693
        %v3976 = vadd.f32 %v3975, %v3697
        %v3977 = vadd.f32 %v3976, %v3701
        %v3978 = vadd.f32 %v3977, %v3705
        %v3979 = vadd.f32 %v3978, %v3709
        %v3980 = vadd.f32 %v3979, %v3713
        %v3981 = vadd.f32 %v3980, %v3717
        %v3982 = vadd.f32 %v3981, %v3721
        %v3983 = vadd.f32 %v3982, %v3725
        %v3984 = vadd.f32 %v3983, %v3729
        %v3985 = vrot.slane %v3984, 4
        %v3986 = vadd.f32 %v3984, %v3985
        %v3987 = vrot.slane %v3986, 2
        %v3988 = vadd.f32 %v3986, %v3987
        %v3989 = vrot.slane %v3988, 1
        %v3990 = vadd.f32 %v3988, %v3989
        %v3991 = vadd.f32 %v3607, %v3611
        %v3992 = vadd.f32 %v3991, %v3615
        %v3993 = vadd.f32 %v3992, %v3619
        %v3994 = vadd.f32 %v3993, %v3623
        %v3995 = vadd.f32 %v3994, %v3627
        %v3996 = vadd.f32 %v3995, %v3631
        %v3997 = vadd.f32 %v3996, %v3635
        %v3998 = vadd.f32 %v3997, %v3639
        %v3999 = vadd.f32 %v3998, %v3643
        %v4000 = vadd.f32 %v3999, %v3647
        %v4001 = vadd.f32 %v4000, %v3651
        %v4002 = vadd.f32 %v4001, %v3655
        %v4003 = vadd.f32 %v4002, %v3659
        %v4004 = vadd.f32 %v4003, %v3663
        %v4005 = vadd.f32 %v4004, %v3667
        %v4006 = vadd.f32 %v4005, %v3671
        %v4007 = vadd.f32 %v4006, %v3675
        %v4008 = vadd.f32 %v4007, %v3679
        %v4009 = vadd.f32 %v4008, %v3683
        %v4010 = vadd.f32 %v4009, %v3687
        %v4011 = vadd.f32 %v4010, %v3691
        %v4012 = vadd.f32 %v4011, %v3695
        %v4013 = vadd.f32 %v4012, %v3699
        %v4014 = vadd.f32 %v4013, %v3703
        %v4015 = vadd.f32 %v4014, %v3707
        %v4016 = vadd.f32 %v4015, %v3711
        %v4017 = vadd.f32 %v4016, %v3715
        %v4018 = vadd.f32 %v4017, %v3719
        %v4019 = vadd.f32 %v4018, %v3723
        %v4020 = vadd.f32 %v4019, %v3727
        %v4021 = vadd.f32 %v4020, %v3731
        %v4022 = vrot.slane %v4021, 4
        %v4023 = vadd.f32 %v4021, %v4022
        %v4024 = vrot.slane %v4023, 2
        %v4025 = vadd.f32 %v4023, %v4024
        %v4026 = vrot.slane %v4025, 1
        %v4027 = vadd.f32 %v4025, %v4026
        %4028 = vmatprep.subr.mxu0 %v3223
        %4029 = vmatpush1.msra.mxu0 %v3221
        %4030 = vmatprep.subr.mxu0 %v3227
        %4031 = vmatpush1.msra.mxu0 %v3225
        %4032 = vmatprep.subr.mxu0 %v3231
        %4033 = vmatpush1.msra.mxu0 %v3229
        %4034 = vmatprep.subr.mxu0 %v3235
        %4035 = vmatpush1.msra.mxu0 %v3233
        %4036 = vmatprep.subr.mxu0 %v3239
        %4037 = vmatpush1.msra.mxu0 %v3237
        %4038 = vmatprep.subr.mxu0 %v3243
        %4039 = vmatpush1.msra.mxu0 %v3241
        %4040 = vmatprep.subr.mxu0 %v3247
        %4041 = vmatpush1.msra.mxu0 %v3245
        %4042 = vmatprep.subr.mxu0 %v3251
        %4043 = vmatpush1.msra.mxu0 %v3249
        %4044 = vmatprep.subr.mxu0 %v3255
        %4045 = vmatpush1.msra.mxu0 %v3253
        %4046 = vmatprep.subr.mxu0 %v3259
        %4047 = vmatpush1.msra.mxu0 %v3257
        %4048 = vmatprep.subr.mxu0 %v3263
        %4049 = vmatpush1.msra.mxu0 %v3261
        %4050 = vmatprep.subr.mxu0 %v3267
        %4051 = vmatpush1.msra.mxu0 %v3265
        %4052 = vmatprep.subr.mxu0 %v3271
        %4053 = vmatpush1.msra.mxu0 %v3269
        %4054 = vmatprep.subr.mxu0 %v3275
        %4055 = vmatpush1.msra.mxu0 %v3273
        %4056 = vmatprep.subr.mxu0 %v3279
        %4057 = vmatpush1.msra.mxu0 %v3277
        %4058 = vmatprep.subr.mxu0 %v3283
        %4059 = vmatpush1.msra.mxu0 %v3281
        %4060 = vmatprep.subr.mxu0 %v3287
        %4061 = vmatpush1.msra.mxu0 %v3285
        %4062 = vmatprep.subr.mxu0 %v3291
        %4063 = vmatpush1.msra.mxu0 %v3289
        %4064 = vmatprep.subr.mxu0 %v3295
        %4065 = vmatpush1.msra.mxu0 %v3293
        %4066 = vmatprep.subr.mxu0 %v3299
        %4067 = vmatpush1.msra.mxu0 %v3297
        %4068 = vmatprep.subr.mxu0 %v3303
        %4069 = vmatpush1.msra.mxu0 %v3301
        %4070 = vmatprep.subr.mxu0 %v3307
        %4071 = vmatpush1.msra.mxu0 %v3305
        %4072 = vmatprep.subr.mxu0 %v3311
        %4073 = vmatpush1.msra.mxu0 %v3309
        %4074 = vmatprep.subr.mxu0 %v3315
        %4075 = vmatpush1.msra.mxu0 %v3313
        %4076 = vmatprep.subr.mxu0 %v3319
        %4077 = vmatpush1.msra.mxu0 %v3317
        %4078 = vmatprep.subr.mxu0 %v3323
        %4079 = vmatpush1.msra.mxu0 %v3321
        %4080 = vmatprep.subr.mxu0 %v3327
        %4081 = vmatpush1.msra.mxu0 %v3325
        %4082 = vmatprep.subr.mxu0 %v3331
        %4083 = vmatpush1.msra.mxu0 %v3329
        %4084 = vmatprep.subr.mxu0 %v3335
        %4085 = vmatpush1.msra.mxu0 %v3333
        %4086 = vmatprep.subr.mxu0 %v3339
        %4087 = vmatpush1.msra.mxu0 %v3337
        %4088 = vmatprep.subr.mxu0 %v3343
        %4089 = vmatpush1.msra.mxu0 %v3341
        %4090 = vmatprep.subr.mxu0 %v3347
        %4091 = vmatpush1.msra.mxu0 %v3345
        %4092 = vmatprep.mubr.f32.mxu0 %v968
        %4093 = vmatmul.mubr.f32.gmra.mrb[0].mxu0 %v967
        %v4094 = vpop.f32.mrb[0].mxu0
        %v4095 = vadd.f32 0.0, %v4094
        %v4096 = vpop.f32.mrb[0].mxu0
        %v4097 = vadd.f32 0.0, %v4096
        %4098 = vmatprep.mubr.f32.mxu0 %v970
        %4099 = vmatmul.mubr.f32.gmra.mrb[0].mxu0 %v969
        %v4100 = vpop.f32.mrb[0].mxu0
        %v4101 = vadd.f32 0.0, %v4100
        %v4102 = vpop.f32.mrb[0].mxu0
        %v4103 = vadd.f32 0.0, %v4102
        %4104 = vmatprep.mubr.f32.mxu0 %v972
        %4105 = vmatmul.mubr.f32.gmra.mrb[0].mxu0 %v971
        %v4106 = vpop.f32.mrb[0].mxu0
        %v4107 = vadd.f32 0.0, %v4106
        %v4108 = vpop.f32.mrb[0].mxu0
        %v4109 = vadd.f32 0.0, %v4108
        %4110 = vmatprep.mubr.f32.mxu0 %v974
        %4111 = vmatmul.mubr.f32.gmra.mrb[0].mxu0 %v973
        %v4112 = vpop.f32.mrb[0].mxu0
        %v4113 = vadd.f32 0.0, %v4112
        %v4114 = vpop.f32.mrb[0].mxu0
        %v4115 = vadd.f32 0.0, %v4114
        %4116 = vdwg.mxu0
        %4117 = vmatprep.subr.mxu0 %v3351
        %4118 = vmatpush1.msra.mxu0 %v3349
        %4119 = vmatprep.subr.mxu0 %v3355
        %4120 = vmatpush1.msra.mxu0 %v3353
        %4121 = vmatprep.subr.mxu0 %v3359
        %4122 = vmatpush1.msra.mxu0 %v3357
        %4123 = vmatprep.subr.mxu0 %v3363
        %4124 = vmatpush1.msra.mxu0 %v3361
        %4125 = vmatprep.subr.mxu0 %v3367
        %4126 = vmatpush1.msra.mxu0 %v3365
        %4127 = vmatprep.subr.mxu0 %v3371
        %4128 = vmatpush1.msra.mxu0 %v3369
        %4129 = vmatprep.subr.mxu0 %v3375
        %4130 = vmatpush1.msra.mxu0 %v3373
        %4131 = vmatprep.subr.mxu0 %v3379
        %4132 = vmatpush1.msra.mxu0 %v3377
        %4133 = vmatprep.subr.mxu0 %v3383
        %4134 = vmatpush1.msra.mxu0 %v3381
        %4135 = vmatprep.subr.mxu0 %v3387
        %4136 = vmatpush1.msra.mxu0 %v3385
        %4137 = vmatprep.subr.mxu0 %v3391
        %4138 = vmatpush1.msra.mxu0 %v3389
        %4139 = vmatprep.subr.mxu0 %v3395
        %4140 = vmatpush1.msra.mxu0 %v3393
        %4141 = vmatprep.subr.mxu0 %v3399
        %4142 = vmatpush1.msra.mxu0 %v3397
        %4143 = vmatprep.subr.mxu0 %v3403
        %4144 = vmatpush1.msra.mxu0 %v3401
        %4145 = vmatprep.subr.mxu0 %v3407
        %4146 = vmatpush1.msra.mxu0 %v3405
        %4147 = vmatprep.subr.mxu0 %v3411
        %4148 = vmatpush1.msra.mxu0 %v3409
        %4149 = vmatprep.subr.mxu0 %v3415
        %4150 = vmatpush1.msra.mxu0 %v3413
        %4151 = vmatprep.subr.mxu0 %v3419
        %4152 = vmatpush1.msra.mxu0 %v3417
        %4153 = vmatprep.subr.mxu0 %v3423
        %4154 = vmatpush1.msra.mxu0 %v3421
        %4155 = vmatprep.subr.mxu0 %v3427
        %4156 = vmatpush1.msra.mxu0 %v3425
        %4157 = vmatprep.subr.mxu0 %v3431
        %4158 = vmatpush1.msra.mxu0 %v3429
        %4159 = vmatprep.subr.mxu0 %v3435
        %4160 = vmatpush1.msra.mxu0 %v3433
        %4161 = vmatprep.subr.mxu0 %v3439
        %4162 = vmatpush1.msra.mxu0 %v3437
        %4163 = vmatprep.subr.mxu0 %v3443
        %4164 = vmatpush1.msra.mxu0 %v3441
        %4165 = vmatprep.subr.mxu0 %v3447
        %4166 = vmatpush1.msra.mxu0 %v3445
        %4167 = vmatprep.subr.mxu0 %v3451
        %4168 = vmatpush1.msra.mxu0 %v3449
        %4169 = vmatprep.subr.mxu0 %v3455
        %4170 = vmatpush1.msra.mxu0 %v3453
        %4171 = vmatprep.subr.mxu0 %v3459
        %4172 = vmatpush1.msra.mxu0 %v3457
        %4173 = vmatprep.subr.mxu0 %v3463
        %4174 = vmatpush1.msra.mxu0 %v3461
        %4175 = vmatprep.subr.mxu0 %v3467
        %4176 = vmatpush1.msra.mxu0 %v3465
        %4177 = vmatprep.subr.mxu0 %v3471
        %4178 = vmatpush1.msra.mxu0 %v3469
        %4179 = vmatprep.subr.mxu0 %v3475
        %4180 = vmatpush1.msra.mxu0 %v3473
        %4181 = vmatprep.mubr.f32.mxu0 %v976
        %4182 = vmatmul.mubr.f32.gmra.mrb[0].mxu0 %v975
        %v4183 = vpop.f32.mrb[0].mxu0
        %v4184 = vadd.f32 0.0, %v4183
        %v4185 = vpop.f32.mrb[0].mxu0
        %v4186 = vadd.f32 0.0, %v4185
        %4187 = vmatprep.mubr.f32.mxu0 %v978
        %4188 = vmatmul.mubr.f32.gmra.mrb[0].mxu0 %v977
        %v4189 = vpop.f32.mrb[0].mxu0
        %v4190 = vadd.f32 0.0, %v4189
        %v4191 = vpop.f32.mrb[0].mxu0
        %v4192 = vadd.f32 0.0, %v4191
        %4193 = vmatprep.mubr.f32.mxu0 %v980
        %4194 = vmatmul.mubr.f32.gmra.mrb[0].mxu0 %v979
        %v4195 = vpop.f32.mrb[0].mxu0
        %v4196 = vadd.f32 0.0, %v4195
        %v4197 = vpop.f32.mrb[0].mxu0
        %v4198 = vadd.f32 0.0, %v4197
        %4199 = vmatprep.mubr.f32.mxu0 %v982
        %4200 = vmatmul.mubr.f32.gmra.mrb[0].mxu0 %v981
        %v4201 = vpop.f32.mrb[0].mxu0
        %v4202 = vadd.f32 0.0, %v4201
        %v4203 = vpop.f32.mrb[0].mxu0
        %v4204 = vadd.f32 0.0, %v4203
        %4205 = vdwg.mxu0
        %4206 = vmatprep.subr.mxu0 %v3479
        %4207 = vmatpush1.msra.mxu0 %v3477
        %4208 = vmatprep.subr.mxu0 %v3483
        %4209 = vmatpush1.msra.mxu0 %v3481
        %4210 = vmatprep.subr.mxu0 %v3487
        %4211 = vmatpush1.msra.mxu0 %v3485
        %4212 = vmatprep.subr.mxu0 %v3491
        %4213 = vmatpush1.msra.mxu0 %v3489
        %4214 = vmatprep.subr.mxu0 %v3495
        %4215 = vmatpush1.msra.mxu0 %v3493
        %4216 = vmatprep.subr.mxu0 %v3499
        %4217 = vmatpush1.msra.mxu0 %v3497
        %4218 = vmatprep.subr.mxu0 %v3503
        %4219 = vmatpush1.msra.mxu0 %v3501
        %4220 = vmatprep.subr.mxu0 %v3507
        %4221 = vmatpush1.msra.mxu0 %v3505
        %4222 = vmatprep.subr.mxu0 %v3511
        %4223 = vmatpush1.msra.mxu0 %v3509
        %4224 = vmatprep.subr.mxu0 %v3515
        %4225 = vmatpush1.msra.mxu0 %v3513
        %4226 = vmatprep.subr.mxu0 %v3519
        %4227 = vmatpush1.msra.mxu0 %v3517
        %4228 = vmatprep.subr.mxu0 %v3523
        %4229 = vmatpush1.msra.mxu0 %v3521
        %4230 = vmatprep.subr.mxu0 %v3527
        %4231 = vmatpush1.msra.mxu0 %v3525
        %4232 = vmatprep.subr.mxu0 %v3531
        %4233 = vmatpush1.msra.mxu0 %v3529
        %4234 = vmatprep.subr.mxu0 %v3535
        %4235 = vmatpush1.msra.mxu0 %v3533
        %4236 = vmatprep.subr.mxu0 %v3539
        %4237 = vmatpush1.msra.mxu0 %v3537
        %4238 = vmatprep.subr.mxu0 %v3543
        %4239 = vmatpush1.msra.mxu0 %v3541
        %4240 = vmatprep.subr.mxu0 %v3547
        %4241 = vmatpush1.msra.mxu0 %v3545
        %4242 = vmatprep.subr.mxu0 %v3551
        %4243 = vmatpush1.msra.mxu0 %v3549
        %4244 = vmatprep.subr.mxu0 %v3555
        %4245 = vmatpush1.msra.mxu0 %v3553
        %4246 = vmatprep.subr.mxu0 %v3559
        %4247 = vmatpush1.msra.mxu0 %v3557
        %4248 = vmatprep.subr.mxu0 %v3563
        %4249 = vmatpush1.msra.mxu0 %v3561
        %4250 = vmatprep.subr.mxu0 %v3567
        %4251 = vmatpush1.msra.mxu0 %v3565
        %4252 = vmatprep.subr.mxu0 %v3571
        %4253 = vmatpush1.msra.mxu0 %v3569
        %4254 = vmatprep.subr.mxu0 %v3575
        %4255 = vmatpush1.msra.mxu0 %v3573
        %4256 = vmatprep.subr.mxu0 %v3579
        %4257 = vmatpush1.msra.mxu0 %v3577
        %4258 = vmatprep.subr.mxu0 %v3583
        %4259 = vmatpush1.msra.mxu0 %v3581
        %4260 = vmatprep.subr.mxu0 %v3587
        %4261 = vmatpush1.msra.mxu0 %v3585
        %4262 = vmatprep.subr.mxu0 %v3591
        %4263 = vmatpush1.msra.mxu0 %v3589
        %4264 = vmatprep.subr.mxu0 %v3595
        %4265 = vmatpush1.msra.mxu0 %v3593
        %4266 = vmatprep.subr.mxu0 %v3599
        %4267 = vmatpush1.msra.mxu0 %v3597
        %4268 = vmatprep.subr.mxu0 %v3603
        %4269 = vmatpush1.msra.mxu0 %v3601
        %4270 = vmatprep.mubr.f32.mxu0 %v984
        %4271 = vmatmul.mubr.f32.gmra.mrb[0].mxu0 %v983
        %v4272 = vpop.f32.mrb[0].mxu0
        %v4273 = vadd.f32 0.0, %v4272
        %v4274 = vpop.f32.mrb[0].mxu0
        %v4275 = vadd.f32 0.0, %v4274
        %4276 = vmatprep.mubr.f32.mxu0 %v986
        %4277 = vmatmul.mubr.f32.gmra.mrb[0].mxu0 %v985
        %v4278 = vpop.f32.mrb[0].mxu0
        %v4279 = vadd.f32 0.0, %v4278
        %v4280 = vpop.f32.mrb[0].mxu0
        %v4281 = vadd.f32 0.0, %v4280
        %4282 = vmatprep.mubr.f32.mxu0 %v988
        %4283 = vmatmul.mubr.f32.gmra.mrb[0].mxu0 %v987
        %v4284 = vpop.f32.mrb[0].mxu0
        %v4285 = vadd.f32 0.0, %v4284
        %v4286 = vpop.f32.mrb[0].mxu0
        %v4287 = vadd.f32 0.0, %v4286
        %4288 = vmatprep.mubr.f32.mxu0 %v990
        %4289 = vmatmul.mubr.f32.gmra.mrb[0].mxu0 %v989
        %v4290 = vpop.f32.mrb[0].mxu0
        %v4291 = vadd.f32 0.0, %v4290
        %v4292 = vpop.f32.mrb[0].mxu0
        %v4293 = vadd.f32 0.0, %v4292
        %4294 = vdwg.mxu0
        %4295 = vmatprep.subr.mxu0 %v3607
        %4296 = vmatpush1.msra.mxu0 %v3605
        %4297 = vmatprep.subr.mxu0 %v3611
        %4298 = vmatpush1.msra.mxu0 %v3609
        %4299 = vmatprep.subr.mxu0 %v3615
        %4300 = vmatpush1.msra.mxu0 %v3613
        %4301 = vmatprep.subr.mxu0 %v3619
        %4302 = vmatpush1.msra.mxu0 %v3617
        %4303 = vmatprep.subr.mxu0 %v3623
        %4304 = vmatpush1.msra.mxu0 %v3621
        %4305 = vmatprep.subr.mxu0 %v3627
        %4306 = vmatpush1.msra.mxu0 %v3625
        %4307 = vmatprep.subr.mxu0 %v3631
        %4308 = vmatpush1.msra.mxu0 %v3629
        %4309 = vmatprep.subr.mxu0 %v3635
        %4310 = vmatpush1.msra.mxu0 %v3633
        %4311 = vmatprep.subr.mxu0 %v3639
        %4312 = vmatpush1.msra.mxu0 %v3637
        %4313 = vmatprep.subr.mxu0 %v3643
        %4314 = vmatpush1.msra.mxu0 %v3641
        %4315 = vmatprep.subr.mxu0 %v3647
        %4316 = vmatpush1.msra.mxu0 %v3645
        %4317 = vmatprep.subr.mxu0 %v3651
        %4318 = vmatpush1.msra.mxu0 %v3649
        %4319 = vmatprep.subr.mxu0 %v3655
        %4320 = vmatpush1.msra.mxu0 %v3653
        %4321 = vmatprep.subr.mxu0 %v3659
        %4322 = vmatpush1.msra.mxu0 %v3657
        %4323 = vmatprep.subr.mxu0 %v3663
        %4324 = vmatpush1.msra.mxu0 %v3661
        %4325 = vmatprep.subr.mxu0 %v3667
        %4326 = vmatpush1.msra.mxu0 %v3665
        %4327 = vmatprep.subr.mxu0 %v3671
        %4328 = vmatpush1.msra.mxu0 %v3669
        %4329 = vmatprep.subr.mxu0 %v3675
        %4330 = vmatpush1.msra.mxu0 %v3673
        %4331 = vmatprep.subr.mxu0 %v3679
        %4332 = vmatpush1.msra.mxu0 %v3677
        %4333 = vmatprep.subr.mxu0 %v3683
        %4334 = vmatpush1.msra.mxu0 %v3681
        %4335 = vmatprep.subr.mxu0 %v3687
        %4336 = vmatpush1.msra.mxu0 %v3685
        %4337 = vmatprep.subr.mxu0 %v3691
        %4338 = vmatpush1.msra.mxu0 %v3689
        %4339 = vmatprep.subr.mxu0 %v3695
        %4340 = vmatpush1.msra.mxu0 %v3693
        %4341 = vmatprep.subr.mxu0 %v3699
        %4342 = vmatpush1.msra.mxu0 %v3697
        %4343 = vmatprep.subr.mxu0 %v3703
        %4344 = vmatpush1.msra.mxu0 %v3701
        %4345 = vmatprep.subr.mxu0 %v3707
        %4346 = vmatpush1.msra.mxu0 %v3705
        %4347 = vmatprep.subr.mxu0 %v3711
        %4348 = vmatpush1.msra.mxu0 %v3709
        %4349 = vmatprep.subr.mxu0 %v3715
        %4350 = vmatpush1.msra.mxu0 %v3713
        %4351 = vmatprep.subr.mxu0 %v3719
        %4352 = vmatpush1.msra.mxu0 %v3717
        %4353 = vmatprep.subr.mxu0 %v3723
        %4354 = vmatpush1.msra.mxu0 %v3721
        %4355 = vmatprep.subr.mxu0 %v3727
        %4356 = vmatpush1.msra.mxu0 %v3725
        %4357 = vmatprep.subr.mxu0 %v3731
        %4358 = vmatpush1.msra.mxu0 %v3729
        %4359 = vmatprep.mubr.f32.mxu0 %v992
        %4360 = vmatmul.mubr.f32.gmra.mrb[0].mxu0 %v991
        %v4361 = vpop.f32.mrb[0].mxu0
        %v4362 = vadd.f32 0.0, %v4361
        %v4363 = vpop.f32.mrb[0].mxu0
        %v4364 = vadd.f32 0.0, %v4363
        %4365 = vmatprep.mubr.f32.mxu0 %v994
        %4366 = vmatmul.mubr.f32.gmra.mrb[0].mxu0 %v993
        %v4367 = vpop.f32.mrb[0].mxu0
        %v4368 = vadd.f32 0.0, %v4367
        %v4369 = vpop.f32.mrb[0].mxu0
        %v4370 = vadd.f32 0.0, %v4369
        %4371 = vmatprep.mubr.f32.mxu0 %v996
        %4372 = vmatmul.mubr.f32.gmra.mrb[0].mxu0 %v995
        %v4373 = vpop.f32.mrb[0].mxu0
        %v4374 = vadd.f32 0.0, %v4373
        %v4375 = vpop.f32.mrb[0].mxu0
        %v4376 = vadd.f32 0.0, %v4375
        %4377 = vmatprep.mubr.f32.mxu0 %v998
        %4378 = vmatmul.mubr.f32.gmra.mrb[0].mxu0 %v997
        %v4379 = vpop.f32.mrb[0].mxu0
        %v4380 = vadd.f32 0.0, %v4379
        %v4381 = vpop.f32.mrb[0].mxu0
        %v4382 = vadd.f32 0.0, %v4381
        %4383 = vdwg.mxu0
        %v4384 = vrcp.pop %v3768
        %v4385 = vmul.f32 %v4095, %v4384
        %v4386 = vrcp.pop %v3805
        %v4387 = vmul.f32 %v4097, %v4386
        %v4388 = vmul.f32 %v4101, %v4384
        %v4389 = vmul.f32 %v4103, %v4386
        %v4390 = vmul.f32 %v4107, %v4384
        %v4391 = vmul.f32 %v4109, %v4386
        %v4392 = vmul.f32 %v4113, %v4384
        %v4393 = vmul.f32 %v4115, %v4386
        %v4394 = vrcp.pop %v3842
        %v4395 = vmul.f32 %v4184, %v4394
        %v4396 = vrcp.pop %v3879
        %v4397 = vmul.f32 %v4186, %v4396
        %v4398 = vmul.f32 %v4190, %v4394
        %v4399 = vmul.f32 %v4192, %v4396
        %v4400 = vmul.f32 %v4196, %v4394
        %v4401 = vmul.f32 %v4198, %v4396
        %v4402 = vmul.f32 %v4202, %v4394
        %v4403 = vmul.f32 %v4204, %v4396
        %v4404 = vrcp.pop %v3916
        %v4405 = vmul.f32 %v4273, %v4404
        %v4406 = vrcp.pop %v3953
        %v4407 = vmul.f32 %v4275, %v4406
        %v4408 = vmul.f32 %v4279, %v4404
        %v4409 = vmul.f32 %v4281, %v4406
        %v4410 = vmul.f32 %v4285, %v4404
        %v4411 = vmul.f32 %v4287, %v4406
        %v4412 = vmul.f32 %v4291, %v4404
        %v4413 = vmul.f32 %v4293, %v4406
        %v4414 = vrcp.pop %v3990
        %v4415 = vmul.f32 %v4362, %v4414
        %v4416 = vrcp.pop %v4027
        %v4417 = vmul.f32 %v4364, %v4416
        %v4418 = vmul.f32 %v4368, %v4414
        %v4419 = vmul.f32 %v4370, %v4416
        %v4420 = vmul.f32 %v4374, %v4414
        %v4421 = vmul.f32 %v4376, %v4416
        %v4422 = vmul.f32 %v4380, %v4414
        %v4423 = vmul.f32 %v4382, %v4416
        %v4424 = vld [vmem:[%s3] sm:$0xf]
        %v4425 = vld [vmem:[%s4] sm:$0xf]
        %4427 = vset.pattern.permute.xlu0 0
        %4428 = vperm.xlu0 %4427, %v4425
        %v4429 = vpop.permute.xlu0 %4428
        %4431 = vmatprep.subr.mxu0 %v4387
        %4432 = vmatpush1.msra.mxu0 %v4385
        %4433 = vmatprep.subr.mxu0 %v4389
        %4434 = vmatpush1.msra.mxu0 %v4388
        %4435 = vmatprep.subr.mxu0 %v4391
        %4436 = vmatpush1.msra.mxu0 %v4390
        %4437 = vmatprep.subr.mxu0 %v4393
        %4438 = vmatpush1.msra.mxu0 %v4392
        %4439 = vmatprep.subr.mxu0 %v4397
        %4440 = vmatpush1.msra.mxu0 %v4395
        %4441 = vmatprep.subr.mxu0 %v4399
        %4442 = vmatpush1.msra.mxu0 %v4398
        %4443 = vmatprep.subr.mxu0 %v4401
        %4444 = vmatpush1.msra.mxu0 %v4400
        %4445 = vmatprep.subr.mxu0 %v4403
        %4446 = vmatpush1.msra.mxu0 %v4402
        %4447 = vmatprep.subr.mxu0 %v4407
        %4448 = vmatpush1.msra.mxu0 %v4405
        %4449 = vmatprep.subr.mxu0 %v4409
        %4450 = vmatpush1.msra.mxu0 %v4408
        %4451 = vmatprep.subr.mxu0 %v4411
        %4452 = vmatpush1.msra.mxu0 %v4410
        %4453 = vmatprep.subr.mxu0 %v4413
        %4454 = vmatpush1.msra.mxu0 %v4412
        %4455 = vmatprep.subr.mxu0 %v4417
        %4456 = vmatpush1.msra.mxu0 %v4415
        %4457 = vmatprep.subr.mxu0 %v4419
        %4458 = vmatpush1.msra.mxu0 %v4418
        %4459 = vmatprep.subr.mxu0 %v4421
        %4460 = vmatpush1.msra.mxu0 %v4420
        %4461 = vmatprep.subr.mxu0 %v4423
        %4462 = vmatpush1.msra.mxu0 %v4422
        %4463 = vmatprep.subr.mxu0 0.0
        %4464 = vmatpush1.msra.mxu0 0.0
        %4465 = vmatprep.subr.mxu0 0.0
        %4466 = vmatpush1.msra.mxu0 0.0
        %4467 = vmatprep.subr.mxu0 0.0
        %4468 = vmatpush1.msra.mxu0 0.0
        %4469 = vmatprep.subr.mxu0 0.0
        %4470 = vmatpush1.msra.mxu0 0.0
        %4471 = vmatprep.subr.mxu0 0.0
        %4472 = vmatpush1.msra.mxu0 0.0
        %4473 = vmatprep.subr.mxu0 0.0
        %4474 = vmatpush1.msra.mxu0 0.0
        %4475 = vmatprep.subr.mxu0 0.0
        %4476 = vmatpush1.msra.mxu0 0.0
        %4477 = vmatprep.subr.mxu0 0.0
        %4478 = vmatpush1.msra.mxu0 0.0
        %4479 = vmatprep.subr.mxu0 0.0
        %4480 = vmatpush1.msra.mxu0 0.0
        %4481 = vmatprep.subr.mxu0 0.0
        %4482 = vmatpush1.msra.mxu0 0.0
        %4483 = vmatprep.subr.mxu0 0.0
        %4484 = vmatpush1.msra.mxu0 0.0
        %4485 = vmatprep.subr.mxu0 0.0
        %4486 = vmatpush1.msra.mxu0 0.0
        %4487 = vmatprep.subr.mxu0 0.0
        %4488 = vmatpush1.msra.mxu0 0.0
        %4489 = vmatprep.subr.mxu0 0.0
        %4490 = vmatpush1.msra.mxu0 0.0
        %4491 = vmatprep.subr.mxu0 0.0
        %4492 = vmatpush1.msra.mxu0 0.0
        %4493 = vmatprep.subr.mxu0 0.0
        %4494 = vmatpush1.msra.mxu0 0.0
        %4495 = vmatprep.mubr.f32.mxu0 0.0
        %4496 = vmatmul.mubr.f32.gmra.mrb[0].mxu0 %v4424
        %v4497 = vpop.f32.mrb[0].mxu0
        %v4498 = vadd.f32 %v4429, %v4497
        %v4499 = vpop.f32.mrb[0].mxu0
        %v4500 = vadd.f32 %v4429, %v4499
        %4501 = vdwg.mxu0
        %v4504 = vcombine.low %v4498, %v4500
        %4506 = vst [vmem:[%s231] sm:$0xff] %v4504
        %s4507 = sand.u32 %s151, 1
        %s4508 = scalar_lea.sflag [#allocation4], %s4507
        %s4509 = sand.u32 %s151, 1
        %s4510 = smul.addr %s4509, 8
        %s4511 = scalar_lea.vmem [#allocation3], %s4510
        // Predicated region
        $region45: #{tpu_custom_call.1} parent=39 // pred_check
          %p4512 = pneg %p161
        $region46: #{tpu_custom_call.1} parent=39 // pred_check_branch
          %4514 = sbr.rel (%p4512) target = $region48
        $region47: #{tpu_custom_call.1} parent=39 // pred_region
          %s4515 = smul.u32 2, %s24
          %s4517 = ssub.s32 128, 128
          %4518 = vsyncadd %s4508, %s4517
          %s4519 = smul.addr %s23, 2
          %s4520 = sadd.s32 %s4515, %s4519
          %s4521 = smul.addr %s4520, 64
          %s4522 = scalar_lea.hbm %s5, %s4521
          %s4524 = sshll.u32 %s4511, 4
          %s4525 = int_to_ptr.vmem [resolvable:$true] %s4524
          %4527 = dma.vmem_to_hbm [thread:$0]  %s4525, 128, %s4522, %s4508
        $region48: #{tpu_custom_call.1} parent=39 // pred_fallthru
          _
      $region40: #{tpu_custom_call.1} parent=5 // pred_fallthru
        _
      %p4528 = scmp.le.s32.totalorder 2, %s14
      // Predicated region
      $region49: #{tpu_custom_call.1} parent=5 // pred_check
        %p4529 = pneg %p4528
      $region50: #{tpu_custom_call.1} parent=5 // pred_check_branch
        %4531 = sbr.rel (%p4529) target = $region52
      $region51: #{tpu_custom_call.1} parent=5 // pred_region
        %s4532 = ssub.s32 %s14, 2
        // Predicated region
        $region53: #{tpu_custom_call.1} parent=51 // pred_check
          %p4533 = pneg %p167
        $region54: #{tpu_custom_call.1} parent=51 // pred_check_branch
          %4535 = sbr.rel (%p4533) target = $region56
        $region55: #{tpu_custom_call.1} parent=51 // pred_region
          %s4536 = sand.u32 %s152, 1
          %s4537 = scalar_lea.sflag [#allocation4], %s4536
          %s4538 = sand.u32 %s152, 1
          %s4539 = smul.addr %s4538, 8
          %s4540 = scalar_lea.vmem [#allocation3], %s4539
          %4541 = dma.done %s4537, 128
        $region56: #{tpu_custom_call.1} parent=51 // pred_fallthru
          _
      $region52: #{tpu_custom_call.1} parent=5 // pred_fallthru
        _
    $region6: #{tpu_custom_call.1} parent=1 // loop_footer
      %s18 = sadd.s32 1, %s14
    $region7: #{tpu_custom_call.1} parent=1 // loop_footer_branch
      %13 = sbr.rel target = $region3
    $region8: #{tpu_custom_call.1} parent=1 // loop_exit
      _
    %4542 = vsyncpa [#allocation4], 1
    %s4543 = scalar_lea.sflag [#allocation4], 1
    %4544 = vsyncpa %s4543, 1

</llo_original>
